<compile_context>
chip_gen: v5e
topology: v5e:2x2
jax: 0.10.0
libtpu: 0.0.40
codegen_flags: <defaults>
</compile_context>

<pallas_src>
import functools

import numpy as np

import jax
import jax.numpy as jnp
from jax.experimental import pallas as pl
from jax.experimental.pallas import tpu as pltpu


# ----------------------------------------------------------------------------
# Host-side (init-time) weight preparation
# ----------------------------------------------------------------------------
def _conv_as_matmul(w_oihw, H, W):
    """Unroll a VALID, stride-1 conv into a dense matrix M so that
        out_flat = in_flat @ M
    with  in_flat[ci*H*W + y*W + x]   (row-major CHW flatten)
          out_flat[co*OH*OW + i*OW + j].
    """
    Co, Ci, KH, KW = w_oihw.shape
    OH, OW = H - KH + 1, W - KW + 1
    M = np.zeros((Ci * H * W, Co * OH * OW), np.float32)
    oi, oj = np.meshgrid(np.arange(OH), np.arange(OW), indexing="ij")
    oi, oj = oi.ravel(), oj.ravel()
    for co in range(Co):
        cols = co * OH * OW + oi * OW + oj
        for ci in range(Ci):
            for ki in range(KH):
                for kj in range(KW):
                    rows = ci * H * W + (oi + ki) * W + (oj + kj)
                    M[rows, cols] = w_oihw[co, ci, ki, kj]
    return M


def _pool_group_perm(C, H, W):
    """Column permutation that regroups a CHW-flat conv-output layout
        old = c*H*W + i*W + j
    so that the four members of every 2x2/stride-2 pool window share the same offset
    inside four contiguous lane slabs:
        new = s*(C*H*W//4) + c*(H//2)*(W//2) + (i//2)*(W//2) + (j//2),  s = 2*(i%2)+(j%2)
    In-kernel max-pool is then 3 elementwise maxima of contiguous slab slices and the
    pooled result is already the CHW-flat (C, H//2, W//2) grid the next layer expects
    (stride-2 down-selection costs zero MACs downstream).
    Returns (old_idx, new_idx) flat index arrays of length C*H*W.
    """
    c, i, j = np.meshgrid(np.arange(C), np.arange(H), np.arange(W), indexing="ij")
    c, i, j = c.ravel(), i.ravel(), j.ravel()
    s = 2 * (i % 2) + (j % 2)
    old = c * (H * W) + i * W + j
    new = (s * (C * H * W // 4)
           + c * ((H // 2) * (W // 2))
           + (i // 2) * (W // 2) + (j // 2))
    return old, new


def prepare_params(params, matmul_dtype=jnp.bfloat16):
    """One-time, host-side transform of torch-layout params into the fused kernel's
    matmul operands (hoisted out of the jitted forward):

      m1 (400,1536)  conv1 as a matmul over the flattened 1x20x20 input; output
                     columns regrouped into 4 pool-corner slabs of 384 lanes.
      m2 (384,256)   conv2 as a matmul over the *compacted* pooled 6x8x8 grid
                     (no zero rows); output columns regrouped into 4 slabs of 64.
      f1 (64,120)    fc1; after pool-2 the 64 lanes are already in torch's
                     x.view(-1, 16*2*2) (C,H,W) order, so only a transpose is needed.
      f2 (120,84)    plain fc weight transposed to (in, out).
      f3 (84,128)    fc3 transposed and zero-padded to 128 output lanes so the kernel
                     emits a lane-dense HBM store; wrapper slices [:, :10].

    Matmul operands are pre-cast to bf16 (MXU-native on v5e/v6e/v7x); biases stay f32.
    """
    w1 = np.asarray(params["conv1_w"], np.float32)      # (6,1,5,5)
    b1 = np.asarray(params["conv1_b"], np.float32)      # (6,)
    w2 = np.asarray(params["conv2_w"], np.float32)      # (16,6,5,5)
    b2 = np.asarray(params["conv2_b"], np.float32)      # (16,)
    fc1_w = np.asarray(params["fc1_w"], np.float32)     # (120,64)
    fc2_w = np.asarray(params["fc2_w"], np.float32)     # (84,120)
    fc3_w = np.asarray(params["fc3_w"], np.float32)     # (10,84)

    # conv1: 1x20x20 -> 6x16x16; columns permuted into 4 pool-corner slabs of 384.
    m1_raw = _conv_as_matmul(w1, 20, 20)                 # (400,1536), cols c*256+i*16+j
    old1, new1 = _pool_group_perm(6, 16, 16)
    m1 = np.zeros_like(m1_raw)
    m1[:, new1] = m1_raw[:, old1]
    b1v = np.zeros(1536, np.float32)
    b1v[new1] = np.repeat(b1, 16 * 16)[old1]

    # conv2 on the compacted pooled 6x8x8 grid (K = 384, no zero rows); columns
    # permuted into 4 pool-corner slabs of 64.
    m2_raw = _conv_as_matmul(w2, 8, 8)                   # (384,256), cols c*16+i*4+j
    old2, new2 = _pool_group_perm(16, 4, 4)
    m2 = np.zeros_like(m2_raw)
    m2[:, new2] = m2_raw[:, old2]
    b2v = np.zeros(256, np.float32)
    b2v[new2] = np.repeat(b2, 4 * 4)[old2]

    # fc3 padded to 128 lanes (zero columns/bias) for a lane-dense output store.
    f3 = np.zeros((84, 128), np.float32)
    f3[:, :10] = fc3_w.T
    fb3 = np.zeros((1, 128), np.float32)
    fb3[0, :10] = np.asarray(params["fc3_b"], np.float32)

    return {
        "m1": jnp.asarray(m1, matmul_dtype),
        "b1": jnp.asarray(b1v[None, :], jnp.float32),                       # (1,1536)
        "m2": jnp.asarray(m2, matmul_dtype),
        "b2": jnp.asarray(b2v[None, :], jnp.float32),                       # (1,256)
        "f1": jnp.asarray(fc1_w.T, matmul_dtype),                           # (64,120)
        "fb1": jnp.asarray(np.asarray(params["fc1_b"], np.float32)[None, :], jnp.float32),
        "f2": jnp.asarray(fc2_w.T, matmul_dtype),                           # (120,84)
        "fb2": jnp.asarray(np.asarray(params["fc2_b"], np.float32)[None, :], jnp.float32),
        "f3": jnp.asarray(f3, matmul_dtype),                                # (84,128)
        "fb3": jnp.asarray(fb3, jnp.float32),                               # (1,128)
    }


# ----------------------------------------------------------------------------
# Fused Pallas kernel: whole Net forward for one batch tile
# ----------------------------------------------------------------------------
def _fused_net_kernel(x_ref, m1_ref, b1_ref, m2_ref, b2_ref,
                      f1_ref, fb1_ref, f2_ref, fb2_ref, f3_ref, fb3_ref,
                      out_ref):
    """5 MXU matmuls (bf16 operands, f32 accumulate) + VPU bias/relu/max; no HBM
    intermediates, no in-kernel reshapes, no lane shifts (pool = aligned slab maxima)."""
    f32 = jnp.float32
    bf16 = jnp.bfloat16

    # conv1 + bias + ReLU                          (TB,400) @ (400,1536)
    x = x_ref[...].astype(bf16)
    h1 = jnp.dot(x, m1_ref[...], preferred_element_type=f32) + b1_ref[...]
    h1 = jnp.maximum(h1, 0.0)

    # 2x2/stride-2 max-pool #1: columns are grouped into four 384-lane pool-corner
    # slabs, so the pool is 3 maxima of 128-aligned slices; the result is already the
    # compact 6x8x8 CHW grid conv2 expects (stride-2 selection costs nothing).
    g1 = jnp.maximum(jnp.maximum(h1[:, 0:384], h1[:, 384:768]),
                     jnp.maximum(h1[:, 768:1152], h1[:, 1152:1536]))

    # conv2 + bias + ReLU on the compacted grid    (TB,384) @ (384,256)
    h2 = jnp.dot(g1.astype(bf16), m2_ref[...], preferred_element_type=f32) + b2_ref[...]
    h2 = jnp.maximum(h2, 0.0)

    # max-pool #2: four 64-lane slabs; g2 lanes land directly in torch's
    # x.view(-1, 16*2*2) (C,H,W) flatten order.
    g2 = jnp.maximum(jnp.maximum(h2[:, 0:64], h2[:, 64:128]),
                     jnp.maximum(h2[:, 128:192], h2[:, 192:256]))

    # fc1 -> relu -> fc2 -> relu -> fc3 (fc3 zero-padded to 128 lanes for a
    # lane-dense, unmasked output store).
    z = jnp.dot(g2.astype(bf16), f1_ref[...], preferred_element_type=f32) + fb1_ref[...]
    z = jnp.maximum(z, 0.0)
    z = jnp.dot(z.astype(bf16), f2_ref[...], preferred_element_type=f32) + fb2_ref[...]
    z = jnp.maximum(z, 0.0)
    z = jnp.dot(z.astype(bf16), f3_ref[...], preferred_element_type=f32) + fb3_ref[...]
    out_ref[...] = z.astype(out_ref.dtype)


# ----------------------------------------------------------------------------
# Forward wrapper
# ----------------------------------------------------------------------------
def _pick_block_batch(n):
    """Fill the MXU rows (up to 256) while keeping >= 2 grid steps whenever the batch
    allows it (so both v7x TensorCores get work); multiple of 16 keeps bf16 sublanes
    packed and satisfies the (8,128) BlockSpec rule."""
    half = -(-n // 2)                       # ceil(n / 2)
    tile = -(-half // 16) * 16              # round up to a multiple of 16
    return max(16, min(256, tile))


def net_forward(x_nchw, prepared, *, block_batch=None):
    """x_nchw: (N, 1, 20, 20) f32 -> logits (N, 10) f32, matching Net.forward.
    block_batch (if given) must be a multiple of 8; by default it is auto-picked."""
    if block_batch is None:
        block_batch = _pick_block_batch(int(x_nchw.shape[0]))
    return _net_forward_jit(x_nchw, prepared, block_batch=block_batch)


@functools.partial(jax.jit, static_argnames=("block_batch",))
def _net_forward_jit(x_nchw, prepared, *, block_batch):
    n, c, h, w = x_nchw.shape
    assert (c, h, w) == (1, 20, 20), "Net requires 1x20x20 inputs (fc1 expects 16*2*2 features)"
    x = x_nchw.astype(jnp.float32).reshape(n, c * h * w)            # (N, 400)

    pad = (-n) % block_batch                                        # static
    if pad:  # keep batch tiles sublane-aligned
        x = jnp.concatenate([x, jnp.zeros((pad, x.shape[1]), x.dtype)], axis=0)
    nb = x.shape[0]

    w_names = ("m1", "b1", "m2", "b2", "f1", "fb1", "f2", "fb2", "f3", "fb3")
    weights = [prepared[k] for k in w_names]

    in_specs = [pl.BlockSpec((block_batch, x.shape[1]), lambda i: (i, 0))]
    # Weights: one full-array block with a constant index -> fetched once and reused
    # across grid steps (re-verify via the Mosaic dump / DMA count for very long grids).
    in_specs += [pl.BlockSpec(wt.shape, lambda i: (0, 0)) for wt in weights]

    out = pl.pallas_call(
        _fused_net_kernel,
        out_shape=jax.ShapeDtypeStruct((nb, 128), jnp.float32),     # lane-dense store
        grid=(nb // block_batch,),
        in_specs=in_specs,
        out_specs=pl.BlockSpec((block_batch, 128), lambda i: (i, 0)),
        compiler_params=pltpu.CompilerParams(
            # Batch tiles are independent -> shard grid steps across v7x's two TCs.
            dimension_semantics=("parallel",),
            # ~8 MiB peak at TB=256 (weights ~1.5 MiB bf16 double-buffered, (TB,400)
            # input, (TB,1536) f32 intermediates): 32 MiB gives headroom and stays
            # well inside v7x's 64 MiB physical VMEM.
            vmem_limit_bytes=32 * 1024 * 1024,
        ),
    )(x, *weights)
    return out[:n, :10]


# ----------------------------------------------------------------------------
# Parameters (torch-layout, synthetic) and a plain-XLA reference for checking
# ----------------------------------------------------------------------------
def init_params(key):
    """Synthetic params with Net.__init__'s shapes (uniform +/- 1/sqrt(fan_in))."""
    ks = jax.random.split(key, 10)

    def unif(k, shape, fan_in):
        bound = 1.0 / np.sqrt(float(fan_in))
        return jax.random.uniform(k, shape, jnp.float32, -bound, bound)

    return {
        "conv1_w": unif(ks[0], (6, 1, 5, 5), 1 * 5 * 5),
        "conv1_b": unif(ks[1], (6,), 1 * 5 * 5),
        "conv2_w": unif(ks[2], (16, 6, 5, 5), 6 * 5 * 5),
        "conv2_b": unif(ks[3], (16,), 6 * 5 * 5),
        "fc1_w": unif(ks[4], (120, 64), 64),   # torch Linear weight: (out, in)
        "fc1_b": unif(ks[5], (120,), 64),
        "fc2_w": unif(ks[6], (84, 120), 120),
        "fc2_b": unif(ks[7], (84,), 120),
        "fc3_w": unif(ks[8], (10, 84), 84),
        "fc3_b": unif(ks[9], (10,), 84),
    }


def reference_forward(x_nchw, params):
    """Plain-JAX/XLA f32 reference implementing Net.forward verbatim."""
    hi = jax.lax.Precision.HIGHEST
    y = jax.lax.conv_general_dilated(
        x_nchw.astype(jnp.float32), params["conv1_w"], (1, 1), "VALID",
        dimension_numbers=("NCHW", "OIHW", "NCHW"), precision=hi)
    y = jnp.maximum(y + params["conv1_b"][None, :, None, None], 0.0)
    y = jax.lax.reduce_window(y, -jnp.inf, jax.lax.max, (1, 1, 2, 2), (1, 1, 2, 2), "VALID")
    y = jax.lax.conv_general_dilated(
        y, params["conv2_w"], (1, 1), "VALID",
        dimension_numbers=("NCHW", "OIHW", "NCHW"), precision=hi)
    y = jnp.maximum(y + params["conv2_b"][None, :, None, None], 0.0)
    y = jax.lax.reduce_window(y, -jnp.inf, jax.lax.max, (1, 1, 2, 2), (1, 1, 2, 2), "VALID")
    y = y.reshape(y.shape[0], 16 * 2 * 2)      # torch x.view(-1, 16*2*2): (C,H,W) order
    y = jnp.maximum(jnp.dot(y, params["fc1_w"].T, precision=hi) + params["fc1_b"], 0.0)
    y = jnp.maximum(jnp.dot(y, params["fc2_w"].T, precision=hi) + params["fc2_b"], 0.0)
    return jnp.dot(y, params["fc3_w"].T, precision=hi) + params["fc3_b"]


# TODO(synk): training utilities (CrossEntropyLoss, SGD step, train(), accuracy_test())
# are not part of the forward pass and are not implemented here.


if __name__ == "__main__":
    key = jax.random.PRNGKey(0)
    k_params, k_x = jax.random.split(key)
    params = init_params(k_params)
    prepared = prepare_params(params)      # one-time host-side weight prep (hoisted)

    # Small deterministic input: batch 64 -> auto tile 32, two "parallel" grid steps.
    x = jax.random.normal(k_x, (64, 1, 20, 20), dtype=jnp.float32)

    logits = jax.block_until_ready(net_forward(x, prepared))

    assert logits.shape == (64, 10), logits.shape
    assert logits.dtype == jnp.float32

    # Cross-check against the plain-XLA f32 reference (tolerance for bf16 MXU operands).
    ref = jax.block_until_ready(jax.jit(reference_forward)(x, params))
    np.testing.assert_allclose(np.asarray(logits), np.asarray(ref), rtol=5e-2, atol=5e-2)

    print("KERNEL_OK")
</pallas_src>

<mosaic_0001>
module attributes {stable_mosaic.version = 11 : i64} {
  func.func @_fused_net_kernel(%arg0: i32, %arg1: memref<32x400xf32, #tpu.memory_space<vmem>>, %arg2: memref<400x1536xbf16, #tpu.memory_space<vmem>>, %arg3: memref<1x1536xf32, #tpu.memory_space<vmem>>, %arg4: memref<384x256xbf16, #tpu.memory_space<vmem>>, %arg5: memref<1x256xf32, #tpu.memory_space<vmem>>, %arg6: memref<64x120xbf16, #tpu.memory_space<vmem>>, %arg7: memref<1x120xf32, #tpu.memory_space<vmem>>, %arg8: memref<120x84xbf16, #tpu.memory_space<vmem>>, %arg9: memref<1x84xf32, #tpu.memory_space<vmem>>, %arg10: memref<84x128xbf16, #tpu.memory_space<vmem>>, %arg11: memref<1x128xf32, #tpu.memory_space<vmem>>, %arg12: memref<32x128xf32, #tpu.memory_space<vmem>>) attributes {dimension_semantics = [#tpu.dimension_semantics<parallel>], iteration_bounds = array<i64: 2>, scalar_prefetch = 0 : i64, scratch_operands = 0 : i64, tpu.core_type = #tpu.core_type<tc>, window_params = [{transform_indices = @transform_0, window_bounds = array<i64: 32, 400>}, {pipeline_mode = #tpu.pipeline_mode<synchronous>, transform_indices = @transform_1, window_bounds = array<i64: 400, 1536>}, {pipeline_mode = #tpu.pipeline_mode<synchronous>, transform_indices = @transform_2, window_bounds = array<i64: 1, 1536>}, {pipeline_mode = #tpu.pipeline_mode<synchronous>, transform_indices = @transform_3, window_bounds = array<i64: 384, 256>}, {pipeline_mode = #tpu.pipeline_mode<synchronous>, transform_indices = @transform_4, window_bounds = array<i64: 1, 256>}, {pipeline_mode = #tpu.pipeline_mode<synchronous>, transform_indices = @transform_5, window_bounds = array<i64: 64, 120>}, {pipeline_mode = #tpu.pipeline_mode<synchronous>, transform_indices = @transform_6, window_bounds = array<i64: 1, 120>}, {pipeline_mode = #tpu.pipeline_mode<synchronous>, transform_indices = @transform_7, window_bounds = array<i64: 120, 84>}, {pipeline_mode = #tpu.pipeline_mode<synchronous>, transform_indices = @transform_8, window_bounds = array<i64: 1, 84>}, {pipeline_mode = #tpu.pipeline_mode<synchronous>, transform_indices = @transform_9, window_bounds = array<i64: 84, 128>}, {pipeline_mode = #tpu.pipeline_mode<synchronous>, transform_indices = @transform_10, window_bounds = array<i64: 1, 128>}, {transform_indices = @transform_11, window_bounds = array<i64: 32, 128>}]} {
    %c0 = arith.constant 0 : index
    %c0_0 = arith.constant 0 : index
    %0 = vector.load %arg1[%c0, %c0_0] : memref<32x400xf32, #tpu.memory_space<vmem>>, vector<32x400xf32>
    %1 = arith.truncf %0 : vector<32x400xf32> to vector<32x400xbf16>
    %c0_1 = arith.constant 0 : index
    %c0_2 = arith.constant 0 : index
    %2 = vector.load %arg2[%c0_1, %c0_2] : memref<400x1536xbf16, #tpu.memory_space<vmem>>, vector<400x1536xbf16>
    %cst = arith.constant dense<0.000000e+00> : vector<32x1536xf32>
    %3 = tpu.matmul %1, %2, %cst {dimension_numbers = #tpu.dot_dimension_numbers<[1], [0], [0], [1], [0, 0, 1, 1], [], []>} : vector<32x400xbf16>, vector<400x1536xbf16>, vector<32x1536xf32> -> vector<32x1536xf32>
    %c0_3 = arith.constant 0 : index
    %c0_4 = arith.constant 0 : index
    %4 = vector.load %arg3[%c0_3, %c0_4] : memref<1x1536xf32, #tpu.memory_space<vmem>>, vector<1x1536xf32>
    %5 = vector.broadcast %4 : vector<1x1536xf32> to vector<32x1536xf32>
    %6 = arith.addf %3, %5 : vector<32x1536xf32>
    %cst_5 = arith.constant 0.000000e+00 : f32
    %7 = vector.broadcast %cst_5 : f32 to vector<32x1536xf32>
    %8 = arith.maximumf %6, %7 : vector<32x1536xf32>
    %9 = vector.extract_strided_slice %8 {offsets = [0, 0], sizes = [32, 384], strides = [1, 1]} : vector<32x1536xf32> to vector<32x384xf32>
    %10 = vector.extract_strided_slice %8 {offsets = [0, 384], sizes = [32, 384], strides = [1, 1]} : vector<32x1536xf32> to vector<32x384xf32>
    %11 = arith.maximumf %9, %10 : vector<32x384xf32>
    %12 = vector.extract_strided_slice %8 {offsets = [0, 768], sizes = [32, 384], strides = [1, 1]} : vector<32x1536xf32> to vector<32x384xf32>
    %13 = vector.extract_strided_slice %8 {offsets = [0, 1152], sizes = [32, 384], strides = [1, 1]} : vector<32x1536xf32> to vector<32x384xf32>
    %14 = arith.maximumf %12, %13 : vector<32x384xf32>
    %15 = arith.maximumf %11, %14 : vector<32x384xf32>
    %16 = arith.truncf %15 : vector<32x384xf32> to vector<32x384xbf16>
    %c0_6 = arith.constant 0 : index
    %c0_7 = arith.constant 0 : index
    %17 = vector.load %arg4[%c0_6, %c0_7] : memref<384x256xbf16, #tpu.memory_space<vmem>>, vector<384x256xbf16>
    %cst_8 = arith.constant dense<0.000000e+00> : vector<32x256xf32>
    %18 = tpu.matmul %16, %17, %cst_8 {dimension_numbers = #tpu.dot_dimension_numbers<[1], [0], [0], [1], [0, 0, 1, 1], [], []>} : vector<32x384xbf16>, vector<384x256xbf16>, vector<32x256xf32> -> vector<32x256xf32>
    %c0_9 = arith.constant 0 : index
    %c0_10 = arith.constant 0 : index
    %19 = vector.load %arg5[%c0_9, %c0_10] : memref<1x256xf32, #tpu.memory_space<vmem>>, vector<1x256xf32>
    %20 = vector.broadcast %19 : vector<1x256xf32> to vector<32x256xf32>
    %21 = arith.addf %18, %20 : vector<32x256xf32>
    %cst_11 = arith.constant 0.000000e+00 : f32
    %22 = vector.broadcast %cst_11 : f32 to vector<32x256xf32>
    %23 = arith.maximumf %21, %22 : vector<32x256xf32>
    %24 = vector.extract_strided_slice %23 {offsets = [0, 0], sizes = [32, 64], strides = [1, 1]} : vector<32x256xf32> to vector<32x64xf32>
    %25 = vector.extract_strided_slice %23 {offsets = [0, 64], sizes = [32, 64], strides = [1, 1]} : vector<32x256xf32> to vector<32x64xf32>
    %26 = arith.maximumf %24, %25 : vector<32x64xf32>
    %27 = vector.extract_strided_slice %23 {offsets = [0, 128], sizes = [32, 64], strides = [1, 1]} : vector<32x256xf32> to vector<32x64xf32>
    %28 = vector.extract_strided_slice %23 {offsets = [0, 192], sizes = [32, 64], strides = [1, 1]} : vector<32x256xf32> to vector<32x64xf32>
    %29 = arith.maximumf %27, %28 : vector<32x64xf32>
    %30 = arith.maximumf %26, %29 : vector<32x64xf32>
    %31 = arith.truncf %30 : vector<32x64xf32> to vector<32x64xbf16>
    %c0_12 = arith.constant 0 : index
    %c0_13 = arith.constant 0 : index
    %32 = vector.load %arg6[%c0_12, %c0_13] : memref<64x120xbf16, #tpu.memory_space<vmem>>, vector<64x120xbf16>
    %cst_14 = arith.constant dense<0.000000e+00> : vector<32x120xf32>
    %33 = tpu.matmul %31, %32, %cst_14 {dimension_numbers = #tpu.dot_dimension_numbers<[1], [0], [0], [1], [0, 0, 1, 1], [], []>} : vector<32x64xbf16>, vector<64x120xbf16>, vector<32x120xf32> -> vector<32x120xf32>
    %c0_15 = arith.constant 0 : index
    %c0_16 = arith.constant 0 : index
    %34 = vector.load %arg7[%c0_15, %c0_16] : memref<1x120xf32, #tpu.memory_space<vmem>>, vector<1x120xf32>
    %35 = vector.broadcast %34 : vector<1x120xf32> to vector<32x120xf32>
    %36 = arith.addf %33, %35 : vector<32x120xf32>
    %cst_17 = arith.constant 0.000000e+00 : f32
    %37 = vector.broadcast %cst_17 : f32 to vector<32x120xf32>
    %38 = arith.maximumf %36, %37 : vector<32x120xf32>
    %39 = arith.truncf %38 : vector<32x120xf32> to vector<32x120xbf16>
    %c0_18 = arith.constant 0 : index
    %c0_19 = arith.constant 0 : index
    %40 = vector.load %arg8[%c0_18, %c0_19] : memref<120x84xbf16, #tpu.memory_space<vmem>>, vector<120x84xbf16>
    %cst_20 = arith.constant dense<0.000000e+00> : vector<32x84xf32>
    %41 = tpu.matmul %39, %40, %cst_20 {dimension_numbers = #tpu.dot_dimension_numbers<[1], [0], [0], [1], [0, 0, 1, 1], [], []>} : vector<32x120xbf16>, vector<120x84xbf16>, vector<32x84xf32> -> vector<32x84xf32>
    %c0_21 = arith.constant 0 : index
    %c0_22 = arith.constant 0 : index
    %42 = vector.load %arg9[%c0_21, %c0_22] : memref<1x84xf32, #tpu.memory_space<vmem>>, vector<1x84xf32>
    %43 = vector.broadcast %42 : vector<1x84xf32> to vector<32x84xf32>
    %44 = arith.addf %41, %43 : vector<32x84xf32>
    %cst_23 = arith.constant 0.000000e+00 : f32
    %45 = vector.broadcast %cst_23 : f32 to vector<32x84xf32>
    %46 = arith.maximumf %44, %45 : vector<32x84xf32>
    %47 = arith.truncf %46 : vector<32x84xf32> to vector<32x84xbf16>
    %c0_24 = arith.constant 0 : index
    %c0_25 = arith.constant 0 : index
    %48 = vector.load %arg10[%c0_24, %c0_25] : memref<84x128xbf16, #tpu.memory_space<vmem>>, vector<84x128xbf16>
    %cst_26 = arith.constant dense<0.000000e+00> : vector<32x128xf32>
    %49 = tpu.matmul %47, %48, %cst_26 {dimension_numbers = #tpu.dot_dimension_numbers<[1], [0], [0], [1], [0, 0, 1, 1], [], []>} : vector<32x84xbf16>, vector<84x128xbf16>, vector<32x128xf32> -> vector<32x128xf32>
    %c0_27 = arith.constant 0 : index
    %c0_28 = arith.constant 0 : index
    %50 = vector.load %arg11[%c0_27, %c0_28] : memref<1x128xf32, #tpu.memory_space<vmem>>, vector<1x128xf32>
    %51 = vector.broadcast %50 : vector<1x128xf32> to vector<32x128xf32>
    %52 = arith.addf %49, %51 : vector<32x128xf32>
    %c0_29 = arith.constant 0 : index
    %c0_30 = arith.constant 0 : index
    %53 = vector.load %arg12[%c0_29, %c0_30] : memref<32x128xf32, #tpu.memory_space<vmem>>, vector<32x128xf32>
    tpu.vector_store %arg12[%c0_29, %c0_30], %52 {strides = array<i32>} : memref<32x128xf32, #tpu.memory_space<vmem>>, vector<32x128xf32>,
    return
  }
  func.func @transform_0(%arg0: i32) -> (i32, i32) {
    %c0_i32 = arith.constant 0 : i32
    %c0_i32_0 = arith.constant 0 : i32
    return %arg0, %c0_i32 : i32, i32
  }
  func.func @transform_1(%arg0: i32) -> (i32, i32) {
    %c0_i32 = arith.constant 0 : i32
    %c0_i32_0 = arith.constant 0 : i32
    %c0_i32_1 = arith.constant 0 : i32
    return %c0_i32, %c0_i32_0 : i32, i32
  }
  func.func @transform_2(%arg0: i32) -> (i32, i32) {
    %c0_i32 = arith.constant 0 : i32
    %c0_i32_0 = arith.constant 0 : i32
    %c0_i32_1 = arith.constant 0 : i32
    return %c0_i32, %c0_i32_0 : i32, i32
  }
  func.func @transform_3(%arg0: i32) -> (i32, i32) {
    %c0_i32 = arith.constant 0 : i32
    %c0_i32_0 = arith.constant 0 : i32
    %c0_i32_1 = arith.constant 0 : i32
    return %c0_i32, %c0_i32_0 : i32, i32
  }
  func.func @transform_4(%arg0: i32) -> (i32, i32) {
    %c0_i32 = arith.constant 0 : i32
    %c0_i32_0 = arith.constant 0 : i32
    %c0_i32_1 = arith.constant 0 : i32
    return %c0_i32, %c0_i32_0 : i32, i32
  }
  func.func @transform_5(%arg0: i32) -> (i32, i32) {
    %c0_i32 = arith.constant 0 : i32
    %c0_i32_0 = arith.constant 0 : i32
    %c0_i32_1 = arith.constant 0 : i32
    return %c0_i32, %c0_i32_0 : i32, i32
  }
  func.func @transform_6(%arg0: i32) -> (i32, i32) {
    %c0_i32 = arith.constant 0 : i32
    %c0_i32_0 = arith.constant 0 : i32
    %c0_i32_1 = arith.constant 0 : i32
    return %c0_i32, %c0_i32_0 : i32, i32
  }
  func.func @transform_7(%arg0: i32) -> (i32, i32) {
    %c0_i32 = arith.constant 0 : i32
    %c0_i32_0 = arith.constant 0 : i32
    %c0_i32_1 = arith.constant 0 : i32
    return %c0_i32, %c0_i32_0 : i32, i32
  }
  func.func @transform_8(%arg0: i32) -> (i32, i32) {
    %c0_i32 = arith.constant 0 : i32
    %c0_i32_0 = arith.constant 0 : i32
    %c0_i32_1 = arith.constant 0 : i32
    return %c0_i32, %c0_i32_0 : i32, i32
  }
  func.func @transform_9(%arg0: i32) -> (i32, i32) {
    %c0_i32 = arith.constant 0 : i32
    %c0_i32_0 = arith.constant 0 : i32
    %c0_i32_1 = arith.constant 0 : i32
    return %c0_i32, %c0_i32_0 : i32, i32
  }
  func.func @transform_10(%arg0: i32) -> (i32, i32) {
    %c0_i32 = arith.constant 0 : i32
    %c0_i32_0 = arith.constant 0 : i32
    %c0_i32_1 = arith.constant 0 : i32
    return %c0_i32, %c0_i32_0 : i32, i32
  }
  func.func @transform_11(%arg0: i32) -> (i32, i32) {
    %c0_i32 = arith.constant 0 : i32
    %c0_i32_0 = arith.constant 0 : i32
    return %arg0, %c0_i32 : i32, i32
  }
}

</mosaic_0001>

<llo_original>
// kernel: _net_forward_jit.1
$region0: #{_net_forward_jit.1}
  #allocation0 [shape = 'u32[]', space=smem, size = 0x4, offset = 0x4, fixed_abs, tag = 'smem constant byte address 0x4 - core index']
  #allocation1 [shape = 'u32[72,128]{1,0:T(1,128)}', space=vmem, size = 0x9000, scoped, tag = 'internal scratch']
  %s0 = inlined_call_operand.vmem [shape: f32[64,400], index: 0, kind: input, shape index: {}]
  %s1 = inlined_call_operand.hbm [shape: bf16[400,1536], index: 1, kind: input, shape index: {}]
  %s2 = inlined_call_operand.hbm [shape: f32[1,1536], index: 2, kind: input, shape index: {}]
  %s3 = inlined_call_operand.hbm [shape: bf16[384,256], index: 3, kind: input, shape index: {}]
  %s4 = inlined_call_operand.hbm [shape: f32[1,256], index: 4, kind: input, shape index: {}]
  %s5 = inlined_call_operand.hbm [shape: bf16[64,120], index: 5, kind: input, shape index: {}]
  %s6 = inlined_call_operand.hbm [shape: f32[1,120], index: 6, kind: input, shape index: {}]
  %s7 = inlined_call_operand.vmem [shape: bf16[120,84], index: 7, kind: input, shape index: {}]
  %s8 = inlined_call_operand.hbm [shape: f32[1,84], index: 8, kind: input, shape index: {}]
  %s9 = inlined_call_operand.hbm [shape: bf16[84,128], index: 9, kind: input, shape index: {}]
  %s10 = inlined_call_operand.hbm [shape: f32[1,128], index: 10, kind: input, shape index: {}]
  %s11 = inlined_call_operand.vmem [shape: f32[64,128], index: 11, kind: output, shape index: {}]
  %s12 = sld [smem:[#allocation0]]
  $region113: #{_net_forward_jit.1} parent=0
    _
  %s14 = ssub.s32 1, %s12
  %s15 = scalar_select 0, %s14, %s12
  $region1: #{_net_forward_jit.1} parent=0
    #allocation2 [shape = 'u8[1228800]{0}', space=vmem, size = 0x12c000, scoped, tag = 'input window, operand 1, single buffered']
    #allocation3 [shape = 's32[2]{0}', space=sflag, size = 0x8, scoped, tag = 'scoped memory for _net_forward_jit.1']
    #allocation4 [shape = 'u8[6144]{0}', space=vmem, size = 0x1800, scoped, tag = 'input window, operand 2, single buffered']
    #allocation5 [shape = 's32[1]{0}', space=sflag, size = 0x4, scoped, tag = 'scoped memory for _net_forward_jit.1']
    #allocation6 [shape = 'u8[196608]{0}', space=vmem, size = 0x30000, scoped, tag = 'input window, operand 3, single buffered']
    #allocation7 [shape = 'u8[1024]{0}', space=vmem, size = 0x400, scoped, tag = 'input window, operand 4, single buffered']
    #allocation8 [shape = 's32[1]{0}', space=sflag, size = 0x4, scoped, tag = 'scoped memory for _net_forward_jit.1']
    #allocation9 [shape = 'u8[16384]{0}', space=vmem, size = 0x4000, scoped, tag = 'input window, operand 5, single buffered']
    #allocation10 [shape = 'u8[512]{0}', space=vmem, size = 0x400, scoped, tag = 'input window, operand 6, single buffered']
    #allocation11 [shape = 's32[1]{0}', space=sflag, size = 0x4, scoped, tag = 'scoped memory for _net_forward_jit.1']
    #allocation12 [shape = 'u8[512]{0}', space=vmem, size = 0x400, scoped, tag = 'input window, operand 8, single buffered']
    #allocation13 [shape = 'u8[22528]{0}', space=vmem, size = 0x5800, scoped, tag = 'input window, operand 9, single buffered']
    #allocation14 [shape = 's32[1]{0}', space=sflag, size = 0x4, scoped, tag = 'scoped memory for _net_forward_jit.1']
    #allocation15 [shape = 'u8[512]{0}', space=vmem, size = 0x400, scoped, tag = 'input window, operand 10, single buffered']
    %16 = vsyncpa [#allocation3], 0
    %17 = vsyncpa [#allocation5], 0
    %18 = vsyncpa [#allocation8], 0
    %19 = vsyncpa [#allocation11], 0
    %20 = vsyncpa [#allocation14], 0
    loop: start=0, step=1, limit=4
    $region2: #{_net_forward_jit.1} parent=1 // loop_pre_header
      _
    $region3: #{_net_forward_jit.1} parent=1 // loop_header
      %s22 = sphi 0, %s26
      %p23 = scmp.ge.s32.totalorder %s22, 4
      %s32 = sphi 0, %s34
      %s35 = sphi 0, %s32
      %s36 = sphi 0, %s35
      %s52 = sphi 0, %s36
      %s56 = sphi 0, %s56
      %s58 = sphi 0, %s56
      %s59 = sphi 0, %s58
      %s73 = sphi 0, %s59
      %s77 = sphi 0, %s77
      %s79 = sphi 0, %s77
      %s80 = sphi 0, %s79
      %s94 = sphi 0, %s80
      %s98 = sphi 0, %s98
      %s100 = sphi 0, %s98
      %s101 = sphi 0, %s100
      %s115 = sphi 0, %s101
      %s119 = sphi 0, %s119
      %s121 = sphi 0, %s119
      %s122 = sphi 0, %s121
      %s136 = sphi 0, %s122
      %s140 = sphi 0, %s140
      %s142 = sphi 0, %s140
      %s143 = sphi 0, %s142
      %s157 = sphi 0, %s143
      %s161 = sphi 0, %s161
      %s163 = sphi 0, %s161
      %s164 = sphi 0, %s163
      %s178 = sphi 0, %s164
      %s182 = sphi 0, %s182
      %s184 = sphi 0, %s182
      %s185 = sphi 0, %s184
      %s199 = sphi 0, %s185
      %s203 = sphi 0, %s203
      %s205 = sphi 0, %s203
      %s206 = sphi 0, %s205
      %s220 = sphi 0, %s206
      %s224 = sphi 0, %s224
      %s226 = sphi 0, %s224
      %s227 = sphi 0, %s226
      %s241 = sphi 0, %s227
      %s245 = sphi 0, %s245
      %s247 = sphi 0, %s245
      %s248 = sphi 0, %s247
      %s262 = sphi 0, %s248
      %s268 = sphi 0, %s270
      %s271 = sphi 0, %s268
      %s272 = sphi 0, %s271
      %s288 = sphi 0, %s272
    $region4: #{_net_forward_jit.1} parent=1 // loop_header_branch
      %25 = sbr.rel (%p23) target = $region8
    $region5: #{_net_forward_jit.1} parent=1 // loop_body
      %s27 = ssub.s32 %s22, 1
      %s28 = ssub.s32 %s22, 2
      %s29 = sadd.s32 %s22, 1
      %s30 = ssub.s32 %s22, %s29
      %p31 = scmp.eq.s32.totalorder %s30, 0
      %s33 = sadd.s32 %s32, 1
      %s34 = scalar_select %p31, %s32, %s33
      %p37 = pneg %p31
      %p38 = scmp.eq.s32.totalorder %s22, 1
      %p39 = por %p37, %p38
      %p40 = scmp.ne.s32.totalorder %s32, %s35
      %p41 = scmp.eq.s32.totalorder %s22, 0
      %p42 = por %p40, %p41
      %p43 = scmp.ne.s32.totalorder %s32, %s35
      %p44 = scmp.eq.s32.totalorder %s27, 1
      %p45 = por %p43, %p44
      %p46 = scmp.ne.s32.totalorder %s35, %s36
      %p47 = scmp.eq.s32.totalorder %s27, 0
      %p48 = por %p46, %p47
      %p49 = scmp.ne.s32.totalorder %s35, %s36
      %p50 = scmp.eq.s32.totalorder %s28, 1
      %p51 = por %p49, %p50
      %p53 = scmp.ne.s32.totalorder %s36, %s52
      %p54 = scmp.eq.s32.totalorder %s28, 0
      %p55 = por %p53, %p54
      %s57 = sadd.s32 %s56, 1
      %p60 = scmp.eq.s32.totalorder %s22, 1
      %p61 = scmp.ne.s32.totalorder %s56, %s58
      %p62 = scmp.eq.s32.totalorder %s22, 0
      %p63 = por %p61, %p62
      %p64 = scmp.ne.s32.totalorder %s56, %s58
      %p65 = scmp.eq.s32.totalorder %s27, 1
      %p66 = por %p64, %p65
      %p67 = scmp.ne.s32.totalorder %s58, %s59
      %p68 = scmp.eq.s32.totalorder %s27, 0
      %p69 = por %p67, %p68
      %p70 = scmp.ne.s32.totalorder %s58, %s59
      %p71 = scmp.eq.s32.totalorder %s28, 1
      %p72 = por %p70, %p71
      %p74 = scmp.ne.s32.totalorder %s59, %s73
      %p75 = scmp.eq.s32.totalorder %s28, 0
      %p76 = por %p74, %p75
      %s78 = sadd.s32 %s77, 1
      %p81 = scmp.eq.s32.totalorder %s22, 1
      %p82 = scmp.ne.s32.totalorder %s77, %s79
      %p83 = scmp.eq.s32.totalorder %s22, 0
      %p84 = por %p82, %p83
      %p85 = scmp.ne.s32.totalorder %s77, %s79
      %p86 = scmp.eq.s32.totalorder %s27, 1
      %p87 = por %p85, %p86
      %p88 = scmp.ne.s32.totalorder %s79, %s80
      %p89 = scmp.eq.s32.totalorder %s27, 0
      %p90 = por %p88, %p89
      %p91 = scmp.ne.s32.totalorder %s79, %s80
      %p92 = scmp.eq.s32.totalorder %s28, 1
      %p93 = por %p91, %p92
      %p95 = scmp.ne.s32.totalorder %s80, %s94
      %p96 = scmp.eq.s32.totalorder %s28, 0
      %p97 = por %p95, %p96
      %s99 = sadd.s32 %s98, 1
      %p102 = scmp.eq.s32.totalorder %s22, 1
      %p103 = scmp.ne.s32.totalorder %s98, %s100
      %p104 = scmp.eq.s32.totalorder %s22, 0
      %p105 = por %p103, %p104
      %p106 = scmp.ne.s32.totalorder %s98, %s100
      %p107 = scmp.eq.s32.totalorder %s27, 1
      %p108 = por %p106, %p107
      %p109 = scmp.ne.s32.totalorder %s100, %s101
      %p110 = scmp.eq.s32.totalorder %s27, 0
      %p111 = por %p109, %p110
      %p112 = scmp.ne.s32.totalorder %s100, %s101
      %p113 = scmp.eq.s32.totalorder %s28, 1
      %p114 = por %p112, %p113
      %p116 = scmp.ne.s32.totalorder %s101, %s115
      %p117 = scmp.eq.s32.totalorder %s28, 0
      %p118 = por %p116, %p117
      %s120 = sadd.s32 %s119, 1
      %p123 = scmp.eq.s32.totalorder %s22, 1
      %p124 = scmp.ne.s32.totalorder %s119, %s121
      %p125 = scmp.eq.s32.totalorder %s22, 0
      %p126 = por %p124, %p125
      %p127 = scmp.ne.s32.totalorder %s119, %s121
      %p128 = scmp.eq.s32.totalorder %s27, 1
      %p129 = por %p127, %p128
      %p130 = scmp.ne.s32.totalorder %s121, %s122
      %p131 = scmp.eq.s32.totalorder %s27, 0
      %p132 = por %p130, %p131
      %p133 = scmp.ne.s32.totalorder %s121, %s122
      %p134 = scmp.eq.s32.totalorder %s28, 1
      %p135 = por %p133, %p134
      %p137 = scmp.ne.s32.totalorder %s122, %s136
      %p138 = scmp.eq.s32.totalorder %s28, 0
      %p139 = por %p137, %p138
      %s141 = sadd.s32 %s140, 1
      %p144 = scmp.eq.s32.totalorder %s22, 1
      %p145 = scmp.ne.s32.totalorder %s140, %s142
      %p146 = scmp.eq.s32.totalorder %s22, 0
      %p147 = por %p145, %p146
      %p148 = scmp.ne.s32.totalorder %s140, %s142
      %p149 = scmp.eq.s32.totalorder %s27, 1
      %p150 = por %p148, %p149
      %p151 = scmp.ne.s32.totalorder %s142, %s143
      %p152 = scmp.eq.s32.totalorder %s27, 0
      %p153 = por %p151, %p152
      %p154 = scmp.ne.s32.totalorder %s142, %s143
      %p155 = scmp.eq.s32.totalorder %s28, 1
      %p156 = por %p154, %p155
      %p158 = scmp.ne.s32.totalorder %s143, %s157
      %p159 = scmp.eq.s32.totalorder %s28, 0
      %p160 = por %p158, %p159
      %s162 = sadd.s32 %s161, 1
      %p165 = scmp.eq.s32.totalorder %s22, 1
      %p166 = scmp.ne.s32.totalorder %s161, %s163
      %p167 = scmp.eq.s32.totalorder %s22, 0
      %p168 = por %p166, %p167
      %p169 = scmp.ne.s32.totalorder %s161, %s163
      %p170 = scmp.eq.s32.totalorder %s27, 1
      %p171 = por %p169, %p170
      %p172 = scmp.ne.s32.totalorder %s163, %s164
      %p173 = scmp.eq.s32.totalorder %s27, 0
      %p174 = por %p172, %p173
      %p175 = scmp.ne.s32.totalorder %s163, %s164
      %p176 = scmp.eq.s32.totalorder %s28, 1
      %p177 = por %p175, %p176
      %p179 = scmp.ne.s32.totalorder %s164, %s178
      %p180 = scmp.eq.s32.totalorder %s28, 0
      %p181 = por %p179, %p180
      %s183 = sadd.s32 %s182, 1
      %p186 = scmp.eq.s32.totalorder %s22, 1
      %p187 = scmp.ne.s32.totalorder %s182, %s184
      %p188 = scmp.eq.s32.totalorder %s22, 0
      %p189 = por %p187, %p188
      %p190 = scmp.ne.s32.totalorder %s182, %s184
      %p191 = scmp.eq.s32.totalorder %s27, 1
      %p192 = por %p190, %p191
      %p193 = scmp.ne.s32.totalorder %s184, %s185
      %p194 = scmp.eq.s32.totalorder %s27, 0
      %p195 = por %p193, %p194
      %p196 = scmp.ne.s32.totalorder %s184, %s185
      %p197 = scmp.eq.s32.totalorder %s28, 1
      %p198 = por %p196, %p197
      %p200 = scmp.ne.s32.totalorder %s185, %s199
      %p201 = scmp.eq.s32.totalorder %s28, 0
      %p202 = por %p200, %p201
      %s204 = sadd.s32 %s203, 1
      %p207 = scmp.eq.s32.totalorder %s22, 1
      %p208 = scmp.ne.s32.totalorder %s203, %s205
      %p209 = scmp.eq.s32.totalorder %s22, 0
      %p210 = por %p208, %p209
      %p211 = scmp.ne.s32.totalorder %s203, %s205
      %p212 = scmp.eq.s32.totalorder %s27, 1
      %p213 = por %p211, %p212
      %p214 = scmp.ne.s32.totalorder %s205, %s206
      %p215 = scmp.eq.s32.totalorder %s27, 0
      %p216 = por %p214, %p215
      %p217 = scmp.ne.s32.totalorder %s205, %s206
      %p218 = scmp.eq.s32.totalorder %s28, 1
      %p219 = por %p217, %p218
      %p221 = scmp.ne.s32.totalorder %s206, %s220
      %p222 = scmp.eq.s32.totalorder %s28, 0
      %p223 = por %p221, %p222
      %s225 = sadd.s32 %s224, 1
      %p228 = scmp.eq.s32.totalorder %s22, 1
      %p229 = scmp.ne.s32.totalorder %s224, %s226
      %p230 = scmp.eq.s32.totalorder %s22, 0
      %p231 = por %p229, %p230
      %p232 = scmp.ne.s32.totalorder %s224, %s226
      %p233 = scmp.eq.s32.totalorder %s27, 1
      %p234 = por %p232, %p233
      %p235 = scmp.ne.s32.totalorder %s226, %s227
      %p236 = scmp.eq.s32.totalorder %s27, 0
      %p237 = por %p235, %p236
      %p238 = scmp.ne.s32.totalorder %s226, %s227
      %p239 = scmp.eq.s32.totalorder %s28, 1
      %p240 = por %p238, %p239
      %p242 = scmp.ne.s32.totalorder %s227, %s241
      %p243 = scmp.eq.s32.totalorder %s28, 0
      %p244 = por %p242, %p243
      %s246 = sadd.s32 %s245, 1
      %p249 = scmp.eq.s32.totalorder %s22, 1
      %p250 = scmp.ne.s32.totalorder %s245, %s247
      %p251 = scmp.eq.s32.totalorder %s22, 0
      %p252 = por %p250, %p251
      %p253 = scmp.ne.s32.totalorder %s245, %s247
      %p254 = scmp.eq.s32.totalorder %s27, 1
      %p255 = por %p253, %p254
      %p256 = scmp.ne.s32.totalorder %s247, %s248
      %p257 = scmp.eq.s32.totalorder %s27, 0
      %p258 = por %p256, %p257
      %p259 = scmp.ne.s32.totalorder %s247, %s248
      %p260 = scmp.eq.s32.totalorder %s28, 1
      %p261 = por %p259, %p260
      %p263 = scmp.ne.s32.totalorder %s248, %s262
      %p264 = scmp.eq.s32.totalorder %s28, 0
      %p265 = por %p263, %p264
      %s266 = ssub.s32 %s22, %s29
      %p267 = scmp.eq.s32.totalorder %s266, 0
      %s269 = sadd.s32 %s268, 1
      %s270 = scalar_select %p267, %s268, %s269
      %p273 = pneg %p267
      %p274 = scmp.eq.s32.totalorder %s22, 1
      %p275 = por %p273, %p274
      %p276 = scmp.ne.s32.totalorder %s268, %s271
      %p277 = scmp.eq.s32.totalorder %s22, 0
      %p278 = por %p276, %p277
      %p279 = scmp.ne.s32.totalorder %s268, %s271
      %p280 = scmp.eq.s32.totalorder %s27, 1
      %p281 = por %p279, %p280
      %p282 = scmp.ne.s32.totalorder %s271, %s272
      %p283 = scmp.eq.s32.totalorder %s27, 0
      %p284 = por %p282, %p283
      %p285 = scmp.ne.s32.totalorder %s271, %s272
      %p286 = scmp.eq.s32.totalorder %s28, 1
      %p287 = por %p285, %p286
      %p289 = scmp.ne.s32.totalorder %s272, %s288
      %p290 = scmp.eq.s32.totalorder %s28, 0
      %p291 = por %p289, %p290
      %p292 = scmp.le.s32.totalorder 1, %s22
      %p293 = scmp.lt.s32.totalorder %s22, 3
      %p294 = pnand %p292, %p293
      %p295 = pneg %p294
      // Predicated region
      $region9: #{_net_forward_jit.1} parent=5 // pred_check
        _
      $region10: #{_net_forward_jit.1} parent=5 // pred_check_branch
        %297 = sbr.rel (%p294) target = $region12
      $region11: #{_net_forward_jit.1} parent=5 // pred_region
        %s298 = ssub.s32 %s22, 1
        // Predicated region
        $region13: #{_net_forward_jit.1} parent=11 // pred_check
          %p299 = pneg %p69
        $region14: #{_net_forward_jit.1} parent=11 // pred_check_branch
          %301 = sbr.rel (%p299) target = $region16
        $region15: #{_net_forward_jit.1} parent=11 // pred_region
          %303 = vsyncadd [#allocation3], 0
          %s304 = sshll.u32 %s1, 4
          %s305 = int_to_ptr.hbm [resolvable:$true] %s304
          %s306 = sshll.u32 [#allocation2], 4
          %s307 = int_to_ptr.vmem [resolvable:$true] %s306
          %312 = dma.hbm_to_vmem [thread:$0]  %s305, 38400, %s307, [#allocation3], 768, 768, 48
        $region16: #{_net_forward_jit.1} parent=11 // pred_fallthru
          _
        // Predicated region
        $region17: #{_net_forward_jit.1} parent=11 // pred_check
          %p313 = pneg %p90
        $region18: #{_net_forward_jit.1} parent=11 // pred_check_branch
          %315 = sbr.rel (%p313) target = $region20
        $region19: #{_net_forward_jit.1} parent=11 // pred_region
          %317 = vsyncadd [#allocation5], 0
          %s319 = sshll.u32 %s2, 4
          %s320 = int_to_ptr.hbm [resolvable:$true] %s319
          %s321 = sshll.u32 [#allocation4], 4
          %s322 = int_to_ptr.vmem [resolvable:$true] %s321
          %324 = dma.hbm_to_vmem [thread:$0]  %s320, 192, %s322, [#allocation5]
        $region20: #{_net_forward_jit.1} parent=11 // pred_fallthru
          _
        // Predicated region
        $region21: #{_net_forward_jit.1} parent=11 // pred_check
          %p325 = pneg %p111
        $region22: #{_net_forward_jit.1} parent=11 // pred_check_branch
          %327 = sbr.rel (%p325) target = $region24
        $region23: #{_net_forward_jit.1} parent=11 // pred_region
          %329 = vsyncadd [#allocation5], 0
          %s330 = sshll.u32 %s3, 4
          %s331 = int_to_ptr.hbm [resolvable:$true] %s330
          %s332 = sshll.u32 [#allocation6], 4
          %s333 = int_to_ptr.vmem [resolvable:$true] %s332
          %338 = dma.hbm_to_vmem [thread:$0]  %s331, 6144, %s333, [#allocation5], 128, 128, 8
        $region24: #{_net_forward_jit.1} parent=11 // pred_fallthru
          _
        // Predicated region
        $region25: #{_net_forward_jit.1} parent=11 // pred_check
          %p339 = pneg %p132
        $region26: #{_net_forward_jit.1} parent=11 // pred_check_branch
          %341 = sbr.rel (%p339) target = $region28
        $region27: #{_net_forward_jit.1} parent=11 // pred_region
          %343 = vsyncadd [#allocation8], 0
          %s345 = sshll.u32 %s4, 4
          %s346 = int_to_ptr.hbm [resolvable:$true] %s345
          %s347 = sshll.u32 [#allocation7], 4
          %s348 = int_to_ptr.vmem [resolvable:$true] %s347
          %350 = dma.hbm_to_vmem [thread:$0]  %s346, 32, %s348, [#allocation8]
        $region28: #{_net_forward_jit.1} parent=11 // pred_fallthru
          _
        // Predicated region
        $region29: #{_net_forward_jit.1} parent=11 // pred_check
          %p351 = pneg %p153
        $region30: #{_net_forward_jit.1} parent=11 // pred_check_branch
          %353 = sbr.rel (%p351) target = $region32
        $region31: #{_net_forward_jit.1} parent=11 // pred_region
          %355 = vsyncadd [#allocation8], 0
          %s356 = sshll.u32 %s5, 4
          %s357 = int_to_ptr.hbm [resolvable:$true] %s356
          %s358 = sshll.u32 [#allocation9], 4
          %s359 = int_to_ptr.vmem [resolvable:$true] %s358
          %364 = dma.hbm_to_vmem [thread:$0]  %s357, 512, %s359, [#allocation8], 64, 64, 4
        $region32: #{_net_forward_jit.1} parent=11 // pred_fallthru
          _
        // Predicated region
        $region33: #{_net_forward_jit.1} parent=11 // pred_check
          %p365 = pneg %p174
        $region34: #{_net_forward_jit.1} parent=11 // pred_check_branch
          %367 = sbr.rel (%p365) target = $region36
        $region35: #{_net_forward_jit.1} parent=11 // pred_region
          %369 = vsyncadd [#allocation11], 0
          %s371 = sshll.u32 %s6, 4
          %s372 = int_to_ptr.hbm [resolvable:$true] %s371
          %s373 = sshll.u32 [#allocation10], 4
          %s374 = int_to_ptr.vmem [resolvable:$true] %s373
          %376 = dma.hbm_to_vmem [thread:$0]  %s372, 16, %s374, [#allocation11]
        $region36: #{_net_forward_jit.1} parent=11 // pred_fallthru
          _
        // Predicated region
        $region37: #{_net_forward_jit.1} parent=11 // pred_check
          %p377 = pneg %p195
        $region38: #{_net_forward_jit.1} parent=11 // pred_check_branch
          %379 = sbr.rel (%p377) target = $region40
        $region39: #{_net_forward_jit.1} parent=11 // pred_region
          _
        $region40: #{_net_forward_jit.1} parent=11 // pred_fallthru
          _
        // Predicated region
        $region41: #{_net_forward_jit.1} parent=11 // pred_check
          %p380 = pneg %p216
        $region42: #{_net_forward_jit.1} parent=11 // pred_check_branch
          %382 = sbr.rel (%p380) target = $region44
        $region43: #{_net_forward_jit.1} parent=11 // pred_region
          %384 = vsyncadd [#allocation11], 0
          %s386 = sshll.u32 %s8, 4
          %s387 = int_to_ptr.hbm [resolvable:$true] %s386
          %s388 = sshll.u32 [#allocation12], 4
          %s389 = int_to_ptr.vmem [resolvable:$true] %s388
          %391 = dma.hbm_to_vmem [thread:$0]  %s387, 16, %s389, [#allocation11]
        $region44: #{_net_forward_jit.1} parent=11 // pred_fallthru
          _
        // Predicated region
        $region45: #{_net_forward_jit.1} parent=11 // pred_check
          %p392 = pneg %p237
        $region46: #{_net_forward_jit.1} parent=11 // pred_check_branch
          %394 = sbr.rel (%p392) target = $region48
        $region47: #{_net_forward_jit.1} parent=11 // pred_region
          %396 = vsyncadd [#allocation14], 0
          %s397 = sshll.u32 %s9, 4
          %s398 = int_to_ptr.hbm [resolvable:$true] %s397
          %s399 = sshll.u32 [#allocation13], 4
          %s400 = int_to_ptr.vmem [resolvable:$true] %s399
          %405 = dma.hbm_to_vmem [thread:$0]  %s398, 704, %s400, [#allocation14], 64, 64, 4
        $region48: #{_net_forward_jit.1} parent=11 // pred_fallthru
          _
        // Predicated region
        $region49: #{_net_forward_jit.1} parent=11 // pred_check
          %p406 = pneg %p258
        $region50: #{_net_forward_jit.1} parent=11 // pred_check_branch
          %408 = sbr.rel (%p406) target = $region52
        $region51: #{_net_forward_jit.1} parent=11 // pred_region
          %410 = vsyncadd [#allocation14], 0
          %s412 = sshll.u32 %s10, 4
          %s413 = int_to_ptr.hbm [resolvable:$true] %s412
          %s414 = sshll.u32 [#allocation15], 4
          %s415 = int_to_ptr.vmem [resolvable:$true] %s414
          %417 = dma.hbm_to_vmem [thread:$0]  %s413, 16, %s415, [#allocation14]
        $region52: #{_net_forward_jit.1} parent=11 // pred_fallthru
          _
      $region12: #{_net_forward_jit.1} parent=5 // pred_fallthru
        _
      %p418 = scmp.lt.s32.totalorder %s22, 2
      // Predicated region
      $region53: #{_net_forward_jit.1} parent=5 // pred_check
        %p419 = pneg %p418
      $region54: #{_net_forward_jit.1} parent=5 // pred_check_branch
        %421 = sbr.rel (%p419) target = $region56
      $region55: #{_net_forward_jit.1} parent=5 // pred_region
        // Predicated region
        $region57: #{_net_forward_jit.1} parent=55 // pred_check
          %p422 = pneg %p42
        $region58: #{_net_forward_jit.1} parent=55 // pred_check_branch
          %424 = sbr.rel (%p422) target = $region60
        $region59: #{_net_forward_jit.1} parent=55 // pred_region
          %s425 = smul.u32 4, %s22
          %p426 = scmp.lt.s32.totalorder %s425, 7
          %s427 = scalar_select %p426, %s425, 7
          %s428 = smul.addr %s427, 4
          %s429 = smul.addr %s428, 8
          %s430 = scalar_lea.vmem %s0, %s429
          %s431 = smul.u32 4, %s22
        $region60: #{_net_forward_jit.1} parent=55 // pred_fallthru
          _
      $region56: #{_net_forward_jit.1} parent=5 // pred_fallthru
        _
      %p432 = scmp.le.s32.totalorder 1, %s22
      %p433 = scmp.lt.s32.totalorder %s22, 3
      %p434 = pnand %p432, %p433
      %p435 = pneg %p434
      // Predicated region
      $region61: #{_net_forward_jit.1} parent=5 // pred_check
        _
      $region62: #{_net_forward_jit.1} parent=5 // pred_check_branch
        %437 = sbr.rel (%p434) target = $region64
      $region63: #{_net_forward_jit.1} parent=5 // pred_region
        %s438 = ssub.s32 %s22, 1
        // Predicated region
        $region65: #{_net_forward_jit.1} parent=63 // pred_check
          %p439 = pneg %p69
        $region66: #{_net_forward_jit.1} parent=63 // pred_check_branch
          %441 = sbr.rel (%p439) target = $region68
        $region67: #{_net_forward_jit.1} parent=63 // pred_region
          %443 = dma.done [#allocation3], 38400
        $region68: #{_net_forward_jit.1} parent=63 // pred_fallthru
          _
        // Predicated region
        $region69: #{_net_forward_jit.1} parent=63 // pred_check
          %p444 = pneg %p90
        $region70: #{_net_forward_jit.1} parent=63 // pred_check_branch
          %446 = sbr.rel (%p444) target = $region72
        $region71: #{_net_forward_jit.1} parent=63 // pred_region
          %448 = dma.done [#allocation5], 192
        $region72: #{_net_forward_jit.1} parent=63 // pred_fallthru
          _
        // Predicated region
        $region73: #{_net_forward_jit.1} parent=63 // pred_check
          %p449 = pneg %p111
        $region74: #{_net_forward_jit.1} parent=63 // pred_check_branch
          %451 = sbr.rel (%p449) target = $region76
        $region75: #{_net_forward_jit.1} parent=63 // pred_region
          %453 = dma.done [#allocation5], 6144
        $region76: #{_net_forward_jit.1} parent=63 // pred_fallthru
          _
        // Predicated region
        $region77: #{_net_forward_jit.1} parent=63 // pred_check
          %p454 = pneg %p132
        $region78: #{_net_forward_jit.1} parent=63 // pred_check_branch
          %456 = sbr.rel (%p454) target = $region80
        $region79: #{_net_forward_jit.1} parent=63 // pred_region
          %458 = dma.done [#allocation8], 32
        $region80: #{_net_forward_jit.1} parent=63 // pred_fallthru
          _
        // Predicated region
        $region81: #{_net_forward_jit.1} parent=63 // pred_check
          %p459 = pneg %p153
        $region82: #{_net_forward_jit.1} parent=63 // pred_check_branch
          %461 = sbr.rel (%p459) target = $region84
        $region83: #{_net_forward_jit.1} parent=63 // pred_region
          %463 = dma.done [#allocation8], 512
        $region84: #{_net_forward_jit.1} parent=63 // pred_fallthru
          _
        // Predicated region
        $region85: #{_net_forward_jit.1} parent=63 // pred_check
          %p464 = pneg %p174
        $region86: #{_net_forward_jit.1} parent=63 // pred_check_branch
          %466 = sbr.rel (%p464) target = $region88
        $region87: #{_net_forward_jit.1} parent=63 // pred_region
          %468 = dma.done [#allocation11], 16
        $region88: #{_net_forward_jit.1} parent=63 // pred_fallthru
          _
        // Predicated region
        $region89: #{_net_forward_jit.1} parent=63 // pred_check
          %p469 = pneg %p216
        $region90: #{_net_forward_jit.1} parent=63 // pred_check_branch
          %471 = sbr.rel (%p469) target = $region92
        $region91: #{_net_forward_jit.1} parent=63 // pred_region
          %473 = dma.done [#allocation11], 16
        $region92: #{_net_forward_jit.1} parent=63 // pred_fallthru
          _
        // Predicated region
        $region93: #{_net_forward_jit.1} parent=63 // pred_check
          %p474 = pneg %p237
        $region94: #{_net_forward_jit.1} parent=63 // pred_check_branch
          %476 = sbr.rel (%p474) target = $region96
        $region95: #{_net_forward_jit.1} parent=63 // pred_region
          %478 = dma.done [#allocation14], 704
        $region96: #{_net_forward_jit.1} parent=63 // pred_fallthru
          _
        // Predicated region
        $region97: #{_net_forward_jit.1} parent=63 // pred_check
          %p479 = pneg %p258
        $region98: #{_net_forward_jit.1} parent=63 // pred_check_branch
          %481 = sbr.rel (%p479) target = $region100
        $region99: #{_net_forward_jit.1} parent=63 // pred_region
          %483 = dma.done [#allocation14], 16
        $region100: #{_net_forward_jit.1} parent=63 // pred_fallthru
          _
        %s484 = smul.u32 4, %s27
        %p485 = scmp.lt.s32.totalorder %s484, 7
        %s486 = scalar_select %p485, %s484, 7
        %s487 = smul.addr %s486, 4
        %s488 = smul.addr %s487, 8
        %s489 = scalar_lea.vmem %s0, %s488
        %p490 = pneg %p48
        %p491 = pneg %p45
        %p492 = pneg %p69
        %p493 = pneg %p66
        %p494 = pneg %p90
        %p495 = pneg %p87
        %p496 = pneg %p111
        %p497 = pneg %p108
        %p498 = pneg %p132
        %p499 = pneg %p129
        %p500 = pneg %p153
        %p501 = pneg %p150
        %p502 = pneg %p174
        %p503 = pneg %p171
        %p504 = pneg %p195
        %p505 = pneg %p192
        %p506 = pneg %p216
        %p507 = pneg %p213
        %p508 = pneg %p237
        %p509 = pneg %p234
        %p510 = pneg %p258
        %p511 = pneg %p255
        %p512 = pneg %p284
        %p513 = pneg %p281
        %s514 = smul.u32 4, %s27
        %p515 = scmp.lt.s32.totalorder %s514, 7
        %s516 = scalar_select %p515, %s514, 7
        %s517 = smul.addr %s516, 8
        %s518 = scalar_lea.vmem %s11, %s517
        %s519 = smul.u32 4, %s27
        %p520 = scmp.lt.s32.totalorder %s519, 7
        %s521 = scalar_select %p520, %s519, 7
        %s522 = smul.addr %s521, 4
        %s523 = smul.addr %s522, 8
        %s524 = scalar_lea.vmem %s0, %s523
        %s525 = smul.u32 4, %s27
        %s526 = smul.u32 4, %s27
        %p527 = scmp.lt.s32.totalorder %s526, 7
        %s528 = scalar_select %p527, %s526, 7
        %s529 = smul.addr %s528, 8
        %s530 = scalar_lea.vmem %s11, %s529
        %s531 = smul.u32 4, %s27
        %v533 = vld [vmem:[%s524] sm:$0xff]
        %v534 = vld [vmem:[%s524 + $0x8] sm:$0xff]
        %v535 = vld [vmem:[%s524 + $0x10] sm:$0xff]
        %v536 = vld [vmem:[%s524 + $0x18] sm:$0xff]
        %v537 = vld [vmem:[%s524 + $0x20] sm:$0xff]
        %v538 = vld [vmem:[%s524 + $0x28] sm:$0xff]
        %v539 = vld [vmem:[%s524 + $0x30] sm:$0xff]
        %v540 = vld [vmem:[%s524 + $0x38] sm:$0xff]
        %v541 = vld [vmem:[%s524 + $0x40] sm:$0xff]
        %v542 = vld [vmem:[%s524 + $0x48] sm:$0xff]
        %v543 = vld [vmem:[%s524 + $0x50] sm:$0xff]
        %v544 = vld [vmem:[%s524 + $0x58] sm:$0xff]
        %v545 = vld [vmem:[%s524 + $0x60] sm:$0xff]
        %v546 = vld [vmem:[%s524 + $0x68] sm:$0xff]
        %v547 = vld [vmem:[%s524 + $0x70] sm:$0xff]
        %v548 = vld [vmem:[%s524 + $0x78] sm:$0xff]
        %v549 = vpack.c.bf16 %v537, %v533
        %v550 = vpack.c.bf16 %v538, %v534
        %v551 = vpack.c.bf16 %v539, %v535
        %v552 = vpack.c.bf16 %v540, %v536
        %v553 = vpack.c.bf16 %v545, %v541
        %v554 = vpack.c.bf16 %v546, %v542
        %v555 = vpack.c.bf16 %v547, %v543
        %v556 = vpack.c.bf16 %v548, %v544
        %v557 = vld [vmem:[#allocation2] sm:$0xff]
        %v558 = vld [vmem:[#allocation2 + $0x8] sm:$0xff]
        %v559 = vld [vmem:[#allocation2 + $0x10] sm:$0xff]
        %v560 = vld [vmem:[#allocation2 + $0x18] sm:$0xff]
        %v561 = vld [vmem:[#allocation2 + $0x20] sm:$0xff]
        %v562 = vld [vmem:[#allocation2 + $0x28] sm:$0xff]
        %v563 = vld [vmem:[#allocation2 + $0x30] sm:$0xff]
        %v564 = vld [vmem:[#allocation2 + $0x38] sm:$0xff]
        %v565 = vld [vmem:[#allocation2 + $0x40] sm:$0xff]
        %v566 = vld [vmem:[#allocation2 + $0x48] sm:$0xff]
        %v567 = vld [vmem:[#allocation2 + $0x50] sm:$0xff]
        %v568 = vld [vmem:[#allocation2 + $0x58] sm:$0xff]
        %v569 = vld [vmem:[#allocation2 + $0x60] sm:$0xff]
        %v570 = vld [vmem:[#allocation2 + $0x68] sm:$0xff]
        %v571 = vld [vmem:[#allocation2 + $0x70] sm:$0xff]
        %v572 = vld [vmem:[#allocation2 + $0x78] sm:$0xff]
        %v573 = vld [vmem:[#allocation2 + $0x80] sm:$0xff]
        %v574 = vld [vmem:[#allocation2 + $0x88] sm:$0xff]
        %v575 = vld [vmem:[#allocation2 + $0x90] sm:$0xff]
        %v576 = vld [vmem:[#allocation2 + $0x98] sm:$0xff]
        %v577 = vld [vmem:[#allocation2 + $0xa0] sm:$0xff]
        %v578 = vld [vmem:[#allocation2 + $0xa8] sm:$0xff]
        %v579 = vld [vmem:[#allocation2 + $0xb0] sm:$0xff]
        %v580 = vld [vmem:[#allocation2 + $0xb8] sm:$0xff]
        %v581 = vld [vmem:[#allocation2 + $0xc0] sm:$0xff]
        %v582 = vld [vmem:[#allocation2 + $0xc8] sm:$0xff]
        %v583 = vld [vmem:[#allocation2 + $0xd0] sm:$0xff]
        %v584 = vld [vmem:[#allocation2 + $0xd8] sm:$0xff]
        %v585 = vld [vmem:[#allocation2 + $0xe0] sm:$0xff]
        %v586 = vld [vmem:[#allocation2 + $0xe8] sm:$0xff]
        %v587 = vld [vmem:[#allocation2 + $0xf0] sm:$0xff]
        %v588 = vld [vmem:[#allocation2 + $0xf8] sm:$0xff]
        %v589 = vld [vmem:[#allocation2 + $0x100] sm:$0xff]
        %v590 = vld [vmem:[#allocation2 + $0x108] sm:$0xff]
        %v591 = vld [vmem:[#allocation2 + $0x110] sm:$0xff]
        %v592 = vld [vmem:[#allocation2 + $0x118] sm:$0xff]
        %v593 = vld [vmem:[#allocation2 + $0x120] sm:$0xff]
        %v594 = vld [vmem:[#allocation2 + $0x128] sm:$0xff]
        %v595 = vld [vmem:[#allocation2 + $0x130] sm:$0xff]
        %v596 = vld [vmem:[#allocation2 + $0x138] sm:$0xff]
        %v597 = vld [vmem:[#allocation2 + $0x140] sm:$0xff]
        %v598 = vld [vmem:[#allocation2 + $0x148] sm:$0xff]
        %v599 = vld [vmem:[#allocation2 + $0x150] sm:$0xff]
        %v600 = vld [vmem:[#allocation2 + $0x158] sm:$0xff]
        %v601 = vld [vmem:[#allocation2 + $0x160] sm:$0xff]
        %v602 = vld [vmem:[#allocation2 + $0x168] sm:$0xff]
        %v603 = vld [vmem:[#allocation2 + $0x170] sm:$0xff]
        %v604 = vld [vmem:[#allocation2 + $0x178] sm:$0xff]
        %v605 = vld [vmem:[#allocation2 + $0x180] sm:$0xff]
        %v606 = vld [vmem:[#allocation2 + $0x188] sm:$0xff]
        %v607 = vld [vmem:[#allocation2 + $0x190] sm:$0xff]
        %v608 = vld [vmem:[#allocation2 + $0x198] sm:$0xff]
        %v609 = vld [vmem:[#allocation2 + $0x1a0] sm:$0xff]
        %v610 = vld [vmem:[#allocation2 + $0x1a8] sm:$0xff]
        %v611 = vld [vmem:[#allocation2 + $0x1b0] sm:$0xff]
        %v612 = vld [vmem:[#allocation2 + $0x1b8] sm:$0xff]
        %v613 = vld [vmem:[#allocation2 + $0x1c0] sm:$0xff]
        %v614 = vld [vmem:[#allocation2 + $0x1c8] sm:$0xff]
        %v615 = vld [vmem:[#allocation2 + $0x1d0] sm:$0xff]
        %v616 = vld [vmem:[#allocation2 + $0x1d8] sm:$0xff]
        %v617 = vld [vmem:[#allocation2 + $0x1e0] sm:$0xff]
        %v618 = vld [vmem:[#allocation2 + $0x1e8] sm:$0xff]
        %v619 = vld [vmem:[#allocation2 + $0x1f0] sm:$0xff]
        %v620 = vld [vmem:[#allocation2 + $0x1f8] sm:$0xff]
        %v621 = vld [vmem:[#allocation2 + $0x200] sm:$0xff]
        %v622 = vld [vmem:[#allocation2 + $0x208] sm:$0xff]
        %v623 = vld [vmem:[#allocation2 + $0x210] sm:$0xff]
        %v624 = vld [vmem:[#allocation2 + $0x218] sm:$0xff]
        %v625 = vld [vmem:[#allocation2 + $0x220] sm:$0xff]
        %v626 = vld [vmem:[#allocation2 + $0x228] sm:$0xff]
        %v627 = vld [vmem:[#allocation2 + $0x230] sm:$0xff]
        %v628 = vld [vmem:[#allocation2 + $0x238] sm:$0xff]
        %v629 = vld [vmem:[#allocation2 + $0x240] sm:$0xff]
        %v630 = vld [vmem:[#allocation2 + $0x248] sm:$0xff]
        %v631 = vld [vmem:[#allocation2 + $0x250] sm:$0xff]
        %v632 = vld [vmem:[#allocation2 + $0x258] sm:$0xff]
        %v633 = vld [vmem:[#allocation2 + $0x260] sm:$0xff]
        %v634 = vld [vmem:[#allocation2 + $0x268] sm:$0xff]
        %v635 = vld [vmem:[#allocation2 + $0x270] sm:$0xff]
        %v636 = vld [vmem:[#allocation2 + $0x278] sm:$0xff]
        %v637 = vld [vmem:[#allocation2 + $0x280] sm:$0xff]
        %v638 = vld [vmem:[#allocation2 + $0x288] sm:$0xff]
        %v639 = vld [vmem:[#allocation2 + $0x290] sm:$0xff]
        %v640 = vld [vmem:[#allocation2 + $0x298] sm:$0xff]
        %v641 = vld [vmem:[#allocation2 + $0x2a0] sm:$0xff]
        %v642 = vld [vmem:[#allocation2 + $0x2a8] sm:$0xff]
        %v643 = vld [vmem:[#allocation2 + $0x2b0] sm:$0xff]
        %v644 = vld [vmem:[#allocation2 + $0x2b8] sm:$0xff]
        %v645 = vld [vmem:[#allocation2 + $0x2c0] sm:$0xff]
        %v646 = vld [vmem:[#allocation2 + $0x2c8] sm:$0xff]
        %v647 = vld [vmem:[#allocation2 + $0x2d0] sm:$0xff]
        %v648 = vld [vmem:[#allocation2 + $0x2d8] sm:$0xff]
        %v649 = vld [vmem:[#allocation2 + $0x2e0] sm:$0xff]
        %v650 = vld [vmem:[#allocation2 + $0x2e8] sm:$0xff]
        %v651 = vld [vmem:[#allocation2 + $0x2f0] sm:$0xff]
        %v652 = vld [vmem:[#allocation2 + $0x2f8] sm:$0xff]
        %v653 = vld [vmem:[#allocation2 + $0x300] sm:$0xff]
        %v654 = vld [vmem:[#allocation2 + $0x308] sm:$0xff]
        %v655 = vld [vmem:[#allocation2 + $0x310] sm:$0xff]
        %v656 = vld [vmem:[#allocation2 + $0x318] sm:$0xff]
        %v657 = vld [vmem:[#allocation2 + $0x320] sm:$0xff]
        %v658 = vld [vmem:[#allocation2 + $0x328] sm:$0xff]
        %v659 = vld [vmem:[#allocation2 + $0x330] sm:$0xff]
        %v660 = vld [vmem:[#allocation2 + $0x338] sm:$0xff]
        %v661 = vld [vmem:[#allocation2 + $0x340] sm:$0xff]
        %v662 = vld [vmem:[#allocation2 + $0x348] sm:$0xff]
        %v663 = vld [vmem:[#allocation2 + $0x350] sm:$0xff]
        %v664 = vld [vmem:[#allocation2 + $0x358] sm:$0xff]
        %v665 = vld [vmem:[#allocation2 + $0x360] sm:$0xff]
        %v666 = vld [vmem:[#allocation2 + $0x368] sm:$0xff]
        %v667 = vld [vmem:[#allocation2 + $0x370] sm:$0xff]
        %v668 = vld [vmem:[#allocation2 + $0x378] sm:$0xff]
        %v669 = vld [vmem:[#allocation2 + $0x380] sm:$0xff]
        %v670 = vld [vmem:[#allocation2 + $0x388] sm:$0xff]
        %v671 = vld [vmem:[#allocation2 + $0x390] sm:$0xff]
        %v672 = vld [vmem:[#allocation2 + $0x398] sm:$0xff]
        %v673 = vld [vmem:[#allocation2 + $0x3a0] sm:$0xff]
        %v674 = vld [vmem:[#allocation2 + $0x3a8] sm:$0xff]
        %v675 = vld [vmem:[#allocation2 + $0x3b0] sm:$0xff]
        %v676 = vld [vmem:[#allocation2 + $0x3b8] sm:$0xff]
        %v677 = vld [vmem:[#allocation2 + $0x3c0] sm:$0xff]
        %v678 = vld [vmem:[#allocation2 + $0x3c8] sm:$0xff]
        %v679 = vld [vmem:[#allocation2 + $0x3d0] sm:$0xff]
        %v680 = vld [vmem:[#allocation2 + $0x3d8] sm:$0xff]
        %v681 = vld [vmem:[#allocation2 + $0x3e0] sm:$0xff]
        %v682 = vld [vmem:[#allocation2 + $0x3e8] sm:$0xff]
        %v683 = vld [vmem:[#allocation2 + $0x3f0] sm:$0xff]
        %v684 = vld [vmem:[#allocation2 + $0x3f8] sm:$0xff]
        %v685 = vld [vmem:[#allocation2 + $0x400] sm:$0xff]
        %v686 = vld [vmem:[#allocation2 + $0x408] sm:$0xff]
        %v687 = vld [vmem:[#allocation2 + $0x410] sm:$0xff]
        %v688 = vld [vmem:[#allocation2 + $0x418] sm:$0xff]
        %v689 = vld [vmem:[#allocation2 + $0x420] sm:$0xff]
        %v690 = vld [vmem:[#allocation2 + $0x428] sm:$0xff]
        %v691 = vld [vmem:[#allocation2 + $0x430] sm:$0xff]
        %v692 = vld [vmem:[#allocation2 + $0x438] sm:$0xff]
        %v693 = vld [vmem:[#allocation2 + $0x440] sm:$0xff]
        %v694 = vld [vmem:[#allocation2 + $0x448] sm:$0xff]
        %v695 = vld [vmem:[#allocation2 + $0x450] sm:$0xff]
        %v696 = vld [vmem:[#allocation2 + $0x458] sm:$0xff]
        %v697 = vld [vmem:[#allocation2 + $0x460] sm:$0xff]
        %v698 = vld [vmem:[#allocation2 + $0x468] sm:$0xff]
        %v699 = vld [vmem:[#allocation2 + $0x470] sm:$0xff]
        %v700 = vld [vmem:[#allocation2 + $0x478] sm:$0xff]
        %v701 = vld [vmem:[#allocation2 + $0x480] sm:$0xff]
        %v702 = vld [vmem:[#allocation2 + $0x488] sm:$0xff]
        %v703 = vld [vmem:[#allocation2 + $0x490] sm:$0xff]
        %v704 = vld [vmem:[#allocation2 + $0x498] sm:$0xff]
        %v705 = vld [vmem:[#allocation2 + $0x4a0] sm:$0xff]
        %v706 = vld [vmem:[#allocation2 + $0x4a8] sm:$0xff]
        %v707 = vld [vmem:[#allocation2 + $0x4b0] sm:$0xff]
        %v708 = vld [vmem:[#allocation2 + $0x4b8] sm:$0xff]
        %v709 = vld [vmem:[#allocation2 + $0x4c0] sm:$0xff]
        %v710 = vld [vmem:[#allocation2 + $0x4c8] sm:$0xff]
        %v711 = vld [vmem:[#allocation2 + $0x4d0] sm:$0xff]
        %v712 = vld [vmem:[#allocation2 + $0x4d8] sm:$0xff]
        %v713 = vld [vmem:[#allocation2 + $0x4e0] sm:$0xff]
        %v714 = vld [vmem:[#allocation2 + $0x4e8] sm:$0xff]
        %v715 = vld [vmem:[#allocation2 + $0x4f0] sm:$0xff]
        %v716 = vld [vmem:[#allocation2 + $0x4f8] sm:$0xff]
        %v717 = vld [vmem:[#allocation2 + $0x500] sm:$0xff]
        %v718 = vld [vmem:[#allocation2 + $0x508] sm:$0xff]
        %v719 = vld [vmem:[#allocation2 + $0x510] sm:$0xff]
        %v720 = vld [vmem:[#allocation2 + $0x518] sm:$0xff]
        %v721 = vld [vmem:[#allocation2 + $0x520] sm:$0xff]
        %v722 = vld [vmem:[#allocation2 + $0x528] sm:$0xff]
        %v723 = vld [vmem:[#allocation2 + $0x530] sm:$0xff]
        %v724 = vld [vmem:[#allocation2 + $0x538] sm:$0xff]
        %v725 = vld [vmem:[#allocation2 + $0x540] sm:$0xff]
        %v726 = vld [vmem:[#allocation2 + $0x548] sm:$0xff]
        %v727 = vld [vmem:[#allocation2 + $0x550] sm:$0xff]
        %v728 = vld [vmem:[#allocation2 + $0x558] sm:$0xff]
        %v729 = vld [vmem:[#allocation2 + $0x560] sm:$0xff]
        %v730 = vld [vmem:[#allocation2 + $0x568] sm:$0xff]
        %v731 = vld [vmem:[#allocation2 + $0x570] sm:$0xff]
        %v732 = vld [vmem:[#allocation2 + $0x578] sm:$0xff]
        %v733 = vld [vmem:[#allocation2 + $0x580] sm:$0xff]
        %v734 = vld [vmem:[#allocation2 + $0x588] sm:$0xff]
        %v735 = vld [vmem:[#allocation2 + $0x590] sm:$0xff]
        %v736 = vld [vmem:[#allocation2 + $0x598] sm:$0xff]
        %v737 = vld [vmem:[#allocation2 + $0x5a0] sm:$0xff]
        %v738 = vld [vmem:[#allocation2 + $0x5a8] sm:$0xff]
        %v739 = vld [vmem:[#allocation2 + $0x5b0] sm:$0xff]
        %v740 = vld [vmem:[#allocation2 + $0x5b8] sm:$0xff]
        %v741 = vld [vmem:[#allocation2 + $0x5c0] sm:$0xff]
        %v742 = vld [vmem:[#allocation2 + $0x5c8] sm:$0xff]
        %v743 = vld [vmem:[#allocation2 + $0x5d0] sm:$0xff]
        %v744 = vld [vmem:[#allocation2 + $0x5d8] sm:$0xff]
        %v745 = vld [vmem:[#allocation2 + $0x5e0] sm:$0xff]
        %v746 = vld [vmem:[#allocation2 + $0x5e8] sm:$0xff]
        %v747 = vld [vmem:[#allocation2 + $0x5f0] sm:$0xff]
        %v748 = vld [vmem:[#allocation2 + $0x5f8] sm:$0xff]
        %v749 = vld [vmem:[#allocation2 + $0x600] sm:$0xff]
        %v750 = vld [vmem:[#allocation2 + $0x608] sm:$0xff]
        %v751 = vld [vmem:[#allocation2 + $0x610] sm:$0xff]
        %v752 = vld [vmem:[#allocation2 + $0x618] sm:$0xff]
        %v753 = vld [vmem:[#allocation2 + $0x620] sm:$0xff]
        %v754 = vld [vmem:[#allocation2 + $0x628] sm:$0xff]
        %v755 = vld [vmem:[#allocation2 + $0x630] sm:$0xff]
        %v756 = vld [vmem:[#allocation2 + $0x638] sm:$0xff]
        %v757 = vld [vmem:[#allocation2 + $0x640] sm:$0xff]
        %v758 = vld [vmem:[#allocation2 + $0x648] sm:$0xff]
        %v759 = vld [vmem:[#allocation2 + $0x650] sm:$0xff]
        %v760 = vld [vmem:[#allocation2 + $0x658] sm:$0xff]
        %v761 = vld [vmem:[#allocation2 + $0x660] sm:$0xff]
        %v762 = vld [vmem:[#allocation2 + $0x668] sm:$0xff]
        %v763 = vld [vmem:[#allocation2 + $0x670] sm:$0xff]
        %v764 = vld [vmem:[#allocation2 + $0x678] sm:$0xff]
        %v765 = vld [vmem:[#allocation2 + $0x680] sm:$0xff]
        %v766 = vld [vmem:[#allocation2 + $0x688] sm:$0xff]
        %v767 = vld [vmem:[#allocation2 + $0x690] sm:$0xff]
        %v768 = vld [vmem:[#allocation2 + $0x698] sm:$0xff]
        %v769 = vld [vmem:[#allocation2 + $0x6a0] sm:$0xff]
        %v770 = vld [vmem:[#allocation2 + $0x6a8] sm:$0xff]
        %v771 = vld [vmem:[#allocation2 + $0x6b0] sm:$0xff]
        %v772 = vld [vmem:[#allocation2 + $0x6b8] sm:$0xff]
        %v773 = vld [vmem:[#allocation2 + $0x6c0] sm:$0xff]
        %v774 = vld [vmem:[#allocation2 + $0x6c8] sm:$0xff]
        %v775 = vld [vmem:[#allocation2 + $0x6d0] sm:$0xff]
        %v776 = vld [vmem:[#allocation2 + $0x6d8] sm:$0xff]
        %v777 = vld [vmem:[#allocation2 + $0x6e0] sm:$0xff]
        %v778 = vld [vmem:[#allocation2 + $0x6e8] sm:$0xff]
        %v779 = vld [vmem:[#allocation2 + $0x6f0] sm:$0xff]
        %v780 = vld [vmem:[#allocation2 + $0x6f8] sm:$0xff]
        %v781 = vld [vmem:[#allocation2 + $0x700] sm:$0xff]
        %v782 = vld [vmem:[#allocation2 + $0x708] sm:$0xff]
        %v783 = vld [vmem:[#allocation2 + $0x710] sm:$0xff]
        %v784 = vld [vmem:[#allocation2 + $0x718] sm:$0xff]
        %v785 = vld [vmem:[#allocation2 + $0x720] sm:$0xff]
        %v786 = vld [vmem:[#allocation2 + $0x728] sm:$0xff]
        %v787 = vld [vmem:[#allocation2 + $0x730] sm:$0xff]
        %v788 = vld [vmem:[#allocation2 + $0x738] sm:$0xff]
        %v789 = vld [vmem:[#allocation2 + $0x740] sm:$0xff]
        %v790 = vld [vmem:[#allocation2 + $0x748] sm:$0xff]
        %v791 = vld [vmem:[#allocation2 + $0x750] sm:$0xff]
        %v792 = vld [vmem:[#allocation2 + $0x758] sm:$0xff]
        %v793 = vld [vmem:[#allocation2 + $0x760] sm:$0xff]
        %v794 = vld [vmem:[#allocation2 + $0x768] sm:$0xff]
        %v795 = vld [vmem:[#allocation2 + $0x770] sm:$0xff]
        %v796 = vld [vmem:[#allocation2 + $0x778] sm:$0xff]
        %v797 = vld [vmem:[#allocation2 + $0x780] sm:$0xff]
        %v798 = vld [vmem:[#allocation2 + $0x788] sm:$0xff]
        %v799 = vld [vmem:[#allocation2 + $0x790] sm:$0xff]
        %v800 = vld [vmem:[#allocation2 + $0x798] sm:$0xff]
        %v801 = vld [vmem:[#allocation2 + $0x7a0] sm:$0xff]
        %v802 = vld [vmem:[#allocation2 + $0x7a8] sm:$0xff]
        %v803 = vld [vmem:[#allocation2 + $0x7b0] sm:$0xff]
        %v804 = vld [vmem:[#allocation2 + $0x7b8] sm:$0xff]
        %v805 = vld [vmem:[#allocation2 + $0x7c0] sm:$0xff]
        %v806 = vld [vmem:[#allocation2 + $0x7c8] sm:$0xff]
        %v807 = vld [vmem:[#allocation2 + $0x7d0] sm:$0xff]
        %v808 = vld [vmem:[#allocation2 + $0x7d8] sm:$0xff]
        %v809 = vld [vmem:[#allocation2 + $0x7e0] sm:$0xff]
        %v810 = vld [vmem:[#allocation2 + $0x7e8] sm:$0xff]
        %v811 = vld [vmem:[#allocation2 + $0x7f0] sm:$0xff]
        %v812 = vld [vmem:[#allocation2 + $0x7f8] sm:$0xff]
        %v813 = vld [vmem:[#allocation2 + $0x800] sm:$0xff]
        %v814 = vld [vmem:[#allocation2 + $0x808] sm:$0xff]
        %v815 = vld [vmem:[#allocation2 + $0x810] sm:$0xff]
        %v816 = vld [vmem:[#allocation2 + $0x818] sm:$0xff]
        %v817 = vld [vmem:[#allocation2 + $0x820] sm:$0xff]
        %v818 = vld [vmem:[#allocation2 + $0x828] sm:$0xff]
        %v819 = vld [vmem:[#allocation2 + $0x830] sm:$0xff]
        %v820 = vld [vmem:[#allocation2 + $0x838] sm:$0xff]
        %v821 = vld [vmem:[#allocation2 + $0x840] sm:$0xff]
        %v822 = vld [vmem:[#allocation2 + $0x848] sm:$0xff]
        %v823 = vld [vmem:[#allocation2 + $0x850] sm:$0xff]
        %v824 = vld [vmem:[#allocation2 + $0x858] sm:$0xff]
        %v825 = vld [vmem:[#allocation2 + $0x860] sm:$0xff]
        %v826 = vld [vmem:[#allocation2 + $0x868] sm:$0xff]
        %v827 = vld [vmem:[#allocation2 + $0x870] sm:$0xff]
        %v828 = vld [vmem:[#allocation2 + $0x878] sm:$0xff]
        %v829 = vld [vmem:[#allocation2 + $0x880] sm:$0xff]
        %v830 = vld [vmem:[#allocation2 + $0x888] sm:$0xff]
        %v831 = vld [vmem:[#allocation2 + $0x890] sm:$0xff]
        %v832 = vld [vmem:[#allocation2 + $0x898] sm:$0xff]
        %v833 = vld [vmem:[#allocation2 + $0x8a0] sm:$0xff]
        %v834 = vld [vmem:[#allocation2 + $0x8a8] sm:$0xff]
        %v835 = vld [vmem:[#allocation2 + $0x8b0] sm:$0xff]
        %v836 = vld [vmem:[#allocation2 + $0x8b8] sm:$0xff]
        %v837 = vld [vmem:[#allocation2 + $0x8c0] sm:$0xff]
        %v838 = vld [vmem:[#allocation2 + $0x8c8] sm:$0xff]
        %v839 = vld [vmem:[#allocation2 + $0x8d0] sm:$0xff]
        %v840 = vld [vmem:[#allocation2 + $0x8d8] sm:$0xff]
        %v841 = vld [vmem:[#allocation2 + $0x8e0] sm:$0xff]
        %v842 = vld [vmem:[#allocation2 + $0x8e8] sm:$0xff]
        %v843 = vld [vmem:[#allocation2 + $0x8f0] sm:$0xff]
        %v844 = vld [vmem:[#allocation2 + $0x8f8] sm:$0xff]
        %v845 = vld [vmem:[#allocation2 + $0x900] sm:$0xff]
        %v846 = vld [vmem:[#allocation2 + $0x908] sm:$0xff]
        %v847 = vld [vmem:[#allocation2 + $0x910] sm:$0xff]
        %v848 = vld [vmem:[#allocation2 + $0x918] sm:$0xff]
        %v849 = vld [vmem:[#allocation2 + $0x920] sm:$0xff]
        %v850 = vld [vmem:[#allocation2 + $0x928] sm:$0xff]
        %v851 = vld [vmem:[#allocation2 + $0x930] sm:$0xff]
        %v852 = vld [vmem:[#allocation2 + $0x938] sm:$0xff]
        %v853 = vld [vmem:[#allocation2 + $0x940] sm:$0xff]
        %v854 = vld [vmem:[#allocation2 + $0x948] sm:$0xff]
        %v855 = vld [vmem:[#allocation2 + $0x950] sm:$0xff]
        %v856 = vld [vmem:[#allocation2 + $0x958] sm:$0xff]
        %v857 = vld [vmem:[#allocation4] sm:$0xff]
        %v858 = vld [vmem:[#allocation4 + $0x8] sm:$0xf]
        %v861 = vperm.slane %v857, 0
        %v862 = vperm.slane %v857, 1
        %v863 = vperm.slane %v857, 2
        %v864 = vperm.slane %v857, 3
        %v865 = vperm.slane %v857, 4
        %v866 = vperm.slane %v857, 5
        %v867 = vperm.slane %v857, 6
        %v868 = vperm.slane %v857, 7
        %v869 = vperm.slane %v858, 0
        %v870 = vperm.slane %v858, 1
        %v871 = vperm.slane %v858, 2
        %v872 = vperm.slane %v858, 3
        %v1185 = vunpack.c.l.b16 %v557
        %v1186 = vunpack.c.h.b16 %v557
        %v1187 = vunpack.c.l.b16 %v558
        %v1188 = vunpack.c.h.b16 %v558
        %v1189 = vunpack.c.l.b16 %v559
        %v1190 = vunpack.c.h.b16 %v559
        %v1191 = vunpack.c.l.b16 %v560
        %v1192 = vunpack.c.h.b16 %v560
        %v1193 = vunpack.c.l.b16 %v561
        %v1194 = vunpack.c.h.b16 %v561
        %v1195 = vunpack.c.l.b16 %v562
        %v1196 = vunpack.c.h.b16 %v562
        %v1197 = vunpack.c.l.b16 %v563
        %v1198 = vunpack.c.h.b16 %v563
        %v1199 = vunpack.c.l.b16 %v564
        %v1200 = vunpack.c.h.b16 %v564
        %v1201 = vunpack.c.l.b16 %v565
        %v1202 = vunpack.c.h.b16 %v565
        %v1203 = vunpack.c.l.b16 %v566
        %v1204 = vunpack.c.h.b16 %v566
        %v1205 = vunpack.c.l.b16 %v567
        %v1206 = vunpack.c.h.b16 %v567
        %v1207 = vunpack.c.l.b16 %v568
        %v1208 = vunpack.c.h.b16 %v568
        %v1209 = vunpack.c.l.b16 %v569
        %v1210 = vunpack.c.h.b16 %v569
        %v1211 = vunpack.c.l.b16 %v570
        %v1212 = vunpack.c.h.b16 %v570
        %v1213 = vunpack.c.l.b16 %v571
        %v1214 = vunpack.c.h.b16 %v571
        %v1215 = vunpack.c.l.b16 %v572
        %v1216 = vunpack.c.h.b16 %v572
        %v1217 = vunpack.c.l.b16 %v573
        %v1218 = vunpack.c.h.b16 %v573
        %v1219 = vunpack.c.l.b16 %v574
        %v1220 = vunpack.c.h.b16 %v574
        %v1221 = vunpack.c.l.b16 %v575
        %v1222 = vunpack.c.h.b16 %v575
        %v1223 = vunpack.c.l.b16 %v576
        %v1224 = vunpack.c.h.b16 %v576
        %v1225 = vunpack.c.l.b16 %v577
        %v1226 = vunpack.c.h.b16 %v577
        %v1227 = vunpack.c.l.b16 %v578
        %v1228 = vunpack.c.h.b16 %v578
        %v1229 = vunpack.c.l.b16 %v579
        %v1230 = vunpack.c.h.b16 %v579
        %v1231 = vunpack.c.l.b16 %v580
        %v1232 = vunpack.c.h.b16 %v580
        %v1233 = vunpack.c.l.b16 %v581
        %v1234 = vunpack.c.h.b16 %v581
        %v1235 = vunpack.c.l.b16 %v582
        %v1236 = vunpack.c.h.b16 %v582
        %v1237 = vunpack.c.l.b16 %v583
        %v1238 = vunpack.c.h.b16 %v583
        %v1239 = vunpack.c.l.b16 %v584
        %v1240 = vunpack.c.h.b16 %v584
        %v1241 = vunpack.c.l.b16 %v585
        %v1242 = vunpack.c.h.b16 %v585
        %v1243 = vunpack.c.l.b16 %v586
        %v1244 = vunpack.c.h.b16 %v586
        %v1245 = vunpack.c.l.b16 %v587
        %v1246 = vunpack.c.h.b16 %v587
        %v1247 = vunpack.c.l.b16 %v588
        %v1248 = vunpack.c.h.b16 %v588
        %v1249 = vunpack.c.l.b16 %v589
        %v1250 = vunpack.c.h.b16 %v589
        %v1251 = vunpack.c.l.b16 %v590
        %v1252 = vunpack.c.h.b16 %v590
        %v1253 = vunpack.c.l.b16 %v591
        %v1254 = vunpack.c.h.b16 %v591
        %v1255 = vunpack.c.l.b16 %v592
        %v1256 = vunpack.c.h.b16 %v592
        %v1257 = vunpack.c.l.b16 %v593
        %v1258 = vunpack.c.h.b16 %v593
        %v1259 = vunpack.c.l.b16 %v594
        %v1260 = vunpack.c.h.b16 %v594
        %v1261 = vunpack.c.l.b16 %v595
        %v1262 = vunpack.c.h.b16 %v595
        %v1263 = vunpack.c.l.b16 %v596
        %v1264 = vunpack.c.h.b16 %v596
        %v1265 = vunpack.c.l.b16 %v597
        %v1266 = vunpack.c.h.b16 %v597
        %v1267 = vunpack.c.l.b16 %v598
        %v1268 = vunpack.c.h.b16 %v598
        %v1269 = vunpack.c.l.b16 %v599
        %v1270 = vunpack.c.h.b16 %v599
        %v1271 = vunpack.c.l.b16 %v600
        %v1272 = vunpack.c.h.b16 %v600
        %v1273 = vunpack.c.l.b16 %v601
        %v1274 = vunpack.c.h.b16 %v601
        %v1275 = vunpack.c.l.b16 %v602
        %v1276 = vunpack.c.h.b16 %v602
        %v1277 = vunpack.c.l.b16 %v603
        %v1278 = vunpack.c.h.b16 %v603
        %v1279 = vunpack.c.l.b16 %v604
        %v1280 = vunpack.c.h.b16 %v604
        %v1281 = vunpack.c.l.b16 %v605
        %v1282 = vunpack.c.h.b16 %v605
        %v1283 = vunpack.c.l.b16 %v606
        %v1284 = vunpack.c.h.b16 %v606
        %v1285 = vunpack.c.l.b16 %v607
        %v1286 = vunpack.c.h.b16 %v607
        %v1287 = vunpack.c.l.b16 %v608
        %v1288 = vunpack.c.h.b16 %v608
        %v1289 = vunpack.c.l.b16 %v609
        %v1290 = vunpack.c.h.b16 %v609
        %v1291 = vunpack.c.l.b16 %v610
        %v1292 = vunpack.c.h.b16 %v610
        %v1293 = vunpack.c.l.b16 %v611
        %v1294 = vunpack.c.h.b16 %v611
        %v1295 = vunpack.c.l.b16 %v612
        %v1296 = vunpack.c.h.b16 %v612
        %v1297 = vunpack.c.l.b16 %v613
        %v1298 = vunpack.c.h.b16 %v613
        %v1299 = vunpack.c.l.b16 %v614
        %v1300 = vunpack.c.h.b16 %v614
        %v1301 = vunpack.c.l.b16 %v615
        %v1302 = vunpack.c.h.b16 %v615
        %v1303 = vunpack.c.l.b16 %v616
        %v1304 = vunpack.c.h.b16 %v616
        %v1305 = vunpack.c.l.b16 %v617
        %v1306 = vunpack.c.h.b16 %v617
        %v1307 = vunpack.c.l.b16 %v618
        %v1308 = vunpack.c.h.b16 %v618
        %v1309 = vunpack.c.l.b16 %v619
        %v1310 = vunpack.c.h.b16 %v619
        %v1311 = vunpack.c.l.b16 %v620
        %v1312 = vunpack.c.h.b16 %v620
        %v1313 = vunpack.c.l.b16 %v621
        %v1314 = vunpack.c.h.b16 %v621
        %v1315 = vunpack.c.l.b16 %v622
        %v1316 = vunpack.c.h.b16 %v622
        %v1317 = vunpack.c.l.b16 %v623
        %v1318 = vunpack.c.h.b16 %v623
        %v1319 = vunpack.c.l.b16 %v624
        %v1320 = vunpack.c.h.b16 %v624
        %v1321 = vunpack.c.l.b16 %v625
        %v1322 = vunpack.c.h.b16 %v625
        %v1323 = vunpack.c.l.b16 %v626
        %v1324 = vunpack.c.h.b16 %v626
        %v1325 = vunpack.c.l.b16 %v627
        %v1326 = vunpack.c.h.b16 %v627
        %v1327 = vunpack.c.l.b16 %v628
        %v1328 = vunpack.c.h.b16 %v628
        %v1329 = vunpack.c.l.b16 %v629
        %v1330 = vunpack.c.h.b16 %v629
        %v1331 = vunpack.c.l.b16 %v630
        %v1332 = vunpack.c.h.b16 %v630
        %v1333 = vunpack.c.l.b16 %v631
        %v1334 = vunpack.c.h.b16 %v631
        %v1335 = vunpack.c.l.b16 %v632
        %v1336 = vunpack.c.h.b16 %v632
        %v1337 = vunpack.c.l.b16 %v633
        %v1338 = vunpack.c.h.b16 %v633
        %v1339 = vunpack.c.l.b16 %v634
        %v1340 = vunpack.c.h.b16 %v634
        %v1341 = vunpack.c.l.b16 %v635
        %v1342 = vunpack.c.h.b16 %v635
        %v1343 = vunpack.c.l.b16 %v636
        %v1344 = vunpack.c.h.b16 %v636
        %v1345 = vunpack.c.l.b16 %v637
        %v1346 = vunpack.c.h.b16 %v637
        %v1347 = vunpack.c.l.b16 %v638
        %v1348 = vunpack.c.h.b16 %v638
        %v1349 = vunpack.c.l.b16 %v639
        %v1350 = vunpack.c.h.b16 %v639
        %v1351 = vunpack.c.l.b16 %v640
        %v1352 = vunpack.c.h.b16 %v640
        %v1353 = vunpack.c.l.b16 %v641
        %v1354 = vunpack.c.h.b16 %v641
        %v1355 = vunpack.c.l.b16 %v642
        %v1356 = vunpack.c.h.b16 %v642
        %v1357 = vunpack.c.l.b16 %v643
        %v1358 = vunpack.c.h.b16 %v643
        %v1359 = vunpack.c.l.b16 %v644
        %v1360 = vunpack.c.h.b16 %v644
        %v1361 = vunpack.c.l.b16 %v645
        %v1362 = vunpack.c.h.b16 %v645
        %v1363 = vunpack.c.l.b16 %v646
        %v1364 = vunpack.c.h.b16 %v646
        %v1365 = vunpack.c.l.b16 %v647
        %v1366 = vunpack.c.h.b16 %v647
        %v1367 = vunpack.c.l.b16 %v648
        %v1368 = vunpack.c.h.b16 %v648
        %v1369 = vunpack.c.l.b16 %v649
        %v1370 = vunpack.c.h.b16 %v649
        %v1371 = vunpack.c.l.b16 %v650
        %v1372 = vunpack.c.h.b16 %v650
        %v1373 = vunpack.c.l.b16 %v651
        %v1374 = vunpack.c.h.b16 %v651
        %v1375 = vunpack.c.l.b16 %v652
        %v1376 = vunpack.c.h.b16 %v652
        %v1377 = vunpack.c.l.b16 %v653
        %v1378 = vunpack.c.h.b16 %v653
        %v1379 = vunpack.c.l.b16 %v654
        %v1380 = vunpack.c.h.b16 %v654
        %v1381 = vunpack.c.l.b16 %v655
        %v1382 = vunpack.c.h.b16 %v655
        %v1383 = vunpack.c.l.b16 %v656
        %v1384 = vunpack.c.h.b16 %v656
        %v1385 = vunpack.c.l.b16 %v657
        %v1386 = vunpack.c.h.b16 %v657
        %v1387 = vunpack.c.l.b16 %v658
        %v1388 = vunpack.c.h.b16 %v658
        %v1389 = vunpack.c.l.b16 %v659
        %v1390 = vunpack.c.h.b16 %v659
        %v1391 = vunpack.c.l.b16 %v660
        %v1392 = vunpack.c.h.b16 %v660
        %v1393 = vunpack.c.l.b16 %v661
        %v1394 = vunpack.c.h.b16 %v661
        %v1395 = vunpack.c.l.b16 %v662
        %v1396 = vunpack.c.h.b16 %v662
        %v1397 = vunpack.c.l.b16 %v663
        %v1398 = vunpack.c.h.b16 %v663
        %v1399 = vunpack.c.l.b16 %v664
        %v1400 = vunpack.c.h.b16 %v664
        %v1401 = vunpack.c.l.b16 %v665
        %v1402 = vunpack.c.h.b16 %v665
        %v1403 = vunpack.c.l.b16 %v666
        %v1404 = vunpack.c.h.b16 %v666
        %v1405 = vunpack.c.l.b16 %v667
        %v1406 = vunpack.c.h.b16 %v667
        %v1407 = vunpack.c.l.b16 %v668
        %v1408 = vunpack.c.h.b16 %v668
        %v1409 = vunpack.c.l.b16 %v669
        %v1410 = vunpack.c.h.b16 %v669
        %v1411 = vunpack.c.l.b16 %v670
        %v1412 = vunpack.c.h.b16 %v670
        %v1413 = vunpack.c.l.b16 %v671
        %v1414 = vunpack.c.h.b16 %v671
        %v1415 = vunpack.c.l.b16 %v672
        %v1416 = vunpack.c.h.b16 %v672
        %v1417 = vunpack.c.l.b16 %v673
        %v1418 = vunpack.c.h.b16 %v673
        %v1419 = vunpack.c.l.b16 %v674
        %v1420 = vunpack.c.h.b16 %v674
        %v1421 = vunpack.c.l.b16 %v675
        %v1422 = vunpack.c.h.b16 %v675
        %v1423 = vunpack.c.l.b16 %v676
        %v1424 = vunpack.c.h.b16 %v676
        %v1425 = vunpack.c.l.b16 %v677
        %v1426 = vunpack.c.h.b16 %v677
        %v1427 = vunpack.c.l.b16 %v678
        %v1428 = vunpack.c.h.b16 %v678
        %v1429 = vunpack.c.l.b16 %v679
        %v1430 = vunpack.c.h.b16 %v679
        %v1431 = vunpack.c.l.b16 %v680
        %v1432 = vunpack.c.h.b16 %v680
        %v1433 = vunpack.c.l.b16 %v681
        %v1434 = vunpack.c.h.b16 %v681
        %v1435 = vunpack.c.l.b16 %v682
        %v1436 = vunpack.c.h.b16 %v682
        %v1437 = vunpack.c.l.b16 %v683
        %v1438 = vunpack.c.h.b16 %v683
        %v1439 = vunpack.c.l.b16 %v684
        %v1440 = vunpack.c.h.b16 %v684
        %v1441 = vunpack.c.l.b16 %v685
        %v1442 = vunpack.c.h.b16 %v685
        %v1443 = vunpack.c.l.b16 %v686
        %v1444 = vunpack.c.h.b16 %v686
        %v1445 = vunpack.c.l.b16 %v687
        %v1446 = vunpack.c.h.b16 %v687
        %v1447 = vunpack.c.l.b16 %v688
        %v1448 = vunpack.c.h.b16 %v688
        %v1449 = vunpack.c.l.b16 %v689
        %v1450 = vunpack.c.h.b16 %v689
        %v1451 = vunpack.c.l.b16 %v690
        %v1452 = vunpack.c.h.b16 %v690
        %v1453 = vunpack.c.l.b16 %v691
        %v1454 = vunpack.c.h.b16 %v691
        %v1455 = vunpack.c.l.b16 %v692
        %v1456 = vunpack.c.h.b16 %v692
        %v1457 = vunpack.c.l.b16 %v693
        %v1458 = vunpack.c.h.b16 %v693
        %v1459 = vunpack.c.l.b16 %v694
        %v1460 = vunpack.c.h.b16 %v694
        %v1461 = vunpack.c.l.b16 %v695
        %v1462 = vunpack.c.h.b16 %v695
        %v1463 = vunpack.c.l.b16 %v696
        %v1464 = vunpack.c.h.b16 %v696
        %v1465 = vunpack.c.l.b16 %v697
        %v1466 = vunpack.c.h.b16 %v697
        %v1467 = vunpack.c.l.b16 %v698
        %v1468 = vunpack.c.h.b16 %v698
        %v1469 = vunpack.c.l.b16 %v699
        %v1470 = vunpack.c.h.b16 %v699
        %v1471 = vunpack.c.l.b16 %v700
        %v1472 = vunpack.c.h.b16 %v700
        %v1473 = vunpack.c.l.b16 %v701
        %v1474 = vunpack.c.h.b16 %v701
        %v1475 = vunpack.c.l.b16 %v702
        %v1476 = vunpack.c.h.b16 %v702
        %v1477 = vunpack.c.l.b16 %v703
        %v1478 = vunpack.c.h.b16 %v703
        %v1479 = vunpack.c.l.b16 %v704
        %v1480 = vunpack.c.h.b16 %v704
        %v1481 = vunpack.c.l.b16 %v705
        %v1482 = vunpack.c.h.b16 %v705
        %v1483 = vunpack.c.l.b16 %v706
        %v1484 = vunpack.c.h.b16 %v706
        %v1485 = vunpack.c.l.b16 %v707
        %v1486 = vunpack.c.h.b16 %v707
        %v1487 = vunpack.c.l.b16 %v708
        %v1488 = vunpack.c.h.b16 %v708
        %v1489 = vunpack.c.l.b16 %v709
        %v1490 = vunpack.c.h.b16 %v709
        %v1491 = vunpack.c.l.b16 %v710
        %v1492 = vunpack.c.h.b16 %v710
        %v1493 = vunpack.c.l.b16 %v711
        %v1494 = vunpack.c.h.b16 %v711
        %v1495 = vunpack.c.l.b16 %v712
        %v1496 = vunpack.c.h.b16 %v712
        %v1497 = vunpack.c.l.b16 %v713
        %v1498 = vunpack.c.h.b16 %v713
        %v1499 = vunpack.c.l.b16 %v714
        %v1500 = vunpack.c.h.b16 %v714
        %v1501 = vunpack.c.l.b16 %v715
        %v1502 = vunpack.c.h.b16 %v715
        %v1503 = vunpack.c.l.b16 %v716
        %v1504 = vunpack.c.h.b16 %v716
        %v1505 = vunpack.c.l.b16 %v717
        %v1506 = vunpack.c.h.b16 %v717
        %v1507 = vunpack.c.l.b16 %v718
        %v1508 = vunpack.c.h.b16 %v718
        %v1509 = vunpack.c.l.b16 %v719
        %v1510 = vunpack.c.h.b16 %v719
        %v1511 = vunpack.c.l.b16 %v720
        %v1512 = vunpack.c.h.b16 %v720
        %v1513 = vunpack.c.l.b16 %v721
        %v1514 = vunpack.c.h.b16 %v721
        %v1515 = vunpack.c.l.b16 %v722
        %v1516 = vunpack.c.h.b16 %v722
        %v1517 = vunpack.c.l.b16 %v723
        %v1518 = vunpack.c.h.b16 %v723
        %v1519 = vunpack.c.l.b16 %v724
        %v1520 = vunpack.c.h.b16 %v724
        %v1521 = vunpack.c.l.b16 %v725
        %v1522 = vunpack.c.h.b16 %v725
        %v1523 = vunpack.c.l.b16 %v726
        %v1524 = vunpack.c.h.b16 %v726
        %v1525 = vunpack.c.l.b16 %v727
        %v1526 = vunpack.c.h.b16 %v727
        %v1527 = vunpack.c.l.b16 %v728
        %v1528 = vunpack.c.h.b16 %v728
        %v1529 = vunpack.c.l.b16 %v729
        %v1530 = vunpack.c.h.b16 %v729
        %v1531 = vunpack.c.l.b16 %v730
        %v1532 = vunpack.c.h.b16 %v730
        %v1533 = vunpack.c.l.b16 %v731
        %v1534 = vunpack.c.h.b16 %v731
        %v1535 = vunpack.c.l.b16 %v732
        %v1536 = vunpack.c.h.b16 %v732
        %v1537 = vunpack.c.l.b16 %v733
        %v1538 = vunpack.c.h.b16 %v733
        %v1539 = vunpack.c.l.b16 %v734
        %v1540 = vunpack.c.h.b16 %v734
        %v1541 = vunpack.c.l.b16 %v735
        %v1542 = vunpack.c.h.b16 %v735
        %v1543 = vunpack.c.l.b16 %v736
        %v1544 = vunpack.c.h.b16 %v736
        %v1545 = vunpack.c.l.b16 %v737
        %v1546 = vunpack.c.h.b16 %v737
        %v1547 = vunpack.c.l.b16 %v738
        %v1548 = vunpack.c.h.b16 %v738
        %v1549 = vunpack.c.l.b16 %v739
        %v1550 = vunpack.c.h.b16 %v739
        %v1551 = vunpack.c.l.b16 %v740
        %v1552 = vunpack.c.h.b16 %v740
        %v1553 = vunpack.c.l.b16 %v741
        %v1554 = vunpack.c.h.b16 %v741
        %v1555 = vunpack.c.l.b16 %v742
        %v1556 = vunpack.c.h.b16 %v742
        %v1557 = vunpack.c.l.b16 %v743
        %v1558 = vunpack.c.h.b16 %v743
        %v1559 = vunpack.c.l.b16 %v744
        %v1560 = vunpack.c.h.b16 %v744
        %v1561 = vunpack.c.l.b16 %v745
        %v1562 = vunpack.c.h.b16 %v745
        %v1563 = vunpack.c.l.b16 %v746
        %v1564 = vunpack.c.h.b16 %v746
        %v1565 = vunpack.c.l.b16 %v747
        %v1566 = vunpack.c.h.b16 %v747
        %v1567 = vunpack.c.l.b16 %v748
        %v1568 = vunpack.c.h.b16 %v748
        %v1569 = vunpack.c.l.b16 %v749
        %v1570 = vunpack.c.h.b16 %v749
        %v1571 = vunpack.c.l.b16 %v750
        %v1572 = vunpack.c.h.b16 %v750
        %v1573 = vunpack.c.l.b16 %v751
        %v1574 = vunpack.c.h.b16 %v751
        %v1575 = vunpack.c.l.b16 %v752
        %v1576 = vunpack.c.h.b16 %v752
        %v1577 = vunpack.c.l.b16 %v753
        %v1578 = vunpack.c.h.b16 %v753
        %v1579 = vunpack.c.l.b16 %v754
        %v1580 = vunpack.c.h.b16 %v754
        %v1581 = vunpack.c.l.b16 %v755
        %v1582 = vunpack.c.h.b16 %v755
        %v1583 = vunpack.c.l.b16 %v756
        %v1584 = vunpack.c.h.b16 %v756
        %v1585 = vunpack.c.l.b16 %v757
        %v1586 = vunpack.c.h.b16 %v757
        %v1587 = vunpack.c.l.b16 %v758
        %v1588 = vunpack.c.h.b16 %v758
        %v1589 = vunpack.c.l.b16 %v759
        %v1590 = vunpack.c.h.b16 %v759
        %v1591 = vunpack.c.l.b16 %v760
        %v1592 = vunpack.c.h.b16 %v760
        %v1593 = vunpack.c.l.b16 %v761
        %v1594 = vunpack.c.h.b16 %v761
        %v1595 = vunpack.c.l.b16 %v762
        %v1596 = vunpack.c.h.b16 %v762
        %v1597 = vunpack.c.l.b16 %v763
        %v1598 = vunpack.c.h.b16 %v763
        %v1599 = vunpack.c.l.b16 %v764
        %v1600 = vunpack.c.h.b16 %v764
        %v1601 = vunpack.c.l.b16 %v765
        %v1602 = vunpack.c.h.b16 %v765
        %v1603 = vunpack.c.l.b16 %v766
        %v1604 = vunpack.c.h.b16 %v766
        %v1605 = vunpack.c.l.b16 %v767
        %v1606 = vunpack.c.h.b16 %v767
        %v1607 = vunpack.c.l.b16 %v768
        %v1608 = vunpack.c.h.b16 %v768
        %v1609 = vunpack.c.l.b16 %v769
        %v1610 = vunpack.c.h.b16 %v769
        %v1611 = vunpack.c.l.b16 %v770
        %v1612 = vunpack.c.h.b16 %v770
        %v1613 = vunpack.c.l.b16 %v771
        %v1614 = vunpack.c.h.b16 %v771
        %v1615 = vunpack.c.l.b16 %v772
        %v1616 = vunpack.c.h.b16 %v772
        %v1617 = vunpack.c.l.b16 %v773
        %v1618 = vunpack.c.h.b16 %v773
        %v1619 = vunpack.c.l.b16 %v774
        %v1620 = vunpack.c.h.b16 %v774
        %v1621 = vunpack.c.l.b16 %v775
        %v1622 = vunpack.c.h.b16 %v775
        %v1623 = vunpack.c.l.b16 %v776
        %v1624 = vunpack.c.h.b16 %v776
        %v1625 = vunpack.c.l.b16 %v777
        %v1626 = vunpack.c.h.b16 %v777
        %v1627 = vunpack.c.l.b16 %v778
        %v1628 = vunpack.c.h.b16 %v778
        %v1629 = vunpack.c.l.b16 %v779
        %v1630 = vunpack.c.h.b16 %v779
        %v1631 = vunpack.c.l.b16 %v780
        %v1632 = vunpack.c.h.b16 %v780
        %v1633 = vunpack.c.l.b16 %v781
        %v1634 = vunpack.c.h.b16 %v781
        %v1635 = vunpack.c.l.b16 %v782
        %v1636 = vunpack.c.h.b16 %v782
        %v1637 = vunpack.c.l.b16 %v783
        %v1638 = vunpack.c.h.b16 %v783
        %v1639 = vunpack.c.l.b16 %v784
        %v1640 = vunpack.c.h.b16 %v784
        %v1641 = vunpack.c.l.b16 %v785
        %v1642 = vunpack.c.h.b16 %v785
        %v1643 = vunpack.c.l.b16 %v786
        %v1644 = vunpack.c.h.b16 %v786
        %v1645 = vunpack.c.l.b16 %v787
        %v1646 = vunpack.c.h.b16 %v787
        %v1647 = vunpack.c.l.b16 %v788
        %v1648 = vunpack.c.h.b16 %v788
        %v1649 = vunpack.c.l.b16 %v789
        %v1650 = vunpack.c.h.b16 %v789
        %v1651 = vunpack.c.l.b16 %v790
        %v1652 = vunpack.c.h.b16 %v790
        %v1653 = vunpack.c.l.b16 %v791
        %v1654 = vunpack.c.h.b16 %v791
        %v1655 = vunpack.c.l.b16 %v792
        %v1656 = vunpack.c.h.b16 %v792
        %v1657 = vunpack.c.l.b16 %v793
        %v1658 = vunpack.c.h.b16 %v793
        %v1659 = vunpack.c.l.b16 %v794
        %v1660 = vunpack.c.h.b16 %v794
        %v1661 = vunpack.c.l.b16 %v795
        %v1662 = vunpack.c.h.b16 %v795
        %v1663 = vunpack.c.l.b16 %v796
        %v1664 = vunpack.c.h.b16 %v796
        %v1665 = vunpack.c.l.b16 %v797
        %v1666 = vunpack.c.h.b16 %v797
        %v1667 = vunpack.c.l.b16 %v798
        %v1668 = vunpack.c.h.b16 %v798
        %v1669 = vunpack.c.l.b16 %v799
        %v1670 = vunpack.c.h.b16 %v799
        %v1671 = vunpack.c.l.b16 %v800
        %v1672 = vunpack.c.h.b16 %v800
        %v1673 = vunpack.c.l.b16 %v801
        %v1674 = vunpack.c.h.b16 %v801
        %v1675 = vunpack.c.l.b16 %v802
        %v1676 = vunpack.c.h.b16 %v802
        %v1677 = vunpack.c.l.b16 %v803
        %v1678 = vunpack.c.h.b16 %v803
        %v1679 = vunpack.c.l.b16 %v804
        %v1680 = vunpack.c.h.b16 %v804
        %v1681 = vunpack.c.l.b16 %v805
        %v1682 = vunpack.c.h.b16 %v805
        %v1683 = vunpack.c.l.b16 %v806
        %v1684 = vunpack.c.h.b16 %v806
        %v1685 = vunpack.c.l.b16 %v807
        %v1686 = vunpack.c.h.b16 %v807
        %v1687 = vunpack.c.l.b16 %v808
        %v1688 = vunpack.c.h.b16 %v808
        %v1689 = vunpack.c.l.b16 %v809
        %v1690 = vunpack.c.h.b16 %v809
        %v1691 = vunpack.c.l.b16 %v810
        %v1692 = vunpack.c.h.b16 %v810
        %v1693 = vunpack.c.l.b16 %v811
        %v1694 = vunpack.c.h.b16 %v811
        %v1695 = vunpack.c.l.b16 %v812
        %v1696 = vunpack.c.h.b16 %v812
        %v1697 = vunpack.c.l.b16 %v813
        %v1698 = vunpack.c.h.b16 %v813
        %v1699 = vunpack.c.l.b16 %v814
        %v1700 = vunpack.c.h.b16 %v814
        %v1701 = vunpack.c.l.b16 %v815
        %v1702 = vunpack.c.h.b16 %v815
        %v1703 = vunpack.c.l.b16 %v816
        %v1704 = vunpack.c.h.b16 %v816
        %v1705 = vunpack.c.l.b16 %v817
        %v1706 = vunpack.c.h.b16 %v817
        %v1707 = vunpack.c.l.b16 %v818
        %v1708 = vunpack.c.h.b16 %v818
        %v1709 = vunpack.c.l.b16 %v819
        %v1710 = vunpack.c.h.b16 %v819
        %v1711 = vunpack.c.l.b16 %v820
        %v1712 = vunpack.c.h.b16 %v820
        %v1713 = vunpack.c.l.b16 %v821
        %v1714 = vunpack.c.h.b16 %v821
        %v1715 = vunpack.c.l.b16 %v822
        %v1716 = vunpack.c.h.b16 %v822
        %v1717 = vunpack.c.l.b16 %v823
        %v1718 = vunpack.c.h.b16 %v823
        %v1719 = vunpack.c.l.b16 %v824
        %v1720 = vunpack.c.h.b16 %v824
        %v1721 = vunpack.c.l.b16 %v825
        %v1722 = vunpack.c.h.b16 %v825
        %v1723 = vunpack.c.l.b16 %v826
        %v1724 = vunpack.c.h.b16 %v826
        %v1725 = vunpack.c.l.b16 %v827
        %v1726 = vunpack.c.h.b16 %v827
        %v1727 = vunpack.c.l.b16 %v828
        %v1728 = vunpack.c.h.b16 %v828
        %v1729 = vunpack.c.l.b16 %v829
        %v1730 = vunpack.c.h.b16 %v829
        %v1731 = vunpack.c.l.b16 %v830
        %v1732 = vunpack.c.h.b16 %v830
        %v1733 = vunpack.c.l.b16 %v831
        %v1734 = vunpack.c.h.b16 %v831
        %v1735 = vunpack.c.l.b16 %v832
        %v1736 = vunpack.c.h.b16 %v832
        %v1737 = vunpack.c.l.b16 %v833
        %v1738 = vunpack.c.h.b16 %v833
        %v1739 = vunpack.c.l.b16 %v834
        %v1740 = vunpack.c.h.b16 %v834
        %v1741 = vunpack.c.l.b16 %v835
        %v1742 = vunpack.c.h.b16 %v835
        %v1743 = vunpack.c.l.b16 %v836
        %v1744 = vunpack.c.h.b16 %v836
        %v1745 = vunpack.c.l.b16 %v837
        %v1746 = vunpack.c.h.b16 %v837
        %v1747 = vunpack.c.l.b16 %v838
        %v1748 = vunpack.c.h.b16 %v838
        %v1749 = vunpack.c.l.b16 %v839
        %v1750 = vunpack.c.h.b16 %v839
        %v1751 = vunpack.c.l.b16 %v840
        %v1752 = vunpack.c.h.b16 %v840
        %v1753 = vunpack.c.l.b16 %v841
        %v1754 = vunpack.c.h.b16 %v841
        %v1755 = vunpack.c.l.b16 %v842
        %v1756 = vunpack.c.h.b16 %v842
        %v1757 = vunpack.c.l.b16 %v843
        %v1758 = vunpack.c.h.b16 %v843
        %v1759 = vunpack.c.l.b16 %v844
        %v1760 = vunpack.c.h.b16 %v844
        %v1761 = vunpack.c.l.b16 %v845
        %v1762 = vunpack.c.h.b16 %v845
        %v1763 = vunpack.c.l.b16 %v846
        %v1764 = vunpack.c.h.b16 %v846
        %v1765 = vunpack.c.l.b16 %v847
        %v1766 = vunpack.c.h.b16 %v847
        %v1767 = vunpack.c.l.b16 %v848
        %v1768 = vunpack.c.h.b16 %v848
        %v1769 = vunpack.c.l.b16 %v849
        %v1770 = vunpack.c.h.b16 %v849
        %v1771 = vunpack.c.l.b16 %v850
        %v1772 = vunpack.c.h.b16 %v850
        %v1773 = vunpack.c.l.b16 %v851
        %v1774 = vunpack.c.h.b16 %v851
        %v1775 = vunpack.c.l.b16 %v852
        %v1776 = vunpack.c.h.b16 %v852
        %v1777 = vunpack.c.l.b16 %v853
        %v1778 = vunpack.c.h.b16 %v853
        %v1779 = vunpack.c.l.b16 %v854
        %v1780 = vunpack.c.h.b16 %v854
        %v1781 = vunpack.c.l.b16 %v855
        %v1782 = vunpack.c.h.b16 %v855
        %v1783 = vunpack.c.l.b16 %v856
        %v1784 = vunpack.c.h.b16 %v856
        %v1785 = vpack.c.b16 %v1197, %v1185
        %v1786 = vpack.c.b16 %v1198, %v1186
        %v1787 = vpack.c.b16 %v1199, %v1187
        %v1788 = vpack.c.b16 %v1200, %v1188
        %v1789 = vpack.c.b16 %v1201, %v1189
        %v1790 = vpack.c.b16 %v1202, %v1190
        %v1791 = vpack.c.b16 %v1203, %v1191
        %v1792 = vpack.c.b16 %v1204, %v1192
        %v1793 = vpack.c.b16 %v1205, %v1193
        %v1794 = vpack.c.b16 %v1206, %v1194
        %v1795 = vpack.c.b16 %v1207, %v1195
        %v1796 = vpack.c.b16 %v1208, %v1196
        %v1797 = vpack.c.b16 %v1221, %v1209
        %v1798 = vpack.c.b16 %v1222, %v1210
        %v1799 = vpack.c.b16 %v1223, %v1211
        %v1800 = vpack.c.b16 %v1224, %v1212
        %v1801 = vpack.c.b16 %v1225, %v1213
        %v1802 = vpack.c.b16 %v1226, %v1214
        %v1803 = vpack.c.b16 %v1227, %v1215
        %v1804 = vpack.c.b16 %v1228, %v1216
        %v1805 = vpack.c.b16 %v1229, %v1217
        %v1806 = vpack.c.b16 %v1230, %v1218
        %v1807 = vpack.c.b16 %v1231, %v1219
        %v1808 = vpack.c.b16 %v1232, %v1220
        %v1809 = vpack.c.b16 %v1245, %v1233
        %v1810 = vpack.c.b16 %v1246, %v1234
        %v1811 = vpack.c.b16 %v1247, %v1235
        %v1812 = vpack.c.b16 %v1248, %v1236
        %v1813 = vpack.c.b16 %v1249, %v1237
        %v1814 = vpack.c.b16 %v1250, %v1238
        %v1815 = vpack.c.b16 %v1251, %v1239
        %v1816 = vpack.c.b16 %v1252, %v1240
        %v1817 = vpack.c.b16 %v1253, %v1241
        %v1818 = vpack.c.b16 %v1254, %v1242
        %v1819 = vpack.c.b16 %v1255, %v1243
        %v1820 = vpack.c.b16 %v1256, %v1244
        %v1821 = vpack.c.b16 %v1269, %v1257
        %v1822 = vpack.c.b16 %v1270, %v1258
        %v1823 = vpack.c.b16 %v1271, %v1259
        %v1824 = vpack.c.b16 %v1272, %v1260
        %v1825 = vpack.c.b16 %v1273, %v1261
        %v1826 = vpack.c.b16 %v1274, %v1262
        %v1827 = vpack.c.b16 %v1275, %v1263
        %v1828 = vpack.c.b16 %v1276, %v1264
        %v1829 = vpack.c.b16 %v1277, %v1265
        %v1830 = vpack.c.b16 %v1278, %v1266
        %v1831 = vpack.c.b16 %v1279, %v1267
        %v1832 = vpack.c.b16 %v1280, %v1268
        %v1833 = vpack.c.b16 %v1293, %v1281
        %v1834 = vpack.c.b16 %v1294, %v1282
        %v1835 = vpack.c.b16 %v1295, %v1283
        %v1836 = vpack.c.b16 %v1296, %v1284
        %v1837 = vpack.c.b16 %v1297, %v1285
        %v1838 = vpack.c.b16 %v1298, %v1286
        %v1839 = vpack.c.b16 %v1299, %v1287
        %v1840 = vpack.c.b16 %v1300, %v1288
        %v1841 = vpack.c.b16 %v1301, %v1289
        %v1842 = vpack.c.b16 %v1302, %v1290
        %v1843 = vpack.c.b16 %v1303, %v1291
        %v1844 = vpack.c.b16 %v1304, %v1292
        %v1845 = vpack.c.b16 %v1317, %v1305
        %v1846 = vpack.c.b16 %v1318, %v1306
        %v1847 = vpack.c.b16 %v1319, %v1307
        %v1848 = vpack.c.b16 %v1320, %v1308
        %v1849 = vpack.c.b16 %v1321, %v1309
        %v1850 = vpack.c.b16 %v1322, %v1310
        %v1851 = vpack.c.b16 %v1323, %v1311
        %v1852 = vpack.c.b16 %v1324, %v1312
        %v1853 = vpack.c.b16 %v1325, %v1313
        %v1854 = vpack.c.b16 %v1326, %v1314
        %v1855 = vpack.c.b16 %v1327, %v1315
        %v1856 = vpack.c.b16 %v1328, %v1316
        %v1857 = vpack.c.b16 %v1341, %v1329
        %v1858 = vpack.c.b16 %v1342, %v1330
        %v1859 = vpack.c.b16 %v1343, %v1331
        %v1860 = vpack.c.b16 %v1344, %v1332
        %v1861 = vpack.c.b16 %v1345, %v1333
        %v1862 = vpack.c.b16 %v1346, %v1334
        %v1863 = vpack.c.b16 %v1347, %v1335
        %v1864 = vpack.c.b16 %v1348, %v1336
        %v1865 = vpack.c.b16 %v1349, %v1337
        %v1866 = vpack.c.b16 %v1350, %v1338
        %v1867 = vpack.c.b16 %v1351, %v1339
        %v1868 = vpack.c.b16 %v1352, %v1340
        %v1869 = vpack.c.b16 %v1365, %v1353
        %v1870 = vpack.c.b16 %v1366, %v1354
        %v1871 = vpack.c.b16 %v1367, %v1355
        %v1872 = vpack.c.b16 %v1368, %v1356
        %v1873 = vpack.c.b16 %v1369, %v1357
        %v1874 = vpack.c.b16 %v1370, %v1358
        %v1875 = vpack.c.b16 %v1371, %v1359
        %v1876 = vpack.c.b16 %v1372, %v1360
        %v1877 = vpack.c.b16 %v1373, %v1361
        %v1878 = vpack.c.b16 %v1374, %v1362
        %v1879 = vpack.c.b16 %v1375, %v1363
        %v1880 = vpack.c.b16 %v1376, %v1364
        %v1881 = vpack.c.b16 %v1389, %v1377
        %v1882 = vpack.c.b16 %v1390, %v1378
        %v1883 = vpack.c.b16 %v1391, %v1379
        %v1884 = vpack.c.b16 %v1392, %v1380
        %v1885 = vpack.c.b16 %v1393, %v1381
        %v1886 = vpack.c.b16 %v1394, %v1382
        %v1887 = vpack.c.b16 %v1395, %v1383
        %v1888 = vpack.c.b16 %v1396, %v1384
        %v1889 = vpack.c.b16 %v1397, %v1385
        %v1890 = vpack.c.b16 %v1398, %v1386
        %v1891 = vpack.c.b16 %v1399, %v1387
        %v1892 = vpack.c.b16 %v1400, %v1388
        %v1893 = vpack.c.b16 %v1413, %v1401
        %v1894 = vpack.c.b16 %v1414, %v1402
        %v1895 = vpack.c.b16 %v1415, %v1403
        %v1896 = vpack.c.b16 %v1416, %v1404
        %v1897 = vpack.c.b16 %v1417, %v1405
        %v1898 = vpack.c.b16 %v1418, %v1406
        %v1899 = vpack.c.b16 %v1419, %v1407
        %v1900 = vpack.c.b16 %v1420, %v1408
        %v1901 = vpack.c.b16 %v1421, %v1409
        %v1902 = vpack.c.b16 %v1422, %v1410
        %v1903 = vpack.c.b16 %v1423, %v1411
        %v1904 = vpack.c.b16 %v1424, %v1412
        %v1905 = vpack.c.b16 %v1437, %v1425
        %v1906 = vpack.c.b16 %v1438, %v1426
        %v1907 = vpack.c.b16 %v1439, %v1427
        %v1908 = vpack.c.b16 %v1440, %v1428
        %v1909 = vpack.c.b16 %v1441, %v1429
        %v1910 = vpack.c.b16 %v1442, %v1430
        %v1911 = vpack.c.b16 %v1443, %v1431
        %v1912 = vpack.c.b16 %v1444, %v1432
        %v1913 = vpack.c.b16 %v1445, %v1433
        %v1914 = vpack.c.b16 %v1446, %v1434
        %v1915 = vpack.c.b16 %v1447, %v1435
        %v1916 = vpack.c.b16 %v1448, %v1436
        %v1917 = vpack.c.b16 %v1461, %v1449
        %v1918 = vpack.c.b16 %v1462, %v1450
        %v1919 = vpack.c.b16 %v1463, %v1451
        %v1920 = vpack.c.b16 %v1464, %v1452
        %v1921 = vpack.c.b16 %v1465, %v1453
        %v1922 = vpack.c.b16 %v1466, %v1454
        %v1923 = vpack.c.b16 %v1467, %v1455
        %v1924 = vpack.c.b16 %v1468, %v1456
        %v1925 = vpack.c.b16 %v1469, %v1457
        %v1926 = vpack.c.b16 %v1470, %v1458
        %v1927 = vpack.c.b16 %v1471, %v1459
        %v1928 = vpack.c.b16 %v1472, %v1460
        %v1929 = vpack.c.b16 %v1485, %v1473
        %v1930 = vpack.c.b16 %v1486, %v1474
        %v1931 = vpack.c.b16 %v1487, %v1475
        %v1932 = vpack.c.b16 %v1488, %v1476
        %v1933 = vpack.c.b16 %v1489, %v1477
        %v1934 = vpack.c.b16 %v1490, %v1478
        %v1935 = vpack.c.b16 %v1491, %v1479
        %v1936 = vpack.c.b16 %v1492, %v1480
        %v1937 = vpack.c.b16 %v1493, %v1481
        %v1938 = vpack.c.b16 %v1494, %v1482
        %v1939 = vpack.c.b16 %v1495, %v1483
        %v1940 = vpack.c.b16 %v1496, %v1484
        %v1941 = vpack.c.b16 %v1509, %v1497
        %v1942 = vpack.c.b16 %v1510, %v1498
        %v1943 = vpack.c.b16 %v1511, %v1499
        %v1944 = vpack.c.b16 %v1512, %v1500
        %v1945 = vpack.c.b16 %v1513, %v1501
        %v1946 = vpack.c.b16 %v1514, %v1502
        %v1947 = vpack.c.b16 %v1515, %v1503
        %v1948 = vpack.c.b16 %v1516, %v1504
        %v1949 = vpack.c.b16 %v1517, %v1505
        %v1950 = vpack.c.b16 %v1518, %v1506
        %v1951 = vpack.c.b16 %v1519, %v1507
        %v1952 = vpack.c.b16 %v1520, %v1508
        %v1953 = vpack.c.b16 %v1533, %v1521
        %v1954 = vpack.c.b16 %v1534, %v1522
        %v1955 = vpack.c.b16 %v1535, %v1523
        %v1956 = vpack.c.b16 %v1536, %v1524
        %v1957 = vpack.c.b16 %v1537, %v1525
        %v1958 = vpack.c.b16 %v1538, %v1526
        %v1959 = vpack.c.b16 %v1539, %v1527
        %v1960 = vpack.c.b16 %v1540, %v1528
        %v1961 = vpack.c.b16 %v1541, %v1529
        %v1962 = vpack.c.b16 %v1542, %v1530
        %v1963 = vpack.c.b16 %v1543, %v1531
        %v1964 = vpack.c.b16 %v1544, %v1532
        %v1965 = vpack.c.b16 %v1557, %v1545
        %v1966 = vpack.c.b16 %v1558, %v1546
        %v1967 = vpack.c.b16 %v1559, %v1547
        %v1968 = vpack.c.b16 %v1560, %v1548
        %v1969 = vpack.c.b16 %v1561, %v1549
        %v1970 = vpack.c.b16 %v1562, %v1550
        %v1971 = vpack.c.b16 %v1563, %v1551
        %v1972 = vpack.c.b16 %v1564, %v1552
        %v1973 = vpack.c.b16 %v1565, %v1553
        %v1974 = vpack.c.b16 %v1566, %v1554
        %v1975 = vpack.c.b16 %v1567, %v1555
        %v1976 = vpack.c.b16 %v1568, %v1556
        %v1977 = vpack.c.b16 %v1581, %v1569
        %v1978 = vpack.c.b16 %v1582, %v1570
        %v1979 = vpack.c.b16 %v1583, %v1571
        %v1980 = vpack.c.b16 %v1584, %v1572
        %v1981 = vpack.c.b16 %v1585, %v1573
        %v1982 = vpack.c.b16 %v1586, %v1574
        %v1983 = vpack.c.b16 %v1587, %v1575
        %v1984 = vpack.c.b16 %v1588, %v1576
        %v1985 = vpack.c.b16 %v1589, %v1577
        %v1986 = vpack.c.b16 %v1590, %v1578
        %v1987 = vpack.c.b16 %v1591, %v1579
        %v1988 = vpack.c.b16 %v1592, %v1580
        %v1989 = vpack.c.b16 %v1605, %v1593
        %v1990 = vpack.c.b16 %v1606, %v1594
        %v1991 = vpack.c.b16 %v1607, %v1595
        %v1992 = vpack.c.b16 %v1608, %v1596
        %v1993 = vpack.c.b16 %v1609, %v1597
        %v1994 = vpack.c.b16 %v1610, %v1598
        %v1995 = vpack.c.b16 %v1611, %v1599
        %v1996 = vpack.c.b16 %v1612, %v1600
        %v1997 = vpack.c.b16 %v1613, %v1601
        %v1998 = vpack.c.b16 %v1614, %v1602
        %v1999 = vpack.c.b16 %v1615, %v1603
        %v2000 = vpack.c.b16 %v1616, %v1604
        %v2001 = vpack.c.b16 %v1629, %v1617
        %v2002 = vpack.c.b16 %v1630, %v1618
        %v2003 = vpack.c.b16 %v1631, %v1619
        %v2004 = vpack.c.b16 %v1632, %v1620
        %v2005 = vpack.c.b16 %v1633, %v1621
        %v2006 = vpack.c.b16 %v1634, %v1622
        %v2007 = vpack.c.b16 %v1635, %v1623
        %v2008 = vpack.c.b16 %v1636, %v1624
        %v2009 = vpack.c.b16 %v1637, %v1625
        %v2010 = vpack.c.b16 %v1638, %v1626
        %v2011 = vpack.c.b16 %v1639, %v1627
        %v2012 = vpack.c.b16 %v1640, %v1628
        %v2013 = vpack.c.b16 %v1653, %v1641
        %v2014 = vpack.c.b16 %v1654, %v1642
        %v2015 = vpack.c.b16 %v1655, %v1643
        %v2016 = vpack.c.b16 %v1656, %v1644
        %v2017 = vpack.c.b16 %v1657, %v1645
        %v2018 = vpack.c.b16 %v1658, %v1646
        %v2019 = vpack.c.b16 %v1659, %v1647
        %v2020 = vpack.c.b16 %v1660, %v1648
        %v2021 = vpack.c.b16 %v1661, %v1649
        %v2022 = vpack.c.b16 %v1662, %v1650
        %v2023 = vpack.c.b16 %v1663, %v1651
        %v2024 = vpack.c.b16 %v1664, %v1652
        %v2025 = vpack.c.b16 %v1677, %v1665
        %v2026 = vpack.c.b16 %v1678, %v1666
        %v2027 = vpack.c.b16 %v1679, %v1667
        %v2028 = vpack.c.b16 %v1680, %v1668
        %v2029 = vpack.c.b16 %v1681, %v1669
        %v2030 = vpack.c.b16 %v1682, %v1670
        %v2031 = vpack.c.b16 %v1683, %v1671
        %v2032 = vpack.c.b16 %v1684, %v1672
        %v2033 = vpack.c.b16 %v1685, %v1673
        %v2034 = vpack.c.b16 %v1686, %v1674
        %v2035 = vpack.c.b16 %v1687, %v1675
        %v2036 = vpack.c.b16 %v1688, %v1676
        %v2037 = vpack.c.b16 %v1701, %v1689
        %v2038 = vpack.c.b16 %v1702, %v1690
        %v2039 = vpack.c.b16 %v1703, %v1691
        %v2040 = vpack.c.b16 %v1704, %v1692
        %v2041 = vpack.c.b16 %v1705, %v1693
        %v2042 = vpack.c.b16 %v1706, %v1694
        %v2043 = vpack.c.b16 %v1707, %v1695
        %v2044 = vpack.c.b16 %v1708, %v1696
        %v2045 = vpack.c.b16 %v1709, %v1697
        %v2046 = vpack.c.b16 %v1710, %v1698
        %v2047 = vpack.c.b16 %v1711, %v1699
        %v2048 = vpack.c.b16 %v1712, %v1700
        %v2049 = vpack.c.b16 %v1725, %v1713
        %v2050 = vpack.c.b16 %v1726, %v1714
        %v2051 = vpack.c.b16 %v1727, %v1715
        %v2052 = vpack.c.b16 %v1728, %v1716
        %v2053 = vpack.c.b16 %v1729, %v1717
        %v2054 = vpack.c.b16 %v1730, %v1718
        %v2055 = vpack.c.b16 %v1731, %v1719
        %v2056 = vpack.c.b16 %v1732, %v1720
        %v2057 = vpack.c.b16 %v1733, %v1721
        %v2058 = vpack.c.b16 %v1734, %v1722
        %v2059 = vpack.c.b16 %v1735, %v1723
        %v2060 = vpack.c.b16 %v1736, %v1724
        %v2061 = vpack.c.b16 %v1749, %v1737
        %v2062 = vpack.c.b16 %v1750, %v1738
        %v2063 = vpack.c.b16 %v1751, %v1739
        %v2064 = vpack.c.b16 %v1752, %v1740
        %v2065 = vpack.c.b16 %v1753, %v1741
        %v2066 = vpack.c.b16 %v1754, %v1742
        %v2067 = vpack.c.b16 %v1755, %v1743
        %v2068 = vpack.c.b16 %v1756, %v1744
        %v2069 = vpack.c.b16 %v1757, %v1745
        %v2070 = vpack.c.b16 %v1758, %v1746
        %v2071 = vpack.c.b16 %v1759, %v1747
        %v2072 = vpack.c.b16 %v1760, %v1748
        %v2073 = vpack.c.b16 %v1773, %v1761
        %v2074 = vpack.c.b16 %v1774, %v1762
        %v2075 = vpack.c.b16 %v1775, %v1763
        %v2076 = vpack.c.b16 %v1776, %v1764
        %v2077 = vpack.c.b16 %v1777, %v1765
        %v2078 = vpack.c.b16 %v1778, %v1766
        %v2079 = vpack.c.b16 %v1779, %v1767
        %v2080 = vpack.c.b16 %v1780, %v1768
        %v2081 = vpack.c.b16 %v1781, %v1769
        %v2082 = vpack.c.b16 %v1782, %v1770
        %v2083 = vpack.c.b16 %v1783, %v1771
        %v2084 = vpack.c.b16 %v1784, %v1772
        %vm2385 = vcmask 130048
        %v2387 = vsel %vm2385, %v552, 0
        %v2390 = vsel %vm2385, %v556, 0
        %2392 = vmatpush.bf16.msra.mxu0 %v1869
        %2393 = vmatpush.bf16.msra.mxu0 %v1857
        %2394 = vmatpush.bf16.msra.mxu0 %v1845
        %2395 = vmatpush.bf16.msra.mxu0 %v1833
        %2396 = vmatpush.bf16.msra.mxu0 %v1821
        %2397 = vmatpush.bf16.msra.mxu0 %v1809
        %2398 = vmatpush.bf16.msra.mxu0 %v1797
        %2399 = vmatpush.bf16.msra.mxu0 %v1785
        %2400 = vmatmul.bf16.gmra.mxu0 %v549
        %v2401 = vpop.f32.mrf.mxu0
        %v2402 = vadd.f32 %v861, %v2401
        %v2403 = vpop.f32.mrf.mxu0
        %v2404 = vadd.f32 %v861, %v2403
        %2405 = vmatmul.bf16.gmra.mxu0 %v553
        %v2406 = vpop.f32.mrf.mxu0
        %v2407 = vadd.f32 %v861, %v2406
        %v2408 = vpop.f32.mrf.mxu0
        %v2409 = vadd.f32 %v861, %v2408
        %2410 = vdwg.mxu0
        %2411 = vmatpush.bf16.msra.mxu0 %v1965
        %2412 = vmatpush.bf16.msra.mxu0 %v1953
        %2413 = vmatpush.bf16.msra.mxu0 %v1941
        %2414 = vmatpush.bf16.msra.mxu0 %v1929
        %2415 = vmatpush.bf16.msra.mxu0 %v1917
        %2416 = vmatpush.bf16.msra.mxu0 %v1905
        %2417 = vmatpush.bf16.msra.mxu0 %v1893
        %2418 = vmatpush.bf16.msra.mxu0 %v1881
        %2419 = vmatmul.bf16.gmra.mxu0 %v550
        %v2420 = vpop.f32.mrf.mxu0
        %v2421 = vadd.f32 %v2402, %v2420
        %v2422 = vpop.f32.mrf.mxu0
        %v2423 = vadd.f32 %v2404, %v2422
        %2424 = vmatmul.bf16.gmra.mxu0 %v554
        %v2425 = vpop.f32.mrf.mxu0
        %v2426 = vadd.f32 %v2407, %v2425
        %v2427 = vpop.f32.mrf.mxu0
        %v2428 = vadd.f32 %v2409, %v2427
        %2429 = vdwg.mxu0
        %2430 = vmatpush.bf16.msra.mxu0 %v2061
        %2431 = vmatpush.bf16.msra.mxu0 %v2049
        %2432 = vmatpush.bf16.msra.mxu0 %v2037
        %2433 = vmatpush.bf16.msra.mxu0 %v2025
        %2434 = vmatpush.bf16.msra.mxu0 %v2013
        %2435 = vmatpush.bf16.msra.mxu0 %v2001
        %2436 = vmatpush.bf16.msra.mxu0 %v1989
        %2437 = vmatpush.bf16.msra.mxu0 %v1977
        %2438 = vmatmul.bf16.gmra.mxu0 %v551
        %v2439 = vpop.f32.mrf.mxu0
        %v2440 = vadd.f32 %v2421, %v2439
        %v2441 = vpop.f32.mrf.mxu0
        %v2442 = vadd.f32 %v2423, %v2441
        %2443 = vmatmul.bf16.gmra.mxu0 %v555
        %v2444 = vpop.f32.mrf.mxu0
        %v2445 = vadd.f32 %v2426, %v2444
        %v2446 = vpop.f32.mrf.mxu0
        %v2447 = vadd.f32 %v2428, %v2446
        %2448 = vdwg.mxu0
        %2449 = vmatpush.bf16.msra.mxu0 0
        %2450 = vmatpush.bf16.msra.mxu0 0
        %2451 = vmatpush.bf16.msra.mxu0 0
        %2452 = vmatpush.bf16.msra.mxu0 0
        %2453 = vmatpush.bf16.msra.mxu0 0
        %2454 = vmatpush.bf16.msra.mxu0 0
        %2455 = vmatpush.bf16.msra.mxu0 0
        %2456 = vmatpush.bf16.msra.mxu0 %v2073
        %2457 = vmatmul.bf16.gmra.mxu0 %v2387
        %v2458 = vpop.f32.mrf.mxu0
        %v2459 = vadd.f32 %v2440, %v2458
        %v2460 = vpop.f32.mrf.mxu0
        %v2461 = vadd.f32 %v2442, %v2460
        %2462 = vmatmul.bf16.gmra.mxu0 %v2390
        %v2463 = vpop.f32.mrf.mxu0
        %v2464 = vadd.f32 %v2445, %v2463
        %v2465 = vpop.f32.mrf.mxu0
        %v2466 = vadd.f32 %v2447, %v2465
        %2467 = vdwg.mxu0
        %2468 = vmatpush.bf16.msra.mxu0 %v1870
        %2469 = vmatpush.bf16.msra.mxu0 %v1858
        %2470 = vmatpush.bf16.msra.mxu0 %v1846
        %2471 = vmatpush.bf16.msra.mxu0 %v1834
        %2472 = vmatpush.bf16.msra.mxu0 %v1822
        %2473 = vmatpush.bf16.msra.mxu0 %v1810
        %2474 = vmatpush.bf16.msra.mxu0 %v1798
        %2475 = vmatpush.bf16.msra.mxu0 %v1786
        %2476 = vmatmul.bf16.gmra.mxu0 %v549
        %v2477 = vpop.f32.mrf.mxu0
        %v2478 = vadd.f32 %v862, %v2477
        %v2479 = vpop.f32.mrf.mxu0
        %v2480 = vadd.f32 %v862, %v2479
        %2481 = vmatmul.bf16.gmra.mxu0 %v553
        %v2482 = vpop.f32.mrf.mxu0
        %v2483 = vadd.f32 %v862, %v2482
        %v2484 = vpop.f32.mrf.mxu0
        %v2485 = vadd.f32 %v862, %v2484
        %2486 = vdwg.mxu0
        %2487 = vmatpush.bf16.msra.mxu0 %v1966
        %2488 = vmatpush.bf16.msra.mxu0 %v1954
        %2489 = vmatpush.bf16.msra.mxu0 %v1942
        %2490 = vmatpush.bf16.msra.mxu0 %v1930
        %2491 = vmatpush.bf16.msra.mxu0 %v1918
        %2492 = vmatpush.bf16.msra.mxu0 %v1906
        %2493 = vmatpush.bf16.msra.mxu0 %v1894
        %2494 = vmatpush.bf16.msra.mxu0 %v1882
        %2495 = vmatmul.bf16.gmra.mxu0 %v550
        %v2496 = vpop.f32.mrf.mxu0
        %v2497 = vadd.f32 %v2478, %v2496
        %v2498 = vpop.f32.mrf.mxu0
        %v2499 = vadd.f32 %v2480, %v2498
        %2500 = vmatmul.bf16.gmra.mxu0 %v554
        %v2501 = vpop.f32.mrf.mxu0
        %v2502 = vadd.f32 %v2483, %v2501
        %v2503 = vpop.f32.mrf.mxu0
        %v2504 = vadd.f32 %v2485, %v2503
        %2505 = vdwg.mxu0
        %2506 = vmatpush.bf16.msra.mxu0 %v2062
        %2507 = vmatpush.bf16.msra.mxu0 %v2050
        %2508 = vmatpush.bf16.msra.mxu0 %v2038
        %2509 = vmatpush.bf16.msra.mxu0 %v2026
        %2510 = vmatpush.bf16.msra.mxu0 %v2014
        %2511 = vmatpush.bf16.msra.mxu0 %v2002
        %2512 = vmatpush.bf16.msra.mxu0 %v1990
        %2513 = vmatpush.bf16.msra.mxu0 %v1978
        %2514 = vmatmul.bf16.gmra.mxu0 %v551
        %v2515 = vpop.f32.mrf.mxu0
        %v2516 = vadd.f32 %v2497, %v2515
        %v2517 = vpop.f32.mrf.mxu0
        %v2518 = vadd.f32 %v2499, %v2517
        %2519 = vmatmul.bf16.gmra.mxu0 %v555
        %v2520 = vpop.f32.mrf.mxu0
        %v2521 = vadd.f32 %v2502, %v2520
        %v2522 = vpop.f32.mrf.mxu0
        %v2523 = vadd.f32 %v2504, %v2522
        %2524 = vdwg.mxu0
        %2525 = vmatpush.bf16.msra.mxu0 0
        %2526 = vmatpush.bf16.msra.mxu0 0
        %2527 = vmatpush.bf16.msra.mxu0 0
        %2528 = vmatpush.bf16.msra.mxu0 0
        %2529 = vmatpush.bf16.msra.mxu0 0
        %2530 = vmatpush.bf16.msra.mxu0 0
        %2531 = vmatpush.bf16.msra.mxu0 0
        %2532 = vmatpush.bf16.msra.mxu0 %v2074
        %2533 = vmatmul.bf16.gmra.mxu0 %v2387
        %v2534 = vpop.f32.mrf.mxu0
        %v2535 = vadd.f32 %v2516, %v2534
        %v2536 = vpop.f32.mrf.mxu0
        %v2537 = vadd.f32 %v2518, %v2536
        %2538 = vmatmul.bf16.gmra.mxu0 %v2390
        %v2539 = vpop.f32.mrf.mxu0
        %v2540 = vadd.f32 %v2521, %v2539
        %v2541 = vpop.f32.mrf.mxu0
        %v2542 = vadd.f32 %v2523, %v2541
        %2543 = vdwg.mxu0
        %2544 = vmatpush.bf16.msra.mxu0 %v1871
        %2545 = vmatpush.bf16.msra.mxu0 %v1859
        %2546 = vmatpush.bf16.msra.mxu0 %v1847
        %2547 = vmatpush.bf16.msra.mxu0 %v1835
        %2548 = vmatpush.bf16.msra.mxu0 %v1823
        %2549 = vmatpush.bf16.msra.mxu0 %v1811
        %2550 = vmatpush.bf16.msra.mxu0 %v1799
        %2551 = vmatpush.bf16.msra.mxu0 %v1787
        %2552 = vmatmul.bf16.gmra.mxu0 %v549
        %v2553 = vpop.f32.mrf.mxu0
        %v2554 = vadd.f32 %v863, %v2553
        %v2555 = vpop.f32.mrf.mxu0
        %v2556 = vadd.f32 %v863, %v2555
        %2557 = vmatmul.bf16.gmra.mxu0 %v553
        %v2558 = vpop.f32.mrf.mxu0
        %v2559 = vadd.f32 %v863, %v2558
        %v2560 = vpop.f32.mrf.mxu0
        %v2561 = vadd.f32 %v863, %v2560
        %2562 = vdwg.mxu0
        %2563 = vmatpush.bf16.msra.mxu0 %v1967
        %2564 = vmatpush.bf16.msra.mxu0 %v1955
        %2565 = vmatpush.bf16.msra.mxu0 %v1943
        %2566 = vmatpush.bf16.msra.mxu0 %v1931
        %2567 = vmatpush.bf16.msra.mxu0 %v1919
        %2568 = vmatpush.bf16.msra.mxu0 %v1907
        %2569 = vmatpush.bf16.msra.mxu0 %v1895
        %2570 = vmatpush.bf16.msra.mxu0 %v1883
        %2571 = vmatmul.bf16.gmra.mxu0 %v550
        %v2572 = vpop.f32.mrf.mxu0
        %v2573 = vadd.f32 %v2554, %v2572
        %v2574 = vpop.f32.mrf.mxu0
        %v2575 = vadd.f32 %v2556, %v2574
        %2576 = vmatmul.bf16.gmra.mxu0 %v554
        %v2577 = vpop.f32.mrf.mxu0
        %v2578 = vadd.f32 %v2559, %v2577
        %v2579 = vpop.f32.mrf.mxu0
        %v2580 = vadd.f32 %v2561, %v2579
        %2581 = vdwg.mxu0
        %2582 = vmatpush.bf16.msra.mxu0 %v2063
        %2583 = vmatpush.bf16.msra.mxu0 %v2051
        %2584 = vmatpush.bf16.msra.mxu0 %v2039
        %2585 = vmatpush.bf16.msra.mxu0 %v2027
        %2586 = vmatpush.bf16.msra.mxu0 %v2015
        %2587 = vmatpush.bf16.msra.mxu0 %v2003
        %2588 = vmatpush.bf16.msra.mxu0 %v1991
        %2589 = vmatpush.bf16.msra.mxu0 %v1979
        %2590 = vmatmul.bf16.gmra.mxu0 %v551
        %v2591 = vpop.f32.mrf.mxu0
        %v2592 = vadd.f32 %v2573, %v2591
        %v2593 = vpop.f32.mrf.mxu0
        %v2594 = vadd.f32 %v2575, %v2593
        %2595 = vmatmul.bf16.gmra.mxu0 %v555
        %v2596 = vpop.f32.mrf.mxu0
        %v2597 = vadd.f32 %v2578, %v2596
        %v2598 = vpop.f32.mrf.mxu0
        %v2599 = vadd.f32 %v2580, %v2598
        %2600 = vdwg.mxu0
        %2601 = vmatpush.bf16.msra.mxu0 0
        %2602 = vmatpush.bf16.msra.mxu0 0
        %2603 = vmatpush.bf16.msra.mxu0 0
        %2604 = vmatpush.bf16.msra.mxu0 0
        %2605 = vmatpush.bf16.msra.mxu0 0
        %2606 = vmatpush.bf16.msra.mxu0 0
        %2607 = vmatpush.bf16.msra.mxu0 0
        %2608 = vmatpush.bf16.msra.mxu0 %v2075
        %2609 = vmatmul.bf16.gmra.mxu0 %v2387
        %v2610 = vpop.f32.mrf.mxu0
        %v2611 = vadd.f32 %v2592, %v2610
        %v2612 = vpop.f32.mrf.mxu0
        %v2613 = vadd.f32 %v2594, %v2612
        %2614 = vmatmul.bf16.gmra.mxu0 %v2390
        %v2615 = vpop.f32.mrf.mxu0
        %v2616 = vadd.f32 %v2597, %v2615
        %v2617 = vpop.f32.mrf.mxu0
        %v2618 = vadd.f32 %v2599, %v2617
        %2619 = vdwg.mxu0
        %2620 = vmatpush.bf16.msra.mxu0 %v1872
        %2621 = vmatpush.bf16.msra.mxu0 %v1860
        %2622 = vmatpush.bf16.msra.mxu0 %v1848
        %2623 = vmatpush.bf16.msra.mxu0 %v1836
        %2624 = vmatpush.bf16.msra.mxu0 %v1824
        %2625 = vmatpush.bf16.msra.mxu0 %v1812
        %2626 = vmatpush.bf16.msra.mxu0 %v1800
        %2627 = vmatpush.bf16.msra.mxu0 %v1788
        %2628 = vmatmul.bf16.gmra.mxu0 %v549
        %v2629 = vpop.f32.mrf.mxu0
        %v2630 = vadd.f32 %v864, %v2629
        %v2631 = vpop.f32.mrf.mxu0
        %v2632 = vadd.f32 %v864, %v2631
        %2633 = vmatmul.bf16.gmra.mxu0 %v553
        %v2634 = vpop.f32.mrf.mxu0
        %v2635 = vadd.f32 %v864, %v2634
        %v2636 = vpop.f32.mrf.mxu0
        %v2637 = vadd.f32 %v864, %v2636
        %2638 = vdwg.mxu0
        %2639 = vmatpush.bf16.msra.mxu0 %v1968
        %2640 = vmatpush.bf16.msra.mxu0 %v1956
        %2641 = vmatpush.bf16.msra.mxu0 %v1944
        %2642 = vmatpush.bf16.msra.mxu0 %v1932
        %2643 = vmatpush.bf16.msra.mxu0 %v1920
        %2644 = vmatpush.bf16.msra.mxu0 %v1908
        %2645 = vmatpush.bf16.msra.mxu0 %v1896
        %2646 = vmatpush.bf16.msra.mxu0 %v1884
        %2647 = vmatmul.bf16.gmra.mxu0 %v550
        %v2648 = vpop.f32.mrf.mxu0
        %v2649 = vadd.f32 %v2630, %v2648
        %v2650 = vpop.f32.mrf.mxu0
        %v2651 = vadd.f32 %v2632, %v2650
        %2652 = vmatmul.bf16.gmra.mxu0 %v554
        %v2653 = vpop.f32.mrf.mxu0
        %v2654 = vadd.f32 %v2635, %v2653
        %v2655 = vpop.f32.mrf.mxu0
        %v2656 = vadd.f32 %v2637, %v2655
        %2657 = vdwg.mxu0
        %2658 = vmatpush.bf16.msra.mxu0 %v2064
        %2659 = vmatpush.bf16.msra.mxu0 %v2052
        %2660 = vmatpush.bf16.msra.mxu0 %v2040
        %2661 = vmatpush.bf16.msra.mxu0 %v2028
        %2662 = vmatpush.bf16.msra.mxu0 %v2016
        %2663 = vmatpush.bf16.msra.mxu0 %v2004
        %2664 = vmatpush.bf16.msra.mxu0 %v1992
        %2665 = vmatpush.bf16.msra.mxu0 %v1980
        %2666 = vmatmul.bf16.gmra.mxu0 %v551
        %v2667 = vpop.f32.mrf.mxu0
        %v2668 = vadd.f32 %v2649, %v2667
        %v2669 = vpop.f32.mrf.mxu0
        %v2670 = vadd.f32 %v2651, %v2669
        %2671 = vmatmul.bf16.gmra.mxu0 %v555
        %v2672 = vpop.f32.mrf.mxu0
        %v2673 = vadd.f32 %v2654, %v2672
        %v2674 = vpop.f32.mrf.mxu0
        %v2675 = vadd.f32 %v2656, %v2674
        %2676 = vdwg.mxu0
        %2677 = vmatpush.bf16.msra.mxu0 0
        %2678 = vmatpush.bf16.msra.mxu0 0
        %2679 = vmatpush.bf16.msra.mxu0 0
        %2680 = vmatpush.bf16.msra.mxu0 0
        %2681 = vmatpush.bf16.msra.mxu0 0
        %2682 = vmatpush.bf16.msra.mxu0 0
        %2683 = vmatpush.bf16.msra.mxu0 0
        %2684 = vmatpush.bf16.msra.mxu0 %v2076
        %2685 = vmatmul.bf16.gmra.mxu0 %v2387
        %v2686 = vpop.f32.mrf.mxu0
        %v2687 = vadd.f32 %v2668, %v2686
        %v2688 = vpop.f32.mrf.mxu0
        %v2689 = vadd.f32 %v2670, %v2688
        %2690 = vmatmul.bf16.gmra.mxu0 %v2390
        %v2691 = vpop.f32.mrf.mxu0
        %v2692 = vadd.f32 %v2673, %v2691
        %v2693 = vpop.f32.mrf.mxu0
        %v2694 = vadd.f32 %v2675, %v2693
        %2695 = vdwg.mxu0
        %2696 = vmatpush.bf16.msra.mxu0 %v1873
        %2697 = vmatpush.bf16.msra.mxu0 %v1861
        %2698 = vmatpush.bf16.msra.mxu0 %v1849
        %2699 = vmatpush.bf16.msra.mxu0 %v1837
        %2700 = vmatpush.bf16.msra.mxu0 %v1825
        %2701 = vmatpush.bf16.msra.mxu0 %v1813
        %2702 = vmatpush.bf16.msra.mxu0 %v1801
        %2703 = vmatpush.bf16.msra.mxu0 %v1789
        %2704 = vmatmul.bf16.gmra.mxu0 %v549
        %v2705 = vpop.f32.mrf.mxu0
        %v2706 = vadd.f32 %v865, %v2705
        %v2707 = vpop.f32.mrf.mxu0
        %v2708 = vadd.f32 %v865, %v2707
        %2709 = vmatmul.bf16.gmra.mxu0 %v553
        %v2710 = vpop.f32.mrf.mxu0
        %v2711 = vadd.f32 %v865, %v2710
        %v2712 = vpop.f32.mrf.mxu0
        %v2713 = vadd.f32 %v865, %v2712
        %2714 = vdwg.mxu0
        %2715 = vmatpush.bf16.msra.mxu0 %v1969
        %2716 = vmatpush.bf16.msra.mxu0 %v1957
        %2717 = vmatpush.bf16.msra.mxu0 %v1945
        %2718 = vmatpush.bf16.msra.mxu0 %v1933
        %2719 = vmatpush.bf16.msra.mxu0 %v1921
        %2720 = vmatpush.bf16.msra.mxu0 %v1909
        %2721 = vmatpush.bf16.msra.mxu0 %v1897
        %2722 = vmatpush.bf16.msra.mxu0 %v1885
        %2723 = vmatmul.bf16.gmra.mxu0 %v550
        %v2724 = vpop.f32.mrf.mxu0
        %v2725 = vadd.f32 %v2706, %v2724
        %v2726 = vpop.f32.mrf.mxu0
        %v2727 = vadd.f32 %v2708, %v2726
        %2728 = vmatmul.bf16.gmra.mxu0 %v554
        %v2729 = vpop.f32.mrf.mxu0
        %v2730 = vadd.f32 %v2711, %v2729
        %v2731 = vpop.f32.mrf.mxu0
        %v2732 = vadd.f32 %v2713, %v2731
        %2733 = vdwg.mxu0
        %2734 = vmatpush.bf16.msra.mxu0 %v2065
        %2735 = vmatpush.bf16.msra.mxu0 %v2053
        %2736 = vmatpush.bf16.msra.mxu0 %v2041
        %2737 = vmatpush.bf16.msra.mxu0 %v2029
        %2738 = vmatpush.bf16.msra.mxu0 %v2017
        %2739 = vmatpush.bf16.msra.mxu0 %v2005
        %2740 = vmatpush.bf16.msra.mxu0 %v1993
        %2741 = vmatpush.bf16.msra.mxu0 %v1981
        %2742 = vmatmul.bf16.gmra.mxu0 %v551
        %v2743 = vpop.f32.mrf.mxu0
        %v2744 = vadd.f32 %v2725, %v2743
        %v2745 = vpop.f32.mrf.mxu0
        %v2746 = vadd.f32 %v2727, %v2745
        %2747 = vmatmul.bf16.gmra.mxu0 %v555
        %v2748 = vpop.f32.mrf.mxu0
        %v2749 = vadd.f32 %v2730, %v2748
        %v2750 = vpop.f32.mrf.mxu0
        %v2751 = vadd.f32 %v2732, %v2750
        %2752 = vdwg.mxu0
        %2753 = vmatpush.bf16.msra.mxu0 0
        %2754 = vmatpush.bf16.msra.mxu0 0
        %2755 = vmatpush.bf16.msra.mxu0 0
        %2756 = vmatpush.bf16.msra.mxu0 0
        %2757 = vmatpush.bf16.msra.mxu0 0
        %2758 = vmatpush.bf16.msra.mxu0 0
        %2759 = vmatpush.bf16.msra.mxu0 0
        %2760 = vmatpush.bf16.msra.mxu0 %v2077
        %2761 = vmatmul.bf16.gmra.mxu0 %v2387
        %v2762 = vpop.f32.mrf.mxu0
        %v2763 = vadd.f32 %v2744, %v2762
        %v2764 = vpop.f32.mrf.mxu0
        %v2765 = vadd.f32 %v2746, %v2764
        %2766 = vmatmul.bf16.gmra.mxu0 %v2390
        %v2767 = vpop.f32.mrf.mxu0
        %v2768 = vadd.f32 %v2749, %v2767
        %v2769 = vpop.f32.mrf.mxu0
        %v2770 = vadd.f32 %v2751, %v2769
        %2771 = vdwg.mxu0
        %2772 = vmatpush.bf16.msra.mxu0 %v1874
        %2773 = vmatpush.bf16.msra.mxu0 %v1862
        %2774 = vmatpush.bf16.msra.mxu0 %v1850
        %2775 = vmatpush.bf16.msra.mxu0 %v1838
        %2776 = vmatpush.bf16.msra.mxu0 %v1826
        %2777 = vmatpush.bf16.msra.mxu0 %v1814
        %2778 = vmatpush.bf16.msra.mxu0 %v1802
        %2779 = vmatpush.bf16.msra.mxu0 %v1790
        %2780 = vmatmul.bf16.gmra.mxu0 %v549
        %v2781 = vpop.f32.mrf.mxu0
        %v2782 = vadd.f32 %v866, %v2781
        %v2783 = vpop.f32.mrf.mxu0
        %v2784 = vadd.f32 %v866, %v2783
        %2785 = vmatmul.bf16.gmra.mxu0 %v553
        %v2786 = vpop.f32.mrf.mxu0
        %v2787 = vadd.f32 %v866, %v2786
        %v2788 = vpop.f32.mrf.mxu0
        %v2789 = vadd.f32 %v866, %v2788
        %2790 = vdwg.mxu0
        %2791 = vmatpush.bf16.msra.mxu0 %v1970
        %2792 = vmatpush.bf16.msra.mxu0 %v1958
        %2793 = vmatpush.bf16.msra.mxu0 %v1946
        %2794 = vmatpush.bf16.msra.mxu0 %v1934
        %2795 = vmatpush.bf16.msra.mxu0 %v1922
        %2796 = vmatpush.bf16.msra.mxu0 %v1910
        %2797 = vmatpush.bf16.msra.mxu0 %v1898
        %2798 = vmatpush.bf16.msra.mxu0 %v1886
        %2799 = vmatmul.bf16.gmra.mxu0 %v550
        %v2800 = vpop.f32.mrf.mxu0
        %v2801 = vadd.f32 %v2782, %v2800
        %v2802 = vpop.f32.mrf.mxu0
        %v2803 = vadd.f32 %v2784, %v2802
        %2804 = vmatmul.bf16.gmra.mxu0 %v554
        %v2805 = vpop.f32.mrf.mxu0
        %v2806 = vadd.f32 %v2787, %v2805
        %v2807 = vpop.f32.mrf.mxu0
        %v2808 = vadd.f32 %v2789, %v2807
        %2809 = vdwg.mxu0
        %2810 = vmatpush.bf16.msra.mxu0 %v2066
        %2811 = vmatpush.bf16.msra.mxu0 %v2054
        %2812 = vmatpush.bf16.msra.mxu0 %v2042
        %2813 = vmatpush.bf16.msra.mxu0 %v2030
        %2814 = vmatpush.bf16.msra.mxu0 %v2018
        %2815 = vmatpush.bf16.msra.mxu0 %v2006
        %2816 = vmatpush.bf16.msra.mxu0 %v1994
        %2817 = vmatpush.bf16.msra.mxu0 %v1982
        %2818 = vmatmul.bf16.gmra.mxu0 %v551
        %v2819 = vpop.f32.mrf.mxu0
        %v2820 = vadd.f32 %v2801, %v2819
        %v2821 = vpop.f32.mrf.mxu0
        %v2822 = vadd.f32 %v2803, %v2821
        %2823 = vmatmul.bf16.gmra.mxu0 %v555
        %v2824 = vpop.f32.mrf.mxu0
        %v2825 = vadd.f32 %v2806, %v2824
        %v2826 = vpop.f32.mrf.mxu0
        %v2827 = vadd.f32 %v2808, %v2826
        %2828 = vdwg.mxu0
        %2829 = vmatpush.bf16.msra.mxu0 0
        %2830 = vmatpush.bf16.msra.mxu0 0
        %2831 = vmatpush.bf16.msra.mxu0 0
        %2832 = vmatpush.bf16.msra.mxu0 0
        %2833 = vmatpush.bf16.msra.mxu0 0
        %2834 = vmatpush.bf16.msra.mxu0 0
        %2835 = vmatpush.bf16.msra.mxu0 0
        %2836 = vmatpush.bf16.msra.mxu0 %v2078
        %2837 = vmatmul.bf16.gmra.mxu0 %v2387
        %v2838 = vpop.f32.mrf.mxu0
        %v2839 = vadd.f32 %v2820, %v2838
        %v2840 = vpop.f32.mrf.mxu0
        %v2841 = vadd.f32 %v2822, %v2840
        %2842 = vmatmul.bf16.gmra.mxu0 %v2390
        %v2843 = vpop.f32.mrf.mxu0
        %v2844 = vadd.f32 %v2825, %v2843
        %v2845 = vpop.f32.mrf.mxu0
        %v2846 = vadd.f32 %v2827, %v2845
        %2847 = vdwg.mxu0
        %2848 = vmatpush.bf16.msra.mxu0 %v1875
        %2849 = vmatpush.bf16.msra.mxu0 %v1863
        %2850 = vmatpush.bf16.msra.mxu0 %v1851
        %2851 = vmatpush.bf16.msra.mxu0 %v1839
        %2852 = vmatpush.bf16.msra.mxu0 %v1827
        %2853 = vmatpush.bf16.msra.mxu0 %v1815
        %2854 = vmatpush.bf16.msra.mxu0 %v1803
        %2855 = vmatpush.bf16.msra.mxu0 %v1791
        %2856 = vmatmul.bf16.gmra.mxu0 %v549
        %v2857 = vpop.f32.mrf.mxu0
        %v2858 = vadd.f32 %v867, %v2857
        %v2859 = vpop.f32.mrf.mxu0
        %v2860 = vadd.f32 %v867, %v2859
        %2861 = vmatmul.bf16.gmra.mxu0 %v553
        %v2862 = vpop.f32.mrf.mxu0
        %v2863 = vadd.f32 %v867, %v2862
        %v2864 = vpop.f32.mrf.mxu0
        %v2865 = vadd.f32 %v867, %v2864
        %2866 = vdwg.mxu0
        %2867 = vmatpush.bf16.msra.mxu0 %v1971
        %2868 = vmatpush.bf16.msra.mxu0 %v1959
        %2869 = vmatpush.bf16.msra.mxu0 %v1947
        %2870 = vmatpush.bf16.msra.mxu0 %v1935
        %2871 = vmatpush.bf16.msra.mxu0 %v1923
        %2872 = vmatpush.bf16.msra.mxu0 %v1911
        %2873 = vmatpush.bf16.msra.mxu0 %v1899
        %2874 = vmatpush.bf16.msra.mxu0 %v1887
        %2875 = vmatmul.bf16.gmra.mxu0 %v550
        %v2876 = vpop.f32.mrf.mxu0
        %v2877 = vadd.f32 %v2858, %v2876
        %v2878 = vpop.f32.mrf.mxu0
        %v2879 = vadd.f32 %v2860, %v2878
        %2880 = vmatmul.bf16.gmra.mxu0 %v554
        %v2881 = vpop.f32.mrf.mxu0
        %v2882 = vadd.f32 %v2863, %v2881
        %v2883 = vpop.f32.mrf.mxu0
        %v2884 = vadd.f32 %v2865, %v2883
        %2885 = vdwg.mxu0
        %2886 = vmatpush.bf16.msra.mxu0 %v2067
        %2887 = vmatpush.bf16.msra.mxu0 %v2055
        %2888 = vmatpush.bf16.msra.mxu0 %v2043
        %2889 = vmatpush.bf16.msra.mxu0 %v2031
        %2890 = vmatpush.bf16.msra.mxu0 %v2019
        %2891 = vmatpush.bf16.msra.mxu0 %v2007
        %2892 = vmatpush.bf16.msra.mxu0 %v1995
        %2893 = vmatpush.bf16.msra.mxu0 %v1983
        %2894 = vmatmul.bf16.gmra.mxu0 %v551
        %v2895 = vpop.f32.mrf.mxu0
        %v2896 = vadd.f32 %v2877, %v2895
        %v2897 = vpop.f32.mrf.mxu0
        %v2898 = vadd.f32 %v2879, %v2897
        %2899 = vmatmul.bf16.gmra.mxu0 %v555
        %v2900 = vpop.f32.mrf.mxu0
        %v2901 = vadd.f32 %v2882, %v2900
        %v2902 = vpop.f32.mrf.mxu0
        %v2903 = vadd.f32 %v2884, %v2902
        %2904 = vdwg.mxu0
        %2905 = vmatpush.bf16.msra.mxu0 0
        %2906 = vmatpush.bf16.msra.mxu0 0
        %2907 = vmatpush.bf16.msra.mxu0 0
        %2908 = vmatpush.bf16.msra.mxu0 0
        %2909 = vmatpush.bf16.msra.mxu0 0
        %2910 = vmatpush.bf16.msra.mxu0 0
        %2911 = vmatpush.bf16.msra.mxu0 0
        %2912 = vmatpush.bf16.msra.mxu0 %v2079
        %2913 = vmatmul.bf16.gmra.mxu0 %v2387
        %v2914 = vpop.f32.mrf.mxu0
        %v2915 = vadd.f32 %v2896, %v2914
        %v2916 = vpop.f32.mrf.mxu0
        %v2917 = vadd.f32 %v2898, %v2916
        %2918 = vmatmul.bf16.gmra.mxu0 %v2390
        %v2919 = vpop.f32.mrf.mxu0
        %v2920 = vadd.f32 %v2901, %v2919
        %v2921 = vpop.f32.mrf.mxu0
        %v2922 = vadd.f32 %v2903, %v2921
        %2923 = vdwg.mxu0
        %2924 = vmatpush.bf16.msra.mxu0 %v1876
        %2925 = vmatpush.bf16.msra.mxu0 %v1864
        %2926 = vmatpush.bf16.msra.mxu0 %v1852
        %2927 = vmatpush.bf16.msra.mxu0 %v1840
        %2928 = vmatpush.bf16.msra.mxu0 %v1828
        %2929 = vmatpush.bf16.msra.mxu0 %v1816
        %2930 = vmatpush.bf16.msra.mxu0 %v1804
        %2931 = vmatpush.bf16.msra.mxu0 %v1792
        %2932 = vmatmul.bf16.gmra.mxu0 %v549
        %v2933 = vpop.f32.mrf.mxu0
        %v2934 = vadd.f32 %v868, %v2933
        %v2935 = vpop.f32.mrf.mxu0
        %v2936 = vadd.f32 %v868, %v2935
        %2937 = vmatmul.bf16.gmra.mxu0 %v553
        %v2938 = vpop.f32.mrf.mxu0
        %v2939 = vadd.f32 %v868, %v2938
        %v2940 = vpop.f32.mrf.mxu0
        %v2941 = vadd.f32 %v868, %v2940
        %2942 = vdwg.mxu0
        %2943 = vmatpush.bf16.msra.mxu0 %v1972
        %2944 = vmatpush.bf16.msra.mxu0 %v1960
        %2945 = vmatpush.bf16.msra.mxu0 %v1948
        %2946 = vmatpush.bf16.msra.mxu0 %v1936
        %2947 = vmatpush.bf16.msra.mxu0 %v1924
        %2948 = vmatpush.bf16.msra.mxu0 %v1912
        %2949 = vmatpush.bf16.msra.mxu0 %v1900
        %2950 = vmatpush.bf16.msra.mxu0 %v1888
        %2951 = vmatmul.bf16.gmra.mxu0 %v550
        %v2952 = vpop.f32.mrf.mxu0
        %v2953 = vadd.f32 %v2934, %v2952
        %v2954 = vpop.f32.mrf.mxu0
        %v2955 = vadd.f32 %v2936, %v2954
        %2956 = vmatmul.bf16.gmra.mxu0 %v554
        %v2957 = vpop.f32.mrf.mxu0
        %v2958 = vadd.f32 %v2939, %v2957
        %v2959 = vpop.f32.mrf.mxu0
        %v2960 = vadd.f32 %v2941, %v2959
        %2961 = vdwg.mxu0
        %2962 = vmatpush.bf16.msra.mxu0 %v2068
        %2963 = vmatpush.bf16.msra.mxu0 %v2056
        %2964 = vmatpush.bf16.msra.mxu0 %v2044
        %2965 = vmatpush.bf16.msra.mxu0 %v2032
        %2966 = vmatpush.bf16.msra.mxu0 %v2020
        %2967 = vmatpush.bf16.msra.mxu0 %v2008
        %2968 = vmatpush.bf16.msra.mxu0 %v1996
        %2969 = vmatpush.bf16.msra.mxu0 %v1984
        %2970 = vmatmul.bf16.gmra.mxu0 %v551
        %v2971 = vpop.f32.mrf.mxu0
        %v2972 = vadd.f32 %v2953, %v2971
        %v2973 = vpop.f32.mrf.mxu0
        %v2974 = vadd.f32 %v2955, %v2973
        %2975 = vmatmul.bf16.gmra.mxu0 %v555
        %v2976 = vpop.f32.mrf.mxu0
        %v2977 = vadd.f32 %v2958, %v2976
        %v2978 = vpop.f32.mrf.mxu0
        %v2979 = vadd.f32 %v2960, %v2978
        %2980 = vdwg.mxu0
        %2981 = vmatpush.bf16.msra.mxu0 0
        %2982 = vmatpush.bf16.msra.mxu0 0
        %2983 = vmatpush.bf16.msra.mxu0 0
        %2984 = vmatpush.bf16.msra.mxu0 0
        %2985 = vmatpush.bf16.msra.mxu0 0
        %2986 = vmatpush.bf16.msra.mxu0 0
        %2987 = vmatpush.bf16.msra.mxu0 0
        %2988 = vmatpush.bf16.msra.mxu0 %v2080
        %2989 = vmatmul.bf16.gmra.mxu0 %v2387
        %v2990 = vpop.f32.mrf.mxu0
        %v2991 = vadd.f32 %v2972, %v2990
        %v2992 = vpop.f32.mrf.mxu0
        %v2993 = vadd.f32 %v2974, %v2992
        %2994 = vmatmul.bf16.gmra.mxu0 %v2390
        %v2995 = vpop.f32.mrf.mxu0
        %v2996 = vadd.f32 %v2977, %v2995
        %v2997 = vpop.f32.mrf.mxu0
        %v2998 = vadd.f32 %v2979, %v2997
        %2999 = vdwg.mxu0
        %3000 = vmatpush.bf16.msra.mxu0 %v1877
        %3001 = vmatpush.bf16.msra.mxu0 %v1865
        %3002 = vmatpush.bf16.msra.mxu0 %v1853
        %3003 = vmatpush.bf16.msra.mxu0 %v1841
        %3004 = vmatpush.bf16.msra.mxu0 %v1829
        %3005 = vmatpush.bf16.msra.mxu0 %v1817
        %3006 = vmatpush.bf16.msra.mxu0 %v1805
        %3007 = vmatpush.bf16.msra.mxu0 %v1793
        %3008 = vmatmul.bf16.gmra.mxu0 %v549
        %v3009 = vpop.f32.mrf.mxu0
        %v3010 = vadd.f32 %v869, %v3009
        %v3011 = vpop.f32.mrf.mxu0
        %v3012 = vadd.f32 %v869, %v3011
        %3013 = vmatmul.bf16.gmra.mxu0 %v553
        %v3014 = vpop.f32.mrf.mxu0
        %v3015 = vadd.f32 %v869, %v3014
        %v3016 = vpop.f32.mrf.mxu0
        %v3017 = vadd.f32 %v869, %v3016
        %3018 = vdwg.mxu0
        %3019 = vmatpush.bf16.msra.mxu0 %v1973
        %3020 = vmatpush.bf16.msra.mxu0 %v1961
        %3021 = vmatpush.bf16.msra.mxu0 %v1949
        %3022 = vmatpush.bf16.msra.mxu0 %v1937
        %3023 = vmatpush.bf16.msra.mxu0 %v1925
        %3024 = vmatpush.bf16.msra.mxu0 %v1913
        %3025 = vmatpush.bf16.msra.mxu0 %v1901
        %3026 = vmatpush.bf16.msra.mxu0 %v1889
        %3027 = vmatmul.bf16.gmra.mxu0 %v550
        %v3028 = vpop.f32.mrf.mxu0
        %v3029 = vadd.f32 %v3010, %v3028
        %v3030 = vpop.f32.mrf.mxu0
        %v3031 = vadd.f32 %v3012, %v3030
        %3032 = vmatmul.bf16.gmra.mxu0 %v554
        %v3033 = vpop.f32.mrf.mxu0
        %v3034 = vadd.f32 %v3015, %v3033
        %v3035 = vpop.f32.mrf.mxu0
        %v3036 = vadd.f32 %v3017, %v3035
        %3037 = vdwg.mxu0
        %3038 = vmatpush.bf16.msra.mxu0 %v2069
        %3039 = vmatpush.bf16.msra.mxu0 %v2057
        %3040 = vmatpush.bf16.msra.mxu0 %v2045
        %3041 = vmatpush.bf16.msra.mxu0 %v2033
        %3042 = vmatpush.bf16.msra.mxu0 %v2021
        %3043 = vmatpush.bf16.msra.mxu0 %v2009
        %3044 = vmatpush.bf16.msra.mxu0 %v1997
        %3045 = vmatpush.bf16.msra.mxu0 %v1985
        %3046 = vmatmul.bf16.gmra.mxu0 %v551
        %v3047 = vpop.f32.mrf.mxu0
        %v3048 = vadd.f32 %v3029, %v3047
        %v3049 = vpop.f32.mrf.mxu0
        %v3050 = vadd.f32 %v3031, %v3049
        %3051 = vmatmul.bf16.gmra.mxu0 %v555
        %v3052 = vpop.f32.mrf.mxu0
        %v3053 = vadd.f32 %v3034, %v3052
        %v3054 = vpop.f32.mrf.mxu0
        %v3055 = vadd.f32 %v3036, %v3054
        %3056 = vdwg.mxu0
        %3057 = vmatpush.bf16.msra.mxu0 0
        %3058 = vmatpush.bf16.msra.mxu0 0
        %3059 = vmatpush.bf16.msra.mxu0 0
        %3060 = vmatpush.bf16.msra.mxu0 0
        %3061 = vmatpush.bf16.msra.mxu0 0
        %3062 = vmatpush.bf16.msra.mxu0 0
        %3063 = vmatpush.bf16.msra.mxu0 0
        %3064 = vmatpush.bf16.msra.mxu0 %v2081
        %3065 = vmatmul.bf16.gmra.mxu0 %v2387
        %v3066 = vpop.f32.mrf.mxu0
        %v3067 = vadd.f32 %v3048, %v3066
        %v3068 = vpop.f32.mrf.mxu0
        %v3069 = vadd.f32 %v3050, %v3068
        %3070 = vmatmul.bf16.gmra.mxu0 %v2390
        %v3071 = vpop.f32.mrf.mxu0
        %v3072 = vadd.f32 %v3053, %v3071
        %v3073 = vpop.f32.mrf.mxu0
        %v3074 = vadd.f32 %v3055, %v3073
        %3075 = vdwg.mxu0
        %3076 = vmatpush.bf16.msra.mxu0 %v1878
        %3077 = vmatpush.bf16.msra.mxu0 %v1866
        %3078 = vmatpush.bf16.msra.mxu0 %v1854
        %3079 = vmatpush.bf16.msra.mxu0 %v1842
        %3080 = vmatpush.bf16.msra.mxu0 %v1830
        %3081 = vmatpush.bf16.msra.mxu0 %v1818
        %3082 = vmatpush.bf16.msra.mxu0 %v1806
        %3083 = vmatpush.bf16.msra.mxu0 %v1794
        %3084 = vmatmul.bf16.gmra.mxu0 %v549
        %v3085 = vpop.f32.mrf.mxu0
        %v3086 = vadd.f32 %v870, %v3085
        %v3087 = vpop.f32.mrf.mxu0
        %v3088 = vadd.f32 %v870, %v3087
        %3089 = vmatmul.bf16.gmra.mxu0 %v553
        %v3090 = vpop.f32.mrf.mxu0
        %v3091 = vadd.f32 %v870, %v3090
        %v3092 = vpop.f32.mrf.mxu0
        %v3093 = vadd.f32 %v870, %v3092
        %3094 = vdwg.mxu0
        %3095 = vmatpush.bf16.msra.mxu0 %v1974
        %3096 = vmatpush.bf16.msra.mxu0 %v1962
        %3097 = vmatpush.bf16.msra.mxu0 %v1950
        %3098 = vmatpush.bf16.msra.mxu0 %v1938
        %3099 = vmatpush.bf16.msra.mxu0 %v1926
        %3100 = vmatpush.bf16.msra.mxu0 %v1914
        %3101 = vmatpush.bf16.msra.mxu0 %v1902
        %3102 = vmatpush.bf16.msra.mxu0 %v1890
        %3103 = vmatmul.bf16.gmra.mxu0 %v550
        %v3104 = vpop.f32.mrf.mxu0
        %v3105 = vadd.f32 %v3086, %v3104
        %v3106 = vpop.f32.mrf.mxu0
        %v3107 = vadd.f32 %v3088, %v3106
        %3108 = vmatmul.bf16.gmra.mxu0 %v554
        %v3109 = vpop.f32.mrf.mxu0
        %v3110 = vadd.f32 %v3091, %v3109
        %v3111 = vpop.f32.mrf.mxu0
        %v3112 = vadd.f32 %v3093, %v3111
        %3113 = vdwg.mxu0
        %3114 = vmatpush.bf16.msra.mxu0 %v2070
        %3115 = vmatpush.bf16.msra.mxu0 %v2058
        %3116 = vmatpush.bf16.msra.mxu0 %v2046
        %3117 = vmatpush.bf16.msra.mxu0 %v2034
        %3118 = vmatpush.bf16.msra.mxu0 %v2022
        %3119 = vmatpush.bf16.msra.mxu0 %v2010
        %3120 = vmatpush.bf16.msra.mxu0 %v1998
        %3121 = vmatpush.bf16.msra.mxu0 %v1986
        %3122 = vmatmul.bf16.gmra.mxu0 %v551
        %v3123 = vpop.f32.mrf.mxu0
        %v3124 = vadd.f32 %v3105, %v3123
        %v3125 = vpop.f32.mrf.mxu0
        %v3126 = vadd.f32 %v3107, %v3125
        %3127 = vmatmul.bf16.gmra.mxu0 %v555
        %v3128 = vpop.f32.mrf.mxu0
        %v3129 = vadd.f32 %v3110, %v3128
        %v3130 = vpop.f32.mrf.mxu0
        %v3131 = vadd.f32 %v3112, %v3130
        %3132 = vdwg.mxu0
        %3133 = vmatpush.bf16.msra.mxu0 0
        %3134 = vmatpush.bf16.msra.mxu0 0
        %3135 = vmatpush.bf16.msra.mxu0 0
        %3136 = vmatpush.bf16.msra.mxu0 0
        %3137 = vmatpush.bf16.msra.mxu0 0
        %3138 = vmatpush.bf16.msra.mxu0 0
        %3139 = vmatpush.bf16.msra.mxu0 0
        %3140 = vmatpush.bf16.msra.mxu0 %v2082
        %3141 = vmatmul.bf16.gmra.mxu0 %v2387
        %v3142 = vpop.f32.mrf.mxu0
        %v3143 = vadd.f32 %v3124, %v3142
        %v3144 = vpop.f32.mrf.mxu0
        %v3145 = vadd.f32 %v3126, %v3144
        %3146 = vmatmul.bf16.gmra.mxu0 %v2390
        %v3147 = vpop.f32.mrf.mxu0
        %v3148 = vadd.f32 %v3129, %v3147
        %v3149 = vpop.f32.mrf.mxu0
        %v3150 = vadd.f32 %v3131, %v3149
        %3151 = vdwg.mxu0
        %3152 = vmatpush.bf16.msra.mxu0 %v1879
        %3153 = vmatpush.bf16.msra.mxu0 %v1867
        %3154 = vmatpush.bf16.msra.mxu0 %v1855
        %3155 = vmatpush.bf16.msra.mxu0 %v1843
        %3156 = vmatpush.bf16.msra.mxu0 %v1831
        %3157 = vmatpush.bf16.msra.mxu0 %v1819
        %3158 = vmatpush.bf16.msra.mxu0 %v1807
        %3159 = vmatpush.bf16.msra.mxu0 %v1795
        %3160 = vmatmul.bf16.gmra.mxu0 %v549
        %v3161 = vpop.f32.mrf.mxu0
        %v3162 = vadd.f32 %v871, %v3161
        %v3163 = vpop.f32.mrf.mxu0
        %v3164 = vadd.f32 %v871, %v3163
        %3165 = vmatmul.bf16.gmra.mxu0 %v553
        %v3166 = vpop.f32.mrf.mxu0
        %v3167 = vadd.f32 %v871, %v3166
        %v3168 = vpop.f32.mrf.mxu0
        %v3169 = vadd.f32 %v871, %v3168
        %3170 = vdwg.mxu0
        %3171 = vmatpush.bf16.msra.mxu0 %v1975
        %3172 = vmatpush.bf16.msra.mxu0 %v1963
        %3173 = vmatpush.bf16.msra.mxu0 %v1951
        %3174 = vmatpush.bf16.msra.mxu0 %v1939
        %3175 = vmatpush.bf16.msra.mxu0 %v1927
        %3176 = vmatpush.bf16.msra.mxu0 %v1915
        %3177 = vmatpush.bf16.msra.mxu0 %v1903
        %3178 = vmatpush.bf16.msra.mxu0 %v1891
        %3179 = vmatmul.bf16.gmra.mxu0 %v550
        %v3180 = vpop.f32.mrf.mxu0
        %v3181 = vadd.f32 %v3162, %v3180
        %v3182 = vpop.f32.mrf.mxu0
        %v3183 = vadd.f32 %v3164, %v3182
        %3184 = vmatmul.bf16.gmra.mxu0 %v554
        %v3185 = vpop.f32.mrf.mxu0
        %v3186 = vadd.f32 %v3167, %v3185
        %v3187 = vpop.f32.mrf.mxu0
        %v3188 = vadd.f32 %v3169, %v3187
        %3189 = vdwg.mxu0
        %3190 = vmatpush.bf16.msra.mxu0 %v2071
        %3191 = vmatpush.bf16.msra.mxu0 %v2059
        %3192 = vmatpush.bf16.msra.mxu0 %v2047
        %3193 = vmatpush.bf16.msra.mxu0 %v2035
        %3194 = vmatpush.bf16.msra.mxu0 %v2023
        %3195 = vmatpush.bf16.msra.mxu0 %v2011
        %3196 = vmatpush.bf16.msra.mxu0 %v1999
        %3197 = vmatpush.bf16.msra.mxu0 %v1987
        %3198 = vmatmul.bf16.gmra.mxu0 %v551
        %v3199 = vpop.f32.mrf.mxu0
        %v3200 = vadd.f32 %v3181, %v3199
        %v3201 = vpop.f32.mrf.mxu0
        %v3202 = vadd.f32 %v3183, %v3201
        %3203 = vmatmul.bf16.gmra.mxu0 %v555
        %v3204 = vpop.f32.mrf.mxu0
        %v3205 = vadd.f32 %v3186, %v3204
        %v3206 = vpop.f32.mrf.mxu0
        %v3207 = vadd.f32 %v3188, %v3206
        %3208 = vdwg.mxu0
        %3209 = vmatpush.bf16.msra.mxu0 0
        %3210 = vmatpush.bf16.msra.mxu0 0
        %3211 = vmatpush.bf16.msra.mxu0 0
        %3212 = vmatpush.bf16.msra.mxu0 0
        %3213 = vmatpush.bf16.msra.mxu0 0
        %3214 = vmatpush.bf16.msra.mxu0 0
        %3215 = vmatpush.bf16.msra.mxu0 0
        %3216 = vmatpush.bf16.msra.mxu0 %v2083
        %3217 = vmatmul.bf16.gmra.mxu0 %v2387
        %v3218 = vpop.f32.mrf.mxu0
        %v3219 = vadd.f32 %v3200, %v3218
        %v3220 = vpop.f32.mrf.mxu0
        %v3221 = vadd.f32 %v3202, %v3220
        %3222 = vmatmul.bf16.gmra.mxu0 %v2390
        %v3223 = vpop.f32.mrf.mxu0
        %v3224 = vadd.f32 %v3205, %v3223
        %v3225 = vpop.f32.mrf.mxu0
        %v3226 = vadd.f32 %v3207, %v3225
        %3227 = vdwg.mxu0
        %3228 = vmatpush.bf16.msra.mxu0 %v1880
        %3229 = vmatpush.bf16.msra.mxu0 %v1868
        %3230 = vmatpush.bf16.msra.mxu0 %v1856
        %3231 = vmatpush.bf16.msra.mxu0 %v1844
        %3232 = vmatpush.bf16.msra.mxu0 %v1832
        %3233 = vmatpush.bf16.msra.mxu0 %v1820
        %3234 = vmatpush.bf16.msra.mxu0 %v1808
        %3235 = vmatpush.bf16.msra.mxu0 %v1796
        %3236 = vmatmul.bf16.gmra.mxu0 %v549
        %v3237 = vpop.f32.mrf.mxu0
        %v3238 = vadd.f32 %v872, %v3237
        %v3239 = vpop.f32.mrf.mxu0
        %v3240 = vadd.f32 %v872, %v3239
        %3241 = vmatmul.bf16.gmra.mxu0 %v553
        %v3242 = vpop.f32.mrf.mxu0
        %v3243 = vadd.f32 %v872, %v3242
        %v3244 = vpop.f32.mrf.mxu0
        %v3245 = vadd.f32 %v872, %v3244
        %3246 = vdwg.mxu0
        %3247 = vmatpush.bf16.msra.mxu0 %v1976
        %3248 = vmatpush.bf16.msra.mxu0 %v1964
        %3249 = vmatpush.bf16.msra.mxu0 %v1952
        %3250 = vmatpush.bf16.msra.mxu0 %v1940
        %3251 = vmatpush.bf16.msra.mxu0 %v1928
        %3252 = vmatpush.bf16.msra.mxu0 %v1916
        %3253 = vmatpush.bf16.msra.mxu0 %v1904
        %3254 = vmatpush.bf16.msra.mxu0 %v1892
        %3255 = vmatmul.bf16.gmra.mxu0 %v550
        %v3256 = vpop.f32.mrf.mxu0
        %v3257 = vadd.f32 %v3238, %v3256
        %v3258 = vpop.f32.mrf.mxu0
        %v3259 = vadd.f32 %v3240, %v3258
        %3260 = vmatmul.bf16.gmra.mxu0 %v554
        %v3261 = vpop.f32.mrf.mxu0
        %v3262 = vadd.f32 %v3243, %v3261
        %v3263 = vpop.f32.mrf.mxu0
        %v3264 = vadd.f32 %v3245, %v3263
        %3265 = vdwg.mxu0
        %3266 = vmatpush.bf16.msra.mxu0 %v2072
        %3267 = vmatpush.bf16.msra.mxu0 %v2060
        %3268 = vmatpush.bf16.msra.mxu0 %v2048
        %3269 = vmatpush.bf16.msra.mxu0 %v2036
        %3270 = vmatpush.bf16.msra.mxu0 %v2024
        %3271 = vmatpush.bf16.msra.mxu0 %v2012
        %3272 = vmatpush.bf16.msra.mxu0 %v2000
        %3273 = vmatpush.bf16.msra.mxu0 %v1988
        %3274 = vmatmul.bf16.gmra.mxu0 %v551
        %v3275 = vpop.f32.mrf.mxu0
        %v3276 = vadd.f32 %v3257, %v3275
        %v3277 = vpop.f32.mrf.mxu0
        %v3278 = vadd.f32 %v3259, %v3277
        %3279 = vmatmul.bf16.gmra.mxu0 %v555
        %v3280 = vpop.f32.mrf.mxu0
        %v3281 = vadd.f32 %v3262, %v3280
        %v3282 = vpop.f32.mrf.mxu0
        %v3283 = vadd.f32 %v3264, %v3282
        %3284 = vdwg.mxu0
        %3285 = vmatpush.bf16.msra.mxu0 0
        %3286 = vmatpush.bf16.msra.mxu0 0
        %3287 = vmatpush.bf16.msra.mxu0 0
        %3288 = vmatpush.bf16.msra.mxu0 0
        %3289 = vmatpush.bf16.msra.mxu0 0
        %3290 = vmatpush.bf16.msra.mxu0 0
        %3291 = vmatpush.bf16.msra.mxu0 0
        %3292 = vmatpush.bf16.msra.mxu0 %v2084
        %3293 = vmatmul.bf16.gmra.mxu0 %v2387
        %v3294 = vpop.f32.mrf.mxu0
        %v3295 = vadd.f32 %v3276, %v3294
        %v3296 = vpop.f32.mrf.mxu0
        %v3297 = vadd.f32 %v3278, %v3296
        %3298 = vmatmul.bf16.gmra.mxu0 %v2390
        %v3299 = vpop.f32.mrf.mxu0
        %v3300 = vadd.f32 %v3281, %v3299
        %v3301 = vpop.f32.mrf.mxu0
        %v3302 = vadd.f32 %v3283, %v3301
        %3303 = vdwg.mxu0
        %v3304 = vmax.f32 %v2459, 0.0
        %v3305 = vmax.f32 %v2535, 0.0
        %v3306 = vmax.f32 %v2611, 0.0
        %v3307 = vmax.f32 %v2687, 0.0
        %v3308 = vmax.f32 %v2763, 0.0
        %v3309 = vmax.f32 %v2839, 0.0
        %v3310 = vmax.f32 %v2915, 0.0
        %v3311 = vmax.f32 %v2991, 0.0
        %v3312 = vmax.f32 %v3067, 0.0
        %v3313 = vmax.f32 %v3143, 0.0
        %v3314 = vmax.f32 %v3219, 0.0
        %v3315 = vmax.f32 %v3295, 0.0
        %v3316 = vmax.f32 %v2461, 0.0
        %v3317 = vmax.f32 %v2537, 0.0
        %v3318 = vmax.f32 %v2613, 0.0
        %v3319 = vmax.f32 %v2689, 0.0
        %v3320 = vmax.f32 %v2765, 0.0
        %v3321 = vmax.f32 %v2841, 0.0
        %v3322 = vmax.f32 %v2917, 0.0
        %v3323 = vmax.f32 %v2993, 0.0
        %v3324 = vmax.f32 %v3069, 0.0
        %v3325 = vmax.f32 %v3145, 0.0
        %v3326 = vmax.f32 %v3221, 0.0
        %v3327 = vmax.f32 %v3297, 0.0
        %v3328 = vmax.f32 %v2464, 0.0
        %v3329 = vmax.f32 %v2540, 0.0
        %v3330 = vmax.f32 %v2616, 0.0
        %v3331 = vmax.f32 %v2692, 0.0
        %v3332 = vmax.f32 %v2768, 0.0
        %v3333 = vmax.f32 %v2844, 0.0
        %v3334 = vmax.f32 %v2920, 0.0
        %v3335 = vmax.f32 %v2996, 0.0
        %v3336 = vmax.f32 %v3072, 0.0
        %v3337 = vmax.f32 %v3148, 0.0
        %v3338 = vmax.f32 %v3224, 0.0
        %v3339 = vmax.f32 %v3300, 0.0
        %v3340 = vmax.f32 %v2466, 0.0
        %v3341 = vmax.f32 %v2542, 0.0
        %v3342 = vmax.f32 %v2618, 0.0
        %v3343 = vmax.f32 %v2694, 0.0
        %v3344 = vmax.f32 %v2770, 0.0
        %v3345 = vmax.f32 %v2846, 0.0
        %v3346 = vmax.f32 %v2922, 0.0
        %v3347 = vmax.f32 %v2998, 0.0
        %v3348 = vmax.f32 %v3074, 0.0
        %v3349 = vmax.f32 %v3150, 0.0
        %v3350 = vmax.f32 %v3226, 0.0
        %v3351 = vmax.f32 %v3302, 0.0
        %v3352 = vmax.f32 %v3304, %v3307
        %v3353 = vmax.f32 %v3305, %v3308
        %v3354 = vmax.f32 %v3306, %v3309
        %v3355 = vmax.f32 %v3316, %v3319
        %v3356 = vmax.f32 %v3317, %v3320
        %v3357 = vmax.f32 %v3318, %v3321
        %v3358 = vmax.f32 %v3328, %v3331
        %v3359 = vmax.f32 %v3329, %v3332
        %v3360 = vmax.f32 %v3330, %v3333
        %v3361 = vmax.f32 %v3340, %v3343
        %v3362 = vmax.f32 %v3341, %v3344
        %v3363 = vmax.f32 %v3342, %v3345
        %v3364 = vmax.f32 %v3310, %v3313
        %v3365 = vmax.f32 %v3311, %v3314
        %v3366 = vmax.f32 %v3312, %v3315
        %v3367 = vmax.f32 %v3322, %v3325
        %v3368 = vmax.f32 %v3323, %v3326
        %v3369 = vmax.f32 %v3324, %v3327
        %v3370 = vmax.f32 %v3334, %v3337
        %v3371 = vmax.f32 %v3335, %v3338
        %v3372 = vmax.f32 %v3336, %v3339
        %v3373 = vmax.f32 %v3346, %v3349
        %v3374 = vmax.f32 %v3347, %v3350
        %v3375 = vmax.f32 %v3348, %v3351
        %v3376 = vmax.f32 %v3352, %v3364
        %v3377 = vmax.f32 %v3353, %v3365
        %v3378 = vmax.f32 %v3354, %v3366
        %v3379 = vmax.f32 %v3355, %v3367
        %v3380 = vmax.f32 %v3356, %v3368
        %v3381 = vmax.f32 %v3357, %v3369
        %v3382 = vmax.f32 %v3358, %v3370
        %v3383 = vmax.f32 %v3359, %v3371
        %v3384 = vmax.f32 %v3360, %v3372
        %v3385 = vmax.f32 %v3361, %v3373
        %v3386 = vmax.f32 %v3362, %v3374
        %v3387 = vmax.f32 %v3363, %v3375
        %v3388 = vpack.c.bf16 %v3379, %v3376
        %v3389 = vpack.c.bf16 %v3380, %v3377
        %v3390 = vpack.c.bf16 %v3381, %v3378
        %v3391 = vpack.c.bf16 %v3385, %v3382
        %v3392 = vpack.c.bf16 %v3386, %v3383
        %v3393 = vpack.c.bf16 %v3387, %v3384
        %v3394 = vld [vmem:[#allocation6] sm:$0xff]
        %v3395 = vld [vmem:[#allocation6 + $0x8] sm:$0xff]
        %v3396 = vld [vmem:[#allocation6 + $0x10] sm:$0xff]
        %v3397 = vld [vmem:[#allocation6 + $0x18] sm:$0xff]
        %v3398 = vld [vmem:[#allocation6 + $0x20] sm:$0xff]
        %v3399 = vld [vmem:[#allocation6 + $0x28] sm:$0xff]
        %v3400 = vld [vmem:[#allocation6 + $0x30] sm:$0xff]
        %v3401 = vld [vmem:[#allocation6 + $0x38] sm:$0xff]
        %v3402 = vld [vmem:[#allocation6 + $0x40] sm:$0xff]
        %v3403 = vld [vmem:[#allocation6 + $0x48] sm:$0xff]
        %v3404 = vld [vmem:[#allocation6 + $0x50] sm:$0xff]
        %v3405 = vld [vmem:[#allocation6 + $0x58] sm:$0xff]
        %v3406 = vld [vmem:[#allocation6 + $0x60] sm:$0xff]
        %v3407 = vld [vmem:[#allocation6 + $0x68] sm:$0xff]
        %v3408 = vld [vmem:[#allocation6 + $0x70] sm:$0xff]
        %v3409 = vld [vmem:[#allocation6 + $0x78] sm:$0xff]
        %v3410 = vld [vmem:[#allocation6 + $0x80] sm:$0xff]
        %v3411 = vld [vmem:[#allocation6 + $0x88] sm:$0xff]
        %v3412 = vld [vmem:[#allocation6 + $0x90] sm:$0xff]
        %v3413 = vld [vmem:[#allocation6 + $0x98] sm:$0xff]
        %v3414 = vld [vmem:[#allocation6 + $0xa0] sm:$0xff]
        %v3415 = vld [vmem:[#allocation6 + $0xa8] sm:$0xff]
        %v3416 = vld [vmem:[#allocation6 + $0xb0] sm:$0xff]
        %v3417 = vld [vmem:[#allocation6 + $0xb8] sm:$0xff]
        %v3418 = vld [vmem:[#allocation6 + $0xc0] sm:$0xff]
        %v3419 = vld [vmem:[#allocation6 + $0xc8] sm:$0xff]
        %v3420 = vld [vmem:[#allocation6 + $0xd0] sm:$0xff]
        %v3421 = vld [vmem:[#allocation6 + $0xd8] sm:$0xff]
        %v3422 = vld [vmem:[#allocation6 + $0xe0] sm:$0xff]
        %v3423 = vld [vmem:[#allocation6 + $0xe8] sm:$0xff]
        %v3424 = vld [vmem:[#allocation6 + $0xf0] sm:$0xff]
        %v3425 = vld [vmem:[#allocation6 + $0xf8] sm:$0xff]
        %v3426 = vld [vmem:[#allocation6 + $0x100] sm:$0xff]
        %v3427 = vld [vmem:[#allocation6 + $0x108] sm:$0xff]
        %v3428 = vld [vmem:[#allocation6 + $0x110] sm:$0xff]
        %v3429 = vld [vmem:[#allocation6 + $0x118] sm:$0xff]
        %v3430 = vld [vmem:[#allocation6 + $0x120] sm:$0xff]
        %v3431 = vld [vmem:[#allocation6 + $0x128] sm:$0xff]
        %v3432 = vld [vmem:[#allocation6 + $0x130] sm:$0xff]
        %v3433 = vld [vmem:[#allocation6 + $0x138] sm:$0xff]
        %v3434 = vld [vmem:[#allocation6 + $0x140] sm:$0xff]
        %v3435 = vld [vmem:[#allocation6 + $0x148] sm:$0xff]
        %v3436 = vld [vmem:[#allocation6 + $0x150] sm:$0xff]
        %v3437 = vld [vmem:[#allocation6 + $0x158] sm:$0xff]
        %v3438 = vld [vmem:[#allocation6 + $0x160] sm:$0xff]
        %v3439 = vld [vmem:[#allocation6 + $0x168] sm:$0xff]
        %v3440 = vld [vmem:[#allocation6 + $0x170] sm:$0xff]
        %v3441 = vld [vmem:[#allocation6 + $0x178] sm:$0xff]
        %v3442 = vld [vmem:[#allocation7] sm:$0x3]
        %v3444 = vperm.slane %v3442, 0
        %v3445 = vperm.slane %v3442, 1
        %v3496 = vunpack.c.l.b16 %v3394
        %v3497 = vunpack.c.h.b16 %v3394
        %v3498 = vunpack.c.l.b16 %v3395
        %v3499 = vunpack.c.h.b16 %v3395
        %v3500 = vunpack.c.l.b16 %v3396
        %v3501 = vunpack.c.h.b16 %v3396
        %v3502 = vunpack.c.l.b16 %v3397
        %v3503 = vunpack.c.h.b16 %v3397
        %v3504 = vunpack.c.l.b16 %v3398
        %v3505 = vunpack.c.h.b16 %v3398
        %v3506 = vunpack.c.l.b16 %v3399
        %v3507 = vunpack.c.h.b16 %v3399
        %v3508 = vunpack.c.l.b16 %v3400
        %v3509 = vunpack.c.h.b16 %v3400
        %v3510 = vunpack.c.l.b16 %v3401
        %v3511 = vunpack.c.h.b16 %v3401
        %v3512 = vunpack.c.l.b16 %v3402
        %v3513 = vunpack.c.h.b16 %v3402
        %v3514 = vunpack.c.l.b16 %v3403
        %v3515 = vunpack.c.h.b16 %v3403
        %v3516 = vunpack.c.l.b16 %v3404
        %v3517 = vunpack.c.h.b16 %v3404
        %v3518 = vunpack.c.l.b16 %v3405
        %v3519 = vunpack.c.h.b16 %v3405
        %v3520 = vunpack.c.l.b16 %v3406
        %v3521 = vunpack.c.h.b16 %v3406
        %v3522 = vunpack.c.l.b16 %v3407
        %v3523 = vunpack.c.h.b16 %v3407
        %v3524 = vunpack.c.l.b16 %v3408
        %v3525 = vunpack.c.h.b16 %v3408
        %v3526 = vunpack.c.l.b16 %v3409
        %v3527 = vunpack.c.h.b16 %v3409
        %v3528 = vunpack.c.l.b16 %v3410
        %v3529 = vunpack.c.h.b16 %v3410
        %v3530 = vunpack.c.l.b16 %v3411
        %v3531 = vunpack.c.h.b16 %v3411
        %v3532 = vunpack.c.l.b16 %v3412
        %v3533 = vunpack.c.h.b16 %v3412
        %v3534 = vunpack.c.l.b16 %v3413
        %v3535 = vunpack.c.h.b16 %v3413
        %v3536 = vunpack.c.l.b16 %v3414
        %v3537 = vunpack.c.h.b16 %v3414
        %v3538 = vunpack.c.l.b16 %v3415
        %v3539 = vunpack.c.h.b16 %v3415
        %v3540 = vunpack.c.l.b16 %v3416
        %v3541 = vunpack.c.h.b16 %v3416
        %v3542 = vunpack.c.l.b16 %v3417
        %v3543 = vunpack.c.h.b16 %v3417
        %v3544 = vunpack.c.l.b16 %v3418
        %v3545 = vunpack.c.h.b16 %v3418
        %v3546 = vunpack.c.l.b16 %v3419
        %v3547 = vunpack.c.h.b16 %v3419
        %v3548 = vunpack.c.l.b16 %v3420
        %v3549 = vunpack.c.h.b16 %v3420
        %v3550 = vunpack.c.l.b16 %v3421
        %v3551 = vunpack.c.h.b16 %v3421
        %v3552 = vunpack.c.l.b16 %v3422
        %v3553 = vunpack.c.h.b16 %v3422
        %v3554 = vunpack.c.l.b16 %v3423
        %v3555 = vunpack.c.h.b16 %v3423
        %v3556 = vunpack.c.l.b16 %v3424
        %v3557 = vunpack.c.h.b16 %v3424
        %v3558 = vunpack.c.l.b16 %v3425
        %v3559 = vunpack.c.h.b16 %v3425
        %v3560 = vunpack.c.l.b16 %v3426
        %v3561 = vunpack.c.h.b16 %v3426
        %v3562 = vunpack.c.l.b16 %v3427
        %v3563 = vunpack.c.h.b16 %v3427
        %v3564 = vunpack.c.l.b16 %v3428
        %v3565 = vunpack.c.h.b16 %v3428
        %v3566 = vunpack.c.l.b16 %v3429
        %v3567 = vunpack.c.h.b16 %v3429
        %v3568 = vunpack.c.l.b16 %v3430
        %v3569 = vunpack.c.h.b16 %v3430
        %v3570 = vunpack.c.l.b16 %v3431
        %v3571 = vunpack.c.h.b16 %v3431
        %v3572 = vunpack.c.l.b16 %v3432
        %v3573 = vunpack.c.h.b16 %v3432
        %v3574 = vunpack.c.l.b16 %v3433
        %v3575 = vunpack.c.h.b16 %v3433
        %v3576 = vunpack.c.l.b16 %v3434
        %v3577 = vunpack.c.h.b16 %v3434
        %v3578 = vunpack.c.l.b16 %v3435
        %v3579 = vunpack.c.h.b16 %v3435
        %v3580 = vunpack.c.l.b16 %v3436
        %v3581 = vunpack.c.h.b16 %v3436
        %v3582 = vunpack.c.l.b16 %v3437
        %v3583 = vunpack.c.h.b16 %v3437
        %v3584 = vunpack.c.l.b16 %v3438
        %v3585 = vunpack.c.h.b16 %v3438
        %v3586 = vunpack.c.l.b16 %v3439
        %v3587 = vunpack.c.h.b16 %v3439
        %v3588 = vunpack.c.l.b16 %v3440
        %v3589 = vunpack.c.h.b16 %v3440
        %v3590 = vunpack.c.l.b16 %v3441
        %v3591 = vunpack.c.h.b16 %v3441
        %v3592 = vpack.c.b16 %v3498, %v3496
        %v3593 = vpack.c.b16 %v3499, %v3497
        %v3594 = vpack.c.b16 %v3502, %v3500
        %v3595 = vpack.c.b16 %v3503, %v3501
        %v3596 = vpack.c.b16 %v3506, %v3504
        %v3597 = vpack.c.b16 %v3507, %v3505
        %v3598 = vpack.c.b16 %v3510, %v3508
        %v3599 = vpack.c.b16 %v3511, %v3509
        %v3600 = vpack.c.b16 %v3514, %v3512
        %v3601 = vpack.c.b16 %v3515, %v3513
        %v3602 = vpack.c.b16 %v3518, %v3516
        %v3603 = vpack.c.b16 %v3519, %v3517
        %v3604 = vpack.c.b16 %v3522, %v3520
        %v3605 = vpack.c.b16 %v3523, %v3521
        %v3606 = vpack.c.b16 %v3526, %v3524
        %v3607 = vpack.c.b16 %v3527, %v3525
        %v3608 = vpack.c.b16 %v3530, %v3528
        %v3609 = vpack.c.b16 %v3531, %v3529
        %v3610 = vpack.c.b16 %v3534, %v3532
        %v3611 = vpack.c.b16 %v3535, %v3533
        %v3612 = vpack.c.b16 %v3538, %v3536
        %v3613 = vpack.c.b16 %v3539, %v3537
        %v3614 = vpack.c.b16 %v3542, %v3540
        %v3615 = vpack.c.b16 %v3543, %v3541
        %v3616 = vpack.c.b16 %v3546, %v3544
        %v3617 = vpack.c.b16 %v3547, %v3545
        %v3618 = vpack.c.b16 %v3550, %v3548
        %v3619 = vpack.c.b16 %v3551, %v3549
        %v3620 = vpack.c.b16 %v3554, %v3552
        %v3621 = vpack.c.b16 %v3555, %v3553
        %v3622 = vpack.c.b16 %v3558, %v3556
        %v3623 = vpack.c.b16 %v3559, %v3557
        %v3624 = vpack.c.b16 %v3562, %v3560
        %v3625 = vpack.c.b16 %v3563, %v3561
        %v3626 = vpack.c.b16 %v3566, %v3564
        %v3627 = vpack.c.b16 %v3567, %v3565
        %v3628 = vpack.c.b16 %v3570, %v3568
        %v3629 = vpack.c.b16 %v3571, %v3569
        %v3630 = vpack.c.b16 %v3574, %v3572
        %v3631 = vpack.c.b16 %v3575, %v3573
        %v3632 = vpack.c.b16 %v3578, %v3576
        %v3633 = vpack.c.b16 %v3579, %v3577
        %v3634 = vpack.c.b16 %v3582, %v3580
        %v3635 = vpack.c.b16 %v3583, %v3581
        %v3636 = vpack.c.b16 %v3586, %v3584
        %v3637 = vpack.c.b16 %v3587, %v3585
        %v3638 = vpack.c.b16 %v3590, %v3588
        %v3639 = vpack.c.b16 %v3591, %v3589
        %3688 = vmatpush.bf16.msra.mxu0 %v3606
        %3689 = vmatpush.bf16.msra.mxu0 %v3604
        %3690 = vmatpush.bf16.msra.mxu0 %v3602
        %3691 = vmatpush.bf16.msra.mxu0 %v3600
        %3692 = vmatpush.bf16.msra.mxu0 %v3598
        %3693 = vmatpush.bf16.msra.mxu0 %v3596
        %3694 = vmatpush.bf16.msra.mxu0 %v3594
        %3695 = vmatpush.bf16.msra.mxu0 %v3592
        %3696 = vmatmul.bf16.gmra.mxu0 %v3388
        %v3697 = vpop.f32.mrf.mxu0
        %v3698 = vadd.f32 %v3444, %v3697
        %v3699 = vpop.f32.mrf.mxu0
        %v3700 = vadd.f32 %v3444, %v3699
        %3701 = vmatmul.bf16.gmra.mxu0 %v3391
        %v3702 = vpop.f32.mrf.mxu0
        %v3703 = vadd.f32 %v3444, %v3702
        %v3704 = vpop.f32.mrf.mxu0
        %v3705 = vadd.f32 %v3444, %v3704
        %3706 = vdwg.mxu0
        %3707 = vmatpush.bf16.msra.mxu0 %v3622
        %3708 = vmatpush.bf16.msra.mxu0 %v3620
        %3709 = vmatpush.bf16.msra.mxu0 %v3618
        %3710 = vmatpush.bf16.msra.mxu0 %v3616
        %3711 = vmatpush.bf16.msra.mxu0 %v3614
        %3712 = vmatpush.bf16.msra.mxu0 %v3612
        %3713 = vmatpush.bf16.msra.mxu0 %v3610
        %3714 = vmatpush.bf16.msra.mxu0 %v3608
        %3715 = vmatmul.bf16.gmra.mxu0 %v3389
        %v3716 = vpop.f32.mrf.mxu0
        %v3717 = vadd.f32 %v3698, %v3716
        %v3718 = vpop.f32.mrf.mxu0
        %v3719 = vadd.f32 %v3700, %v3718
        %3720 = vmatmul.bf16.gmra.mxu0 %v3392
        %v3721 = vpop.f32.mrf.mxu0
        %v3722 = vadd.f32 %v3703, %v3721
        %v3723 = vpop.f32.mrf.mxu0
        %v3724 = vadd.f32 %v3705, %v3723
        %3725 = vdwg.mxu0
        %3726 = vmatpush.bf16.msra.mxu0 %v3638
        %3727 = vmatpush.bf16.msra.mxu0 %v3636
        %3728 = vmatpush.bf16.msra.mxu0 %v3634
        %3729 = vmatpush.bf16.msra.mxu0 %v3632
        %3730 = vmatpush.bf16.msra.mxu0 %v3630
        %3731 = vmatpush.bf16.msra.mxu0 %v3628
        %3732 = vmatpush.bf16.msra.mxu0 %v3626
        %3733 = vmatpush.bf16.msra.mxu0 %v3624
        %3734 = vmatmul.bf16.gmra.mxu0 %v3390
        %v3735 = vpop.f32.mrf.mxu0
        %v3736 = vadd.f32 %v3717, %v3735
        %v3737 = vpop.f32.mrf.mxu0
        %v3738 = vadd.f32 %v3719, %v3737
        %3739 = vmatmul.bf16.gmra.mxu0 %v3393
        %v3740 = vpop.f32.mrf.mxu0
        %v3741 = vadd.f32 %v3722, %v3740
        %v3742 = vpop.f32.mrf.mxu0
        %v3743 = vadd.f32 %v3724, %v3742
        %3744 = vdwg.mxu0
        %3745 = vmatpush.bf16.msra.mxu0 %v3607
        %3746 = vmatpush.bf16.msra.mxu0 %v3605
        %3747 = vmatpush.bf16.msra.mxu0 %v3603
        %3748 = vmatpush.bf16.msra.mxu0 %v3601
        %3749 = vmatpush.bf16.msra.mxu0 %v3599
        %3750 = vmatpush.bf16.msra.mxu0 %v3597
        %3751 = vmatpush.bf16.msra.mxu0 %v3595
        %3752 = vmatpush.bf16.msra.mxu0 %v3593
        %3753 = vmatmul.bf16.gmra.mxu0 %v3388
        %v3754 = vpop.f32.mrf.mxu0
        %v3755 = vadd.f32 %v3445, %v3754
        %v3756 = vpop.f32.mrf.mxu0
        %v3757 = vadd.f32 %v3445, %v3756
        %3758 = vmatmul.bf16.gmra.mxu0 %v3391
        %v3759 = vpop.f32.mrf.mxu0
        %v3760 = vadd.f32 %v3445, %v3759
        %v3761 = vpop.f32.mrf.mxu0
        %v3762 = vadd.f32 %v3445, %v3761
        %3763 = vdwg.mxu0
        %3764 = vmatpush.bf16.msra.mxu0 %v3623
        %3765 = vmatpush.bf16.msra.mxu0 %v3621
        %3766 = vmatpush.bf16.msra.mxu0 %v3619
        %3767 = vmatpush.bf16.msra.mxu0 %v3617
        %3768 = vmatpush.bf16.msra.mxu0 %v3615
        %3769 = vmatpush.bf16.msra.mxu0 %v3613
        %3770 = vmatpush.bf16.msra.mxu0 %v3611
        %3771 = vmatpush.bf16.msra.mxu0 %v3609
        %3772 = vmatmul.bf16.gmra.mxu0 %v3389
        %v3773 = vpop.f32.mrf.mxu0
        %v3774 = vadd.f32 %v3755, %v3773
        %v3775 = vpop.f32.mrf.mxu0
        %v3776 = vadd.f32 %v3757, %v3775
        %3777 = vmatmul.bf16.gmra.mxu0 %v3392
        %v3778 = vpop.f32.mrf.mxu0
        %v3779 = vadd.f32 %v3760, %v3778
        %v3780 = vpop.f32.mrf.mxu0
        %v3781 = vadd.f32 %v3762, %v3780
        %3782 = vdwg.mxu0
        %3783 = vmatpush.bf16.msra.mxu0 %v3639
        %3784 = vmatpush.bf16.msra.mxu0 %v3637
        %3785 = vmatpush.bf16.msra.mxu0 %v3635
        %3786 = vmatpush.bf16.msra.mxu0 %v3633
        %3787 = vmatpush.bf16.msra.mxu0 %v3631
        %3788 = vmatpush.bf16.msra.mxu0 %v3629
        %3789 = vmatpush.bf16.msra.mxu0 %v3627
        %3790 = vmatpush.bf16.msra.mxu0 %v3625
        %3791 = vmatmul.bf16.gmra.mxu0 %v3390
        %v3792 = vpop.f32.mrf.mxu0
        %v3793 = vadd.f32 %v3774, %v3792
        %v3794 = vpop.f32.mrf.mxu0
        %v3795 = vadd.f32 %v3776, %v3794
        %3796 = vmatmul.bf16.gmra.mxu0 %v3393
        %v3797 = vpop.f32.mrf.mxu0
        %v3798 = vadd.f32 %v3779, %v3797
        %v3799 = vpop.f32.mrf.mxu0
        %v3800 = vadd.f32 %v3781, %v3799
        %3801 = vdwg.mxu0
        %v3802 = vmax.f32 %v3736, 0.0
        %v3803 = vmax.f32 %v3793, 0.0
        %v3804 = vmax.f32 %v3738, 0.0
        %v3805 = vmax.f32 %v3795, 0.0
        %v3806 = vmax.f32 %v3741, 0.0
        %v3807 = vmax.f32 %v3798, 0.0
        %v3808 = vmax.f32 %v3743, 0.0
        %v3809 = vmax.f32 %v3800, 0.0
        %3814 = vrot.lane.b32.xlu0 %v3802, 64
        %v3815 = vpop.permute.xlu0 %3814
        %3816 = vrot.lane.b32.xlu0 %v3804, 64
        %v3817 = vpop.permute.xlu0 %3816
        %3818 = vrot.lane.b32.xlu0 %v3806, 64
        %v3819 = vpop.permute.xlu0 %3818
        %3820 = vrot.lane.b32.xlu0 %v3808, 64
        %v3821 = vpop.permute.xlu0 %3820
        %v3826 = vmax.f32 %v3802, %v3815
        %v3827 = vmax.f32 %v3804, %v3817
        %v3828 = vmax.f32 %v3806, %v3819
        %v3829 = vmax.f32 %v3808, %v3821
        %3834 = vrot.lane.b32.xlu0 %v3803, 64
        %v3835 = vpop.permute.xlu0 %3834
        %3836 = vrot.lane.b32.xlu0 %v3805, 64
        %v3837 = vpop.permute.xlu0 %3836
        %3838 = vrot.lane.b32.xlu0 %v3807, 64
        %v3839 = vpop.permute.xlu0 %3838
        %3840 = vrot.lane.b32.xlu0 %v3809, 64
        %v3841 = vpop.permute.xlu0 %3840
        %v3846 = vmax.f32 %v3803, %v3835
        %v3847 = vmax.f32 %v3805, %v3837
        %v3848 = vmax.f32 %v3807, %v3839
        %v3849 = vmax.f32 %v3809, %v3841
        %v3850 = vmax.f32 %v3826, %v3846
        %v3851 = vmax.f32 %v3827, %v3847
        %v3852 = vmax.f32 %v3828, %v3848
        %v3853 = vmax.f32 %v3829, %v3849
        %v3854 = vpack.c.bf16 %v3851, %v3850
        %v3855 = vpack.c.bf16 %v3853, %v3852
        %v3856 = vld [vmem:[#allocation9] sm:$0xf]
        %v3857 = vld [vmem:[#allocation9 + $0x4] sm:$0xf]
        %v3858 = vld [vmem:[#allocation9 + $0x8] sm:$0xf]
        %v3859 = vld [vmem:[#allocation9 + $0xc] sm:$0xf]
        %v3860 = vld [vmem:[#allocation9 + $0x10] sm:$0xf]
        %v3861 = vld [vmem:[#allocation9 + $0x14] sm:$0xf]
        %v3862 = vld [vmem:[#allocation9 + $0x18] sm:$0xf]
        %v3863 = vld [vmem:[#allocation9 + $0x1c] sm:$0xf]
        %v3864 = vld [vmem:[#allocation10] sm:$0x1]
        %v3866 = vperm.slane %v3864, 0
        %v3876 = vunpack.c.l.b16 %v3856
        %v3877 = vunpack.c.l.b16 %v3857
        %v3878 = vunpack.c.l.b16 %v3858
        %v3879 = vunpack.c.l.b16 %v3859
        %v3880 = vunpack.c.l.b16 %v3860
        %v3881 = vunpack.c.l.b16 %v3861
        %v3882 = vunpack.c.l.b16 %v3862
        %v3883 = vunpack.c.l.b16 %v3863
        %v3884 = vpack.c.b16 %v3877, %v3876
        %v3885 = vpack.c.b16 %v3879, %v3878
        %v3886 = vpack.c.b16 %v3881, %v3880
        %v3887 = vpack.c.b16 %v3883, %v3882
        %vm3892 = vcmask 523264
        %v3894 = vsel %vm3892, %v3854, 0
        %v3897 = vsel %vm3892, %v3855, 0
        %3899 = vmatpush.bf16.msra.mxu0 0
        %3900 = vmatpush.bf16.msra.mxu0 0
        %3901 = vmatpush.bf16.msra.mxu0 0
        %3902 = vmatpush.bf16.msra.mxu0 0
        %3903 = vmatpush.bf16.msra.mxu0 %v3887
        %3904 = vmatpush.bf16.msra.mxu0 %v3886
        %3905 = vmatpush.bf16.msra.mxu0 %v3885
        %3906 = vmatpush.bf16.msra.mxu0 %v3884
        %3907 = vmatmul.bf16.gmra.mxu0 %v3894
        %v3908 = vpop.f32.mrf.mxu0
        %v3909 = vadd.f32 %v3866, %v3908
        %v3910 = vpop.f32.mrf.mxu0
        %v3911 = vadd.f32 %v3866, %v3910
        %3912 = vmatmul.bf16.gmra.mxu0 %v3897
        %v3913 = vpop.f32.mrf.mxu0
        %v3914 = vadd.f32 %v3866, %v3913
        %v3915 = vpop.f32.mrf.mxu0
        %v3916 = vadd.f32 %v3866, %v3915
        %3917 = vdwg.mxu0
        %v3918 = vmax.f32 %v3909, 0.0
        %v3919 = vmax.f32 %v3911, 0.0
        %v3920 = vmax.f32 %v3914, 0.0
        %v3921 = vmax.f32 %v3916, 0.0
        %v3922 = vpack.c.bf16 %v3919, %v3918
        %v3923 = vpack.c.bf16 %v3921, %v3920
        %v3924 = vld [vmem:[%s7] sm:$0xf]
        %v3925 = vld [vmem:[%s7 + $0x4] sm:$0xf]
        %v3926 = vld [vmem:[%s7 + $0x8] sm:$0xf]
        %v3927 = vld [vmem:[%s7 + $0xc] sm:$0xf]
        %v3928 = vld [vmem:[%s7 + $0x10] sm:$0xf]
        %v3929 = vld [vmem:[%s7 + $0x14] sm:$0xf]
        %v3930 = vld [vmem:[%s7 + $0x18] sm:$0xf]
        %v3931 = vld [vmem:[%s7 + $0x1c] sm:$0xf]
        %v3932 = vld [vmem:[%s7 + $0x20] sm:$0xf]
        %v3933 = vld [vmem:[%s7 + $0x24] sm:$0xf]
        %v3934 = vld [vmem:[%s7 + $0x28] sm:$0xf]
        %v3935 = vld [vmem:[%s7 + $0x2c] sm:$0xf]
        %v3936 = vld [vmem:[%s7 + $0x30] sm:$0xf]
        %v3937 = vld [vmem:[%s7 + $0x34] sm:$0xf]
        %v3938 = vld [vmem:[%s7 + $0x38] sm:$0xf]
        %v3939 = vld [vmem:[#allocation12] sm:$0x1]
        %v3941 = vperm.slane %v3939, 0
        %v3958 = vunpack.c.l.b16 %v3924
        %v3959 = vunpack.c.l.b16 %v3925
        %v3960 = vunpack.c.l.b16 %v3926
        %v3961 = vunpack.c.l.b16 %v3927
        %v3962 = vunpack.c.l.b16 %v3928
        %v3963 = vunpack.c.l.b16 %v3929
        %v3964 = vunpack.c.l.b16 %v3930
        %v3965 = vunpack.c.l.b16 %v3931
        %v3966 = vunpack.c.l.b16 %v3932
        %v3967 = vunpack.c.l.b16 %v3933
        %v3968 = vunpack.c.l.b16 %v3934
        %v3969 = vunpack.c.l.b16 %v3935
        %v3970 = vunpack.c.l.b16 %v3936
        %v3971 = vunpack.c.l.b16 %v3937
        %v3972 = vunpack.c.l.b16 %v3938
        %v3973 = vpack.c.b16 %v3959, %v3958
        %v3974 = vpack.c.b16 %v3961, %v3960
        %v3975 = vpack.c.b16 %v3963, %v3962
        %v3976 = vpack.c.b16 %v3965, %v3964
        %v3977 = vpack.c.b16 %v3967, %v3966
        %v3978 = vpack.c.b16 %v3969, %v3968
        %v3979 = vpack.c.b16 %v3971, %v3970
        %v3980 = vpack.c.b16 %v3972, %v3972
        %vm3988 = vcmask 982016
        %v3990 = vsel %vm3988, %v3922, 0
        %v3993 = vsel %vm3988, %v3923, 0
        %vm3995 = vcmask 1043456
        %v3997 = vsel %vm3995, %v3980, 0
        %3999 = vmatpush.bf16.msra.mxu0 %v3997
        %4000 = vmatpush.bf16.msra.mxu0 %v3979
        %4001 = vmatpush.bf16.msra.mxu0 %v3978
        %4002 = vmatpush.bf16.msra.mxu0 %v3977
        %4003 = vmatpush.bf16.msra.mxu0 %v3976
        %4004 = vmatpush.bf16.msra.mxu0 %v3975
        %4005 = vmatpush.bf16.msra.mxu0 %v3974
        %4006 = vmatpush.bf16.msra.mxu0 %v3973
        %4007 = vmatmul.bf16.gmra.mxu0 %v3990
        %v4008 = vpop.f32.mrf.mxu0
        %v4009 = vadd.f32 %v3941, %v4008
        %v4010 = vpop.f32.mrf.mxu0
        %v4011 = vadd.f32 %v3941, %v4010
        %4012 = vmatmul.bf16.gmra.mxu0 %v3993
        %v4013 = vpop.f32.mrf.mxu0
        %v4014 = vadd.f32 %v3941, %v4013
        %v4015 = vpop.f32.mrf.mxu0
        %v4016 = vadd.f32 %v3941, %v4015
        %4017 = vdwg.mxu0
        %v4018 = vmax.f32 %v4009, 0.0
        %v4019 = vmax.f32 %v4011, 0.0
        %v4020 = vmax.f32 %v4014, 0.0
        %v4021 = vmax.f32 %v4016, 0.0
        %v4022 = vpack.c.bf16 %v4019, %v4018
        %v4023 = vpack.c.bf16 %v4021, %v4020
        %v4024 = vld [vmem:[#allocation13] sm:$0xf]
        %v4025 = vld [vmem:[#allocation13 + $0x4] sm:$0xf]
        %v4026 = vld [vmem:[#allocation13 + $0x8] sm:$0xf]
        %v4027 = vld [vmem:[#allocation13 + $0xc] sm:$0xf]
        %v4028 = vld [vmem:[#allocation13 + $0x10] sm:$0xf]
        %v4029 = vld [vmem:[#allocation13 + $0x14] sm:$0xf]
        %v4030 = vld [vmem:[#allocation13 + $0x18] sm:$0xf]
        %v4031 = vld [vmem:[#allocation13 + $0x1c] sm:$0xf]
        %v4032 = vld [vmem:[#allocation13 + $0x20] sm:$0xf]
        %v4033 = vld [vmem:[#allocation13 + $0x24] sm:$0xf]
        %v4034 = vld [vmem:[#allocation13 + $0x28] sm:$0x3]
        %v4035 = vld [vmem:[#allocation15] sm:$0x1]
        %v4037 = vperm.slane %v4035, 0
        %v4050 = vunpack.c.l.b16 %v4024
        %v4051 = vunpack.c.l.b16 %v4025
        %v4052 = vunpack.c.l.b16 %v4026
        %v4053 = vunpack.c.l.b16 %v4027
        %v4054 = vunpack.c.l.b16 %v4028
        %v4055 = vunpack.c.l.b16 %v4029
        %v4056 = vunpack.c.l.b16 %v4030
        %v4057 = vunpack.c.l.b16 %v4031
        %v4058 = vunpack.c.l.b16 %v4032
        %v4059 = vunpack.c.l.b16 %v4033
        %v4060 = vunpack.c.l.b16 %v4034
        %v4061 = vpack.c.b16 %v4051, %v4050
        %v4062 = vpack.c.b16 %v4053, %v4052
        %v4063 = vpack.c.b16 %v4055, %v4054
        %v4064 = vpack.c.b16 %v4057, %v4056
        %v4065 = vpack.c.b16 %v4059, %v4058
        %v4066 = vpack.c.b16 %v4060, %v4060
        %vm4072 = vcmask 687104
        %v4074 = vsel %vm4072, %v4022, 0
        %v4077 = vsel %vm4072, %v4023, 0
        %vm4079 = vcmask 1041408
        %v4081 = vsel %vm4079, %v4066, 0
        %4083 = vmatpush.bf16.msra.mxu0 0
        %4084 = vmatpush.bf16.msra.mxu0 0
        %4085 = vmatpush.bf16.msra.mxu0 %v4081
        %4086 = vmatpush.bf16.msra.mxu0 %v4065
        %4087 = vmatpush.bf16.msra.mxu0 %v4064
        %4088 = vmatpush.bf16.msra.mxu0 %v4063
        %4089 = vmatpush.bf16.msra.mxu0 %v4062
        %4090 = vmatpush.bf16.msra.mxu0 %v4061
        %4091 = vmatmul.bf16.gmra.mxu0 %v4074
        %v4092 = vpop.f32.mrf.mxu0
        %v4093 = vadd.f32 %v4037, %v4092
        %v4094 = vpop.f32.mrf.mxu0
        %v4095 = vadd.f32 %v4037, %v4094
        %4096 = vmatmul.bf16.gmra.mxu0 %v4077
        %v4097 = vpop.f32.mrf.mxu0
        %v4098 = vadd.f32 %v4037, %v4097
        %v4099 = vpop.f32.mrf.mxu0
        %v4100 = vadd.f32 %v4037, %v4099
        %4101 = vdwg.mxu0
        %4102 = vst [vmem:[%s530] sm:$0xff] %v4093
        %4103 = vst [vmem:[%s530 + $0x8] sm:$0xff] %v4095
        %4104 = vst [vmem:[%s530 + $0x10] sm:$0xff] %v4098
        %4105 = vst [vmem:[%s530 + $0x18] sm:$0xff] %v4100
        %s4106 = smul.u32 4, %s27
        %p4107 = scmp.lt.s32.totalorder %s4106, 7
        %s4108 = scalar_select %p4107, %s4106, 7
        %s4109 = smul.addr %s4108, 8
        %s4110 = scalar_lea.vmem %s11, %s4109
        // Predicated region
        $region101: #{_net_forward_jit.1} parent=63 // pred_check
          %p4111 = pneg %p281
        $region102: #{_net_forward_jit.1} parent=63 // pred_check_branch
          %4113 = sbr.rel (%p4111) target = $region104
        $region103: #{_net_forward_jit.1} parent=63 // pred_region
          %s4114 = smul.u32 4, %s27
        $region104: #{_net_forward_jit.1} parent=63 // pred_fallthru
          _
      $region64: #{_net_forward_jit.1} parent=5 // pred_fallthru
        _
      %p4115 = scmp.le.s32.totalorder 2, %s22
      // Predicated region
      $region105: #{_net_forward_jit.1} parent=5 // pred_check
        %p4116 = pneg %p4115
      $region106: #{_net_forward_jit.1} parent=5 // pred_check_branch
        %4118 = sbr.rel (%p4116) target = $region108
      $region107: #{_net_forward_jit.1} parent=5 // pred_region
        %s4119 = ssub.s32 %s22, 2
        // Predicated region
        $region109: #{_net_forward_jit.1} parent=107 // pred_check
          %p4120 = pneg %p287
        $region110: #{_net_forward_jit.1} parent=107 // pred_check_branch
          %4122 = sbr.rel (%p4120) target = $region112
        $region111: #{_net_forward_jit.1} parent=107 // pred_region
          %s4123 = smul.u32 4, %s28
          %p4124 = scmp.lt.s32.totalorder %s4123, 7
          %s4125 = scalar_select %p4124, %s4123, 7
          %s4126 = smul.addr %s4125, 8
          %s4127 = scalar_lea.vmem %s11, %s4126
        $region112: #{_net_forward_jit.1} parent=107 // pred_fallthru
          _
      $region108: #{_net_forward_jit.1} parent=5 // pred_fallthru
        _
    $region6: #{_net_forward_jit.1} parent=1 // loop_footer
      %s26 = sadd.s32 1, %s22
    $region7: #{_net_forward_jit.1} parent=1 // loop_footer_branch
      %21 = sbr.rel target = $region3
    $region8: #{_net_forward_jit.1} parent=1 // loop_exit
      _
    %4128 = vsyncpa [#allocation3], 1
    %s4129 = scalar_lea.sflag [#allocation3], 1
    %4130 = vsyncpa %s4129, 1
    %4131 = vsyncpa [#allocation5], 1
    %4132 = vsyncpa [#allocation8], 1
    %4133 = vsyncpa [#allocation11], 1
    %4134 = vsyncpa [#allocation14], 1

</llo_original>
